<compile_context>
chip_gen: v7x
topology: tpu7x:2x2x1
jax: 0.10.0
libtpu: 0.0.40
codegen_flags: <defaults>
</compile_context>

<pallas_src>
import functools

import jax
import jax.numpy as jnp
from jax.experimental import pallas as pl
from jax.experimental.pallas import tpu as pltpu


def _masked_softmax(logits, mask):
    """LeakyReLU(0.2) + masked softmax over the last (lane) axis."""
    logits = jnp.where(logits > 0, logits, 0.2 * logits)          # LeakyReLU(0.2)
    logits = jnp.where(mask, logits, jnp.float32(-1e30))
    m = jnp.max(logits, axis=1, keepdims=True)
    p = jnp.where(mask, jnp.exp(logits - m), 0.0)
    denom = jnp.sum(p, axis=1, keepdims=True)                     # >= 1 (self-loops)
    return p * pl.reciprocal(denom, approx=True)


def _fused_gat_kernel(x_ref, adj_ref,
                      w1_ref, b1_ref, w2_ref, b2_ref, w3_ref, b3_ref, w4_ref, b4_ref,
                      rep_ref, idt_ref, ext_ref, cm1_ref, cm2_ref,
                      out_ref, *, heads, c1, c2, c3, c4):
    f32 = jnp.float32
    adj = adj_ref[...]                       # [N, N]   adj[i, j]: edge j -> i
    rep = rep_ref[...]                       # [H*N, H] rep[h*N+i, h'] = (h' == h)
    idt = idt_ref[...]                       # [H*N, N] idt[h*N+i, j]  = (j == i)
    ext = ext_ref[...]                       # [N, H*N] ext = idt.T
    # Head-stacked mask: row h*N+i is adj[i, :]; shared by layers 1-3 (same H).
    mask_h = jnp.dot(idt, adj, preferred_element_type=f32) > 0.0   # [H*N, N]
    mask_1 = adj > 0.0                                             # [N, N]

    def multi_head_layer(h_in, w_ref, b_ref, cmask_ref, out_ch):
        hc = heads * out_ch
        # xp | alpha_src | alpha_dst from one lane-dense matmul.
        xw = jnp.dot(h_in, w_ref[...], preferred_element_type=f32)       # [N, HC+2H]
        xp = xw[:, :hc]                                                  # [N, HC]
        alphas_t = xw[:, hc:hc + 2 * heads].T                            # [2H, N] (one transpose)
        # src[h*N+i, j] = alpha_src[j, h] ; dst[h*N+i, j] = alpha_dst[j, h]
        src = jnp.dot(rep, alphas_t[:heads], preferred_element_type=f32)   # [H*N, N]
        dst = jnp.dot(rep, alphas_t[heads:], preferred_element_type=f32)   # [H*N, N]
        # dst_col[h*N+i] = alpha_dst[i, h]  (diagonal pick via idt)
        dst_col = jnp.sum(dst * idt, axis=1, keepdims=True)                # [H*N, 1]
        att = _masked_softmax(dst_col + src, mask_h)                       # [H*N, N]
        # Batched per-head aggregation: one big matmul + block-diagonal extraction.
        full = jnp.dot(att, xp, preferred_element_type=f32)                # [H*N, HC]
        out = jnp.dot(ext, full * cmask_ref[...],
                      preferred_element_type=f32)                          # [N, HC]
        return out + b_ref[...]

    def elu(v):
        return jnp.where(v > 0, v, jnp.exp(v) - 1.0)

    h = elu(multi_head_layer(x_ref[...], w1_ref, b1_ref, cm1_ref, c1))
    h = elu(multi_head_layer(h, w2_ref, b2_ref, cm2_ref, c2))
    h = elu(multi_head_layer(h, w3_ref, b3_ref, cm2_ref, c3))

    # Layer 4: heads = 1 -> plain 2-D path.
    xw = jnp.dot(h, w4_ref[...], preferred_element_type=f32)               # [N, C4+2]
    xp = xw[:, :c4]
    a_src = xw[:, c4:c4 + 1]                                               # [N, 1]
    a_dst = xw[:, c4 + 1:c4 + 2]                                           # [N, 1]
    att = _masked_softmax(a_dst + a_src.T, mask_1)                         # [N, N]
    h4 = jnp.dot(att, xp, preferred_element_type=f32) + b4_ref[...]        # [N, C4]

    # log_softmax over classes.
    mrow = jnp.max(h4, axis=1, keepdims=True)
    shifted = h4 - mrow
    out_ref[...] = shifted - jnp.log(jnp.sum(jnp.exp(shifted), axis=1, keepdims=True))


def init_gat_params(key, in_ch, out_ch, heads):
    k1, k2, k3 = jax.random.split(key, 3)
    W = jax.random.normal(k1, (in_ch, heads * out_ch), jnp.float32) / jnp.sqrt(
        jnp.float32(in_ch))
    att_src = jax.random.normal(k2, (heads, out_ch), jnp.float32) * 0.1
    att_dst = jax.random.normal(k3, (heads, out_ch), jnp.float32) * 0.1
    bias = jnp.zeros((heads * out_ch,), jnp.float32)
    return (W, att_src, att_dst, bias)


def _fold_params(params, heads, out_ch):
    """W_aug = [W | W@A_src | W@A_dst] so alpha_src/dst come from the same matmul as xp."""
    W, att_src, att_dst, bias = params
    hc = heads * out_ch
    eye = jnp.eye(heads, dtype=jnp.float32)
    A_src = (att_src[:, :, None] * eye[:, None, :]).reshape(hc, heads)   # block-diag [HC, H]
    A_dst = (att_dst[:, :, None] * eye[:, None, :]).reshape(hc, heads)
    W_aug = jnp.concatenate([W, W @ A_src, W @ A_dst], axis=1)           # [Fin, HC + 2H]
    return W_aug, bias.reshape(1, hc)


def net_amazon_gat_forward(x, adj, params, *, heads, num_classes):
    N = x.shape[0]
    c1, c2, c3, c4 = 16, 8, 8, num_classes
    w1, b1 = _fold_params(params["gat1"], heads, c1)
    w2, b2 = _fold_params(params["gat2"], heads, c2)
    w3, b3 = _fold_params(params["gat3"], heads, c3)
    w4, b4 = _fold_params(params["gat4"], 1, c4)

    # Constant 0/1 helper matrices (head-stacking / extraction), built on host.
    hn = heads * N
    row = jnp.arange(hn)
    rep = (row[:, None] // N == jnp.arange(heads)[None, :]).astype(jnp.float32)   # [HN, H]
    idt = (row[:, None] % N == jnp.arange(N)[None, :]).astype(jnp.float32)        # [HN, N]
    ext = idt.T                                                                    # [N, HN]

    def colmask(C):
        cols = jnp.arange(heads * C)
        return ((row[:, None] // N) == (cols[None, :] // C)).astype(jnp.float32)  # [HN, H*C]

    cm1 = colmask(c1)
    cm2 = colmask(c2)   # shared by layers 2 and 3

    operands = (x, adj, w1, b1, w2, b2, w3, b3, w4, b4, rep, idt, ext, cm1, cm2)

    def fullspec(shape):
        nd = len(shape)
        return pl.BlockSpec(shape, lambda i, _nd=nd: (0,) * _nd)

    kernel = functools.partial(_fused_gat_kernel, heads=heads,
                               c1=c1, c2=c2, c3=c3, c4=c4)

    grid_spec = pltpu.PrefetchScalarGridSpec(
        num_scalar_prefetch=0,
        grid=(1,),
        in_specs=[fullspec(op.shape) for op in operands],
        out_specs=fullspec((N, c4)),
    )

    return pl.pallas_call(
        kernel,
        out_shape=jax.ShapeDtypeStruct((N, c4), jnp.float32),
        grid_spec=grid_spec,
        compiler_params=pltpu.CompilerParams(dimension_semantics=("arbitrary",)),
    )(*operands)


# ---------------- pure-JAX reference (for correctness check) ----------------
def _gat_ref_layer(h, adj, params, heads, out_ch):
    W, att_src, att_dst, bias = params
    N = h.shape[0]
    xp = (h @ W).reshape(N, heads, out_ch)
    a_src = jnp.einsum("nhc,hc->nh", xp, att_src)
    a_dst = jnp.einsum("nhc,hc->nh", xp, att_dst)
    logits = a_dst[:, None, :] + a_src[None, :, :]         # [i, j, h]
    logits = jnp.where(logits > 0, logits, 0.2 * logits)
    mask = (adj > 0.0)[:, :, None]
    logits = jnp.where(mask, logits, -jnp.inf)
    att = jax.nn.softmax(logits, axis=1)                   # softmax over sources j
    out = jnp.einsum("ijh,jhc->ihc", att, xp).reshape(N, heads * out_ch)
    return out + bias


def net_amazon_gat_ref(x, adj, params, heads, num_classes):
    h = jax.nn.elu(_gat_ref_layer(x, adj, params["gat1"], heads, 16))
    h = jax.nn.elu(_gat_ref_layer(h, adj, params["gat2"], heads, 8))
    h = jax.nn.elu(_gat_ref_layer(h, adj, params["gat3"], heads, 8))
    h = _gat_ref_layer(h, adj, params["gat4"], 1, num_classes)
    return jax.nn.log_softmax(h, axis=1)


if __name__ == "__main__":
    num_nodes = 16
    num_node_features = 32
    num_classes = 8
    heads = 8
    num_edges = 40

    root = jax.random.PRNGKey(0)
    kx, ke, k1, k2, k3, k4 = jax.random.split(root, 6)

    x = jax.random.normal(kx, (num_nodes, num_node_features), jnp.float32)
    edge_index = jax.random.randint(ke, (2, num_edges), 0, num_nodes)   # [2, E] (src, dst)

    # Dense adjacency mask: adj[dst, src] = 1, plus self-loops (add_self_loops=True).
    adj = jnp.zeros((num_nodes, num_nodes), jnp.float32)
    adj = adj.at[edge_index[1], edge_index[0]].set(1.0)
    adj = adj.at[jnp.arange(num_nodes), jnp.arange(num_nodes)].set(1.0)

    params = {
        "gat1": init_gat_params(k1, num_node_features, 16, heads),   # -> 16*heads = 128
        "gat2": init_gat_params(k2, 16 * heads, 8, heads),           # -> 8*heads  = 64
        "gat3": init_gat_params(k3, 8 * heads, 8, heads),            # -> 8*heads  = 64
        "gat4": init_gat_params(k4, 8 * heads, num_classes, 1),      # -> num_classes
    }

    fwd = jax.jit(functools.partial(net_amazon_gat_forward, heads=heads,
                                    num_classes=num_classes))
    out = fwd(x, adj, params)
    jax.block_until_ready(out)

    assert out.shape == (num_nodes, num_classes)
    # rows of log_softmax should exponentiate-sum to ~1
    assert bool(jnp.allclose(jnp.sum(jnp.exp(out), axis=1), 1.0, atol=1e-4))
    # match the pure-JAX GATConv reference (approx reciprocal + MXU rounding tolerance)
    ref = net_amazon_gat_ref(x, adj, params, heads, num_classes)
    assert bool(jnp.allclose(out, ref, atol=5e-2, rtol=5e-2))
    print("KERNEL_OK")
</pallas_src>

<mosaic_0001>
module attributes {stable_mosaic.version = 11 : i64} {
  func.func @_fused_gat_kernel(%arg0: i32, %arg1: memref<16x32xf32, #tpu.memory_space<vmem>>, %arg2: memref<16x16xf32, #tpu.memory_space<vmem>>, %arg3: memref<32x144xf32, #tpu.memory_space<vmem>>, %arg4: memref<1x128xf32, #tpu.memory_space<vmem>>, %arg5: memref<128x80xf32, #tpu.memory_space<vmem>>, %arg6: memref<1x64xf32, #tpu.memory_space<vmem>>, %arg7: memref<64x80xf32, #tpu.memory_space<vmem>>, %arg8: memref<1x64xf32, #tpu.memory_space<vmem>>, %arg9: memref<64x10xf32, #tpu.memory_space<vmem>>, %arg10: memref<1x8xf32, #tpu.memory_space<vmem>>, %arg11: memref<128x8xf32, #tpu.memory_space<vmem>>, %arg12: memref<128x16xf32, #tpu.memory_space<vmem>>, %arg13: memref<16x128xf32, #tpu.memory_space<vmem>>, %arg14: memref<128x128xf32, #tpu.memory_space<vmem>>, %arg15: memref<128x64xf32, #tpu.memory_space<vmem>>, %arg16: memref<16x8xf32, #tpu.memory_space<vmem>>) attributes {dimension_semantics = [#tpu.dimension_semantics<arbitrary>], iteration_bounds = array<i64: 1>, scalar_prefetch = 0 : i64, scratch_operands = 0 : i64, tpu.core_type = #tpu.core_type<tc>, window_params = [{pipeline_mode = #tpu.pipeline_mode<synchronous>, transform_indices = @transform_0, window_bounds = array<i64: 16, 32>}, {pipeline_mode = #tpu.pipeline_mode<synchronous>, transform_indices = @transform_1, window_bounds = array<i64: 16, 16>}, {pipeline_mode = #tpu.pipeline_mode<synchronous>, transform_indices = @transform_2, window_bounds = array<i64: 32, 144>}, {pipeline_mode = #tpu.pipeline_mode<synchronous>, transform_indices = @transform_3, window_bounds = array<i64: 1, 128>}, {pipeline_mode = #tpu.pipeline_mode<synchronous>, transform_indices = @transform_4, window_bounds = array<i64: 128, 80>}, {pipeline_mode = #tpu.pipeline_mode<synchronous>, transform_indices = @transform_5, window_bounds = array<i64: 1, 64>}, {pipeline_mode = #tpu.pipeline_mode<synchronous>, transform_indices = @transform_6, window_bounds = array<i64: 64, 80>}, {pipeline_mode = #tpu.pipeline_mode<synchronous>, transform_indices = @transform_7, window_bounds = array<i64: 1, 64>}, {pipeline_mode = #tpu.pipeline_mode<synchronous>, transform_indices = @transform_8, window_bounds = array<i64: 64, 10>}, {pipeline_mode = #tpu.pipeline_mode<synchronous>, transform_indices = @transform_9, window_bounds = array<i64: 1, 8>}, {pipeline_mode = #tpu.pipeline_mode<synchronous>, transform_indices = @transform_10, window_bounds = array<i64: 128, 8>}, {pipeline_mode = #tpu.pipeline_mode<synchronous>, transform_indices = @transform_11, window_bounds = array<i64: 128, 16>}, {pipeline_mode = #tpu.pipeline_mode<synchronous>, transform_indices = @transform_12, window_bounds = array<i64: 16, 128>}, {pipeline_mode = #tpu.pipeline_mode<synchronous>, transform_indices = @transform_13, window_bounds = array<i64: 128, 128>}, {pipeline_mode = #tpu.pipeline_mode<synchronous>, transform_indices = @transform_14, window_bounds = array<i64: 128, 64>}, {pipeline_mode = #tpu.pipeline_mode<synchronous>, transform_indices = @transform_15, window_bounds = array<i64: 16, 8>}]} {
    %c0 = arith.constant 0 : index
    %c0_0 = arith.constant 0 : index
    %0 = vector.load %arg2[%c0, %c0_0] : memref<16x16xf32, #tpu.memory_space<vmem>>, vector<16x16xf32>
    %c0_1 = arith.constant 0 : index
    %c0_2 = arith.constant 0 : index
    %1 = vector.load %arg11[%c0_1, %c0_2] : memref<128x8xf32, #tpu.memory_space<vmem>>, vector<128x8xf32>
    %c0_3 = arith.constant 0 : index
    %c0_4 = arith.constant 0 : index
    %2 = vector.load %arg12[%c0_3, %c0_4] : memref<128x16xf32, #tpu.memory_space<vmem>>, vector<128x16xf32>
    %c0_5 = arith.constant 0 : index
    %c0_6 = arith.constant 0 : index
    %3 = vector.load %arg13[%c0_5, %c0_6] : memref<16x128xf32, #tpu.memory_space<vmem>>, vector<16x128xf32>
    %cst = arith.constant dense<0.000000e+00> : vector<128x16xf32>
    %4 = tpu.matmul %2, %0, %cst {dimension_numbers = #tpu.dot_dimension_numbers<[1], [0], [0], [1], [0, 0, 1, 1], [], []>} : vector<128x16xf32>, vector<16x16xf32>, vector<128x16xf32> -> vector<128x16xf32>
    %cst_7 = arith.constant 0.000000e+00 : f32
    %5 = vector.broadcast %cst_7 : f32 to vector<128x16xf32>
    %6 = arith.cmpf ogt, %4, %5 : vector<128x16xf32>
    %cst_8 = arith.constant 0.000000e+00 : f32
    %7 = vector.broadcast %cst_8 : f32 to vector<16x16xf32>
    %8 = arith.cmpf ogt, %0, %7 : vector<16x16xf32>
    %c0_9 = arith.constant 0 : index
    %c0_10 = arith.constant 0 : index
    %9 = vector.load %arg1[%c0_9, %c0_10] : memref<16x32xf32, #tpu.memory_space<vmem>>, vector<16x32xf32>
    %c0_11 = arith.constant 0 : index
    %c0_12 = arith.constant 0 : index
    %10 = vector.load %arg3[%c0_11, %c0_12] : memref<32x144xf32, #tpu.memory_space<vmem>>, vector<32x144xf32>
    %cst_13 = arith.constant dense<0.000000e+00> : vector<16x144xf32>
    %11 = tpu.matmul %9, %10, %cst_13 {dimension_numbers = #tpu.dot_dimension_numbers<[1], [0], [0], [1], [0, 0, 1, 1], [], []>} : vector<16x32xf32>, vector<32x144xf32>, vector<16x144xf32> -> vector<16x144xf32>
    %12 = vector.extract_strided_slice %11 {offsets = [0, 0], sizes = [16, 128], strides = [1, 1]} : vector<16x144xf32> to vector<16x128xf32>
    %13 = vector.extract_strided_slice %11 {offsets = [0, 128], sizes = [16, 16], strides = [1, 1]} : vector<16x144xf32> to vector<16x16xf32>
    %14 = tpu.transpose %13, [1, 0] : vector<16x16xf32> -> vector<16x16xf32>
    %15 = vector.extract_strided_slice %14 {offsets = [0, 0], sizes = [8, 16], strides = [1, 1]} : vector<16x16xf32> to vector<8x16xf32>
    %cst_14 = arith.constant dense<0.000000e+00> : vector<128x16xf32>
    %16 = tpu.matmul %1, %15, %cst_14 {dimension_numbers = #tpu.dot_dimension_numbers<[1], [0], [0], [1], [0, 0, 1, 1], [], []>} : vector<128x8xf32>, vector<8x16xf32>, vector<128x16xf32> -> vector<128x16xf32>
    %17 = vector.extract_strided_slice %14 {offsets = [8, 0], sizes = [8, 16], strides = [1, 1]} : vector<16x16xf32> to vector<8x16xf32>
    %cst_15 = arith.constant dense<0.000000e+00> : vector<128x16xf32>
    %18 = tpu.matmul %1, %17, %cst_15 {dimension_numbers = #tpu.dot_dimension_numbers<[1], [0], [0], [1], [0, 0, 1, 1], [], []>} : vector<128x8xf32>, vector<8x16xf32>, vector<128x16xf32> -> vector<128x16xf32>
    %19 = arith.mulf %18, %2 : vector<128x16xf32>
    %cst_16 = arith.constant dense<0.000000e+00> : vector<128xf32>
    %20 = vector.multi_reduction <add>, %19, %cst_16 [1] : vector<128x16xf32> to vector<128xf32>
    %21 = vector.shape_cast %20 : vector<128xf32> to vector<128x1xf32>
    %22 = vector.broadcast %21 : vector<128x1xf32> to vector<128x16xf32>
    %23 = arith.addf %22, %16 : vector<128x16xf32>
    %cst_17 = arith.constant 0.000000e+00 : f32
    %24 = vector.broadcast %cst_17 : f32 to vector<128x16xf32>
    %25 = arith.cmpf ogt, %23, %24 : vector<128x16xf32>
    %cst_18 = arith.constant 2.000000e-01 : f32
    %26 = vector.broadcast %cst_18 : f32 to vector<128x16xf32>
    %27 = arith.mulf %26, %23 : vector<128x16xf32>
    %28 = arith.select %25, %23, %27 : vector<128x16xi1>, vector<128x16xf32>
    %cst_19 = arith.constant -1.000000e+30 : f32
    %29 = vector.broadcast %cst_19 : f32 to vector<128x16xf32>
    %30 = arith.select %6, %28, %29 : vector<128x16xi1>, vector<128x16xf32>
    %cst_20 = arith.constant dense<0xFF800000> : vector<128xf32>
    %31 = vector.multi_reduction <maximumf>, %30, %cst_20 [1] : vector<128x16xf32> to vector<128xf32>
    %32 = vector.shape_cast %31 : vector<128xf32> to vector<128x1xf32>
    %33 = vector.broadcast %32 : vector<128x1xf32> to vector<128x16xf32>
    %34 = arith.subf %30, %33 : vector<128x16xf32>
    %35 = math.exp %34 : vector<128x16xf32>
    %cst_21 = arith.constant 0.000000e+00 : f32
    %36 = vector.broadcast %cst_21 : f32 to vector<128x16xf32>
    %37 = arith.select %6, %35, %36 : vector<128x16xi1>, vector<128x16xf32>
    %cst_22 = arith.constant dense<0.000000e+00> : vector<128xf32>
    %38 = vector.multi_reduction <add>, %37, %cst_22 [1] : vector<128x16xf32> to vector<128xf32>
    %39 = vector.shape_cast %38 : vector<128xf32> to vector<128x1xf32>
    %40 = tpu.reciprocal %39 {approx = true} : vector<128x1xf32> -> vector<128x1xf32>
    %41 = vector.broadcast %40 : vector<128x1xf32> to vector<128x16xf32>
    %42 = arith.mulf %37, %41 : vector<128x16xf32>
    %cst_23 = arith.constant dense<0.000000e+00> : vector<128x128xf32>
    %43 = tpu.matmul %42, %12, %cst_23 {dimension_numbers = #tpu.dot_dimension_numbers<[1], [0], [0], [1], [0, 0, 1, 1], [], []>} : vector<128x16xf32>, vector<16x128xf32>, vector<128x128xf32> -> vector<128x128xf32>
    %c0_24 = arith.constant 0 : index
    %c0_25 = arith.constant 0 : index
    %44 = vector.load %arg14[%c0_24, %c0_25] : memref<128x128xf32, #tpu.memory_space<vmem>>, vector<128x128xf32>
    %45 = arith.mulf %43, %44 : vector<128x128xf32>
    %cst_26 = arith.constant dense<0.000000e+00> : vector<16x128xf32>
    %46 = tpu.matmul %3, %45, %cst_26 {dimension_numbers = #tpu.dot_dimension_numbers<[1], [0], [0], [1], [0, 0, 1, 1], [], []>} : vector<16x128xf32>, vector<128x128xf32>, vector<16x128xf32> -> vector<16x128xf32>
    %c0_27 = arith.constant 0 : index
    %c0_28 = arith.constant 0 : index
    %47 = vector.load %arg4[%c0_27, %c0_28] : memref<1x128xf32, #tpu.memory_space<vmem>>, vector<1x128xf32>
    %48 = vector.broadcast %47 : vector<1x128xf32> to vector<16x128xf32>
    %49 = arith.addf %46, %48 : vector<16x128xf32>
    %cst_29 = arith.constant 0.000000e+00 : f32
    %50 = vector.broadcast %cst_29 : f32 to vector<16x128xf32>
    %51 = arith.cmpf ogt, %49, %50 : vector<16x128xf32>
    %52 = math.exp %49 : vector<16x128xf32>
    %cst_30 = arith.constant 1.000000e+00 : f32
    %53 = vector.broadcast %cst_30 : f32 to vector<16x128xf32>
    %54 = arith.subf %52, %53 : vector<16x128xf32>
    %55 = arith.select %51, %49, %54 : vector<16x128xi1>, vector<16x128xf32>
    %c0_31 = arith.constant 0 : index
    %c0_32 = arith.constant 0 : index
    %56 = vector.load %arg5[%c0_31, %c0_32] : memref<128x80xf32, #tpu.memory_space<vmem>>, vector<128x80xf32>
    %cst_33 = arith.constant dense<0.000000e+00> : vector<16x80xf32>
    %57 = tpu.matmul %55, %56, %cst_33 {dimension_numbers = #tpu.dot_dimension_numbers<[1], [0], [0], [1], [0, 0, 1, 1], [], []>} : vector<16x128xf32>, vector<128x80xf32>, vector<16x80xf32> -> vector<16x80xf32>
    %58 = vector.extract_strided_slice %57 {offsets = [0, 0], sizes = [16, 64], strides = [1, 1]} : vector<16x80xf32> to vector<16x64xf32>
    %59 = vector.extract_strided_slice %57 {offsets = [0, 64], sizes = [16, 16], strides = [1, 1]} : vector<16x80xf32> to vector<16x16xf32>
    %60 = tpu.transpose %59, [1, 0] : vector<16x16xf32> -> vector<16x16xf32>
    %61 = vector.extract_strided_slice %60 {offsets = [0, 0], sizes = [8, 16], strides = [1, 1]} : vector<16x16xf32> to vector<8x16xf32>
    %cst_34 = arith.constant dense<0.000000e+00> : vector<128x16xf32>
    %62 = tpu.matmul %1, %61, %cst_34 {dimension_numbers = #tpu.dot_dimension_numbers<[1], [0], [0], [1], [0, 0, 1, 1], [], []>} : vector<128x8xf32>, vector<8x16xf32>, vector<128x16xf32> -> vector<128x16xf32>
    %63 = vector.extract_strided_slice %60 {offsets = [8, 0], sizes = [8, 16], strides = [1, 1]} : vector<16x16xf32> to vector<8x16xf32>
    %cst_35 = arith.constant dense<0.000000e+00> : vector<128x16xf32>
    %64 = tpu.matmul %1, %63, %cst_35 {dimension_numbers = #tpu.dot_dimension_numbers<[1], [0], [0], [1], [0, 0, 1, 1], [], []>} : vector<128x8xf32>, vector<8x16xf32>, vector<128x16xf32> -> vector<128x16xf32>
    %65 = arith.mulf %64, %2 : vector<128x16xf32>
    %cst_36 = arith.constant dense<0.000000e+00> : vector<128xf32>
    %66 = vector.multi_reduction <add>, %65, %cst_36 [1] : vector<128x16xf32> to vector<128xf32>
    %67 = vector.shape_cast %66 : vector<128xf32> to vector<128x1xf32>
    %68 = vector.broadcast %67 : vector<128x1xf32> to vector<128x16xf32>
    %69 = arith.addf %68, %62 : vector<128x16xf32>
    %cst_37 = arith.constant 0.000000e+00 : f32
    %70 = vector.broadcast %cst_37 : f32 to vector<128x16xf32>
    %71 = arith.cmpf ogt, %69, %70 : vector<128x16xf32>
    %cst_38 = arith.constant 2.000000e-01 : f32
    %72 = vector.broadcast %cst_38 : f32 to vector<128x16xf32>
    %73 = arith.mulf %72, %69 : vector<128x16xf32>
    %74 = arith.select %71, %69, %73 : vector<128x16xi1>, vector<128x16xf32>
    %cst_39 = arith.constant -1.000000e+30 : f32
    %75 = vector.broadcast %cst_39 : f32 to vector<128x16xf32>
    %76 = arith.select %6, %74, %75 : vector<128x16xi1>, vector<128x16xf32>
    %cst_40 = arith.constant dense<0xFF800000> : vector<128xf32>
    %77 = vector.multi_reduction <maximumf>, %76, %cst_40 [1] : vector<128x16xf32> to vector<128xf32>
    %78 = vector.shape_cast %77 : vector<128xf32> to vector<128x1xf32>
    %79 = vector.broadcast %78 : vector<128x1xf32> to vector<128x16xf32>
    %80 = arith.subf %76, %79 : vector<128x16xf32>
    %81 = math.exp %80 : vector<128x16xf32>
    %cst_41 = arith.constant 0.000000e+00 : f32
    %82 = vector.broadcast %cst_41 : f32 to vector<128x16xf32>
    %83 = arith.select %6, %81, %82 : vector<128x16xi1>, vector<128x16xf32>
    %cst_42 = arith.constant dense<0.000000e+00> : vector<128xf32>
    %84 = vector.multi_reduction <add>, %83, %cst_42 [1] : vector<128x16xf32> to vector<128xf32>
    %85 = vector.shape_cast %84 : vector<128xf32> to vector<128x1xf32>
    %86 = tpu.reciprocal %85 {approx = true} : vector<128x1xf32> -> vector<128x1xf32>
    %87 = vector.broadcast %86 : vector<128x1xf32> to vector<128x16xf32>
    %88 = arith.mulf %83, %87 : vector<128x16xf32>
    %cst_43 = arith.constant dense<0.000000e+00> : vector<128x64xf32>
    %89 = tpu.matmul %88, %58, %cst_43 {dimension_numbers = #tpu.dot_dimension_numbers<[1], [0], [0], [1], [0, 0, 1, 1], [], []>} : vector<128x16xf32>, vector<16x64xf32>, vector<128x64xf32> -> vector<128x64xf32>
    %c0_44 = arith.constant 0 : index
    %c0_45 = arith.constant 0 : index
    %90 = vector.load %arg15[%c0_44, %c0_45] : memref<128x64xf32, #tpu.memory_space<vmem>>, vector<128x64xf32>
    %91 = arith.mulf %89, %90 : vector<128x64xf32>
    %cst_46 = arith.constant dense<0.000000e+00> : vector<16x64xf32>
    %92 = tpu.matmul %3, %91, %cst_46 {dimension_numbers = #tpu.dot_dimension_numbers<[1], [0], [0], [1], [0, 0, 1, 1], [], []>} : vector<16x128xf32>, vector<128x64xf32>, vector<16x64xf32> -> vector<16x64xf32>
    %c0_47 = arith.constant 0 : index
    %c0_48 = arith.constant 0 : index
    %93 = vector.load %arg6[%c0_47, %c0_48] : memref<1x64xf32, #tpu.memory_space<vmem>>, vector<1x64xf32>
    %94 = vector.broadcast %93 : vector<1x64xf32> to vector<16x64xf32>
    %95 = arith.addf %92, %94 : vector<16x64xf32>
    %cst_49 = arith.constant 0.000000e+00 : f32
    %96 = vector.broadcast %cst_49 : f32 to vector<16x64xf32>
    %97 = arith.cmpf ogt, %95, %96 : vector<16x64xf32>
    %98 = math.exp %95 : vector<16x64xf32>
    %cst_50 = arith.constant 1.000000e+00 : f32
    %99 = vector.broadcast %cst_50 : f32 to vector<16x64xf32>
    %100 = arith.subf %98, %99 : vector<16x64xf32>
    %101 = arith.select %97, %95, %100 : vector<16x64xi1>, vector<16x64xf32>
    %c0_51 = arith.constant 0 : index
    %c0_52 = arith.constant 0 : index
    %102 = vector.load %arg7[%c0_51, %c0_52] : memref<64x80xf32, #tpu.memory_space<vmem>>, vector<64x80xf32>
    %cst_53 = arith.constant dense<0.000000e+00> : vector<16x80xf32>
    %103 = tpu.matmul %101, %102, %cst_53 {dimension_numbers = #tpu.dot_dimension_numbers<[1], [0], [0], [1], [0, 0, 1, 1], [], []>} : vector<16x64xf32>, vector<64x80xf32>, vector<16x80xf32> -> vector<16x80xf32>
    %104 = vector.extract_strided_slice %103 {offsets = [0, 0], sizes = [16, 64], strides = [1, 1]} : vector<16x80xf32> to vector<16x64xf32>
    %105 = vector.extract_strided_slice %103 {offsets = [0, 64], sizes = [16, 16], strides = [1, 1]} : vector<16x80xf32> to vector<16x16xf32>
    %106 = tpu.transpose %105, [1, 0] : vector<16x16xf32> -> vector<16x16xf32>
    %107 = vector.extract_strided_slice %106 {offsets = [0, 0], sizes = [8, 16], strides = [1, 1]} : vector<16x16xf32> to vector<8x16xf32>
    %cst_54 = arith.constant dense<0.000000e+00> : vector<128x16xf32>
    %108 = tpu.matmul %1, %107, %cst_54 {dimension_numbers = #tpu.dot_dimension_numbers<[1], [0], [0], [1], [0, 0, 1, 1], [], []>} : vector<128x8xf32>, vector<8x16xf32>, vector<128x16xf32> -> vector<128x16xf32>
    %109 = vector.extract_strided_slice %106 {offsets = [8, 0], sizes = [8, 16], strides = [1, 1]} : vector<16x16xf32> to vector<8x16xf32>
    %cst_55 = arith.constant dense<0.000000e+00> : vector<128x16xf32>
    %110 = tpu.matmul %1, %109, %cst_55 {dimension_numbers = #tpu.dot_dimension_numbers<[1], [0], [0], [1], [0, 0, 1, 1], [], []>} : vector<128x8xf32>, vector<8x16xf32>, vector<128x16xf32> -> vector<128x16xf32>
    %111 = arith.mulf %110, %2 : vector<128x16xf32>
    %cst_56 = arith.constant dense<0.000000e+00> : vector<128xf32>
    %112 = vector.multi_reduction <add>, %111, %cst_56 [1] : vector<128x16xf32> to vector<128xf32>
    %113 = vector.shape_cast %112 : vector<128xf32> to vector<128x1xf32>
    %114 = vector.broadcast %113 : vector<128x1xf32> to vector<128x16xf32>
    %115 = arith.addf %114, %108 : vector<128x16xf32>
    %cst_57 = arith.constant 0.000000e+00 : f32
    %116 = vector.broadcast %cst_57 : f32 to vector<128x16xf32>
    %117 = arith.cmpf ogt, %115, %116 : vector<128x16xf32>
    %cst_58 = arith.constant 2.000000e-01 : f32
    %118 = vector.broadcast %cst_58 : f32 to vector<128x16xf32>
    %119 = arith.mulf %118, %115 : vector<128x16xf32>
    %120 = arith.select %117, %115, %119 : vector<128x16xi1>, vector<128x16xf32>
    %cst_59 = arith.constant -1.000000e+30 : f32
    %121 = vector.broadcast %cst_59 : f32 to vector<128x16xf32>
    %122 = arith.select %6, %120, %121 : vector<128x16xi1>, vector<128x16xf32>
    %cst_60 = arith.constant dense<0xFF800000> : vector<128xf32>
    %123 = vector.multi_reduction <maximumf>, %122, %cst_60 [1] : vector<128x16xf32> to vector<128xf32>
    %124 = vector.shape_cast %123 : vector<128xf32> to vector<128x1xf32>
    %125 = vector.broadcast %124 : vector<128x1xf32> to vector<128x16xf32>
    %126 = arith.subf %122, %125 : vector<128x16xf32>
    %127 = math.exp %126 : vector<128x16xf32>
    %cst_61 = arith.constant 0.000000e+00 : f32
    %128 = vector.broadcast %cst_61 : f32 to vector<128x16xf32>
    %129 = arith.select %6, %127, %128 : vector<128x16xi1>, vector<128x16xf32>
    %cst_62 = arith.constant dense<0.000000e+00> : vector<128xf32>
    %130 = vector.multi_reduction <add>, %129, %cst_62 [1] : vector<128x16xf32> to vector<128xf32>
    %131 = vector.shape_cast %130 : vector<128xf32> to vector<128x1xf32>
    %132 = tpu.reciprocal %131 {approx = true} : vector<128x1xf32> -> vector<128x1xf32>
    %133 = vector.broadcast %132 : vector<128x1xf32> to vector<128x16xf32>
    %134 = arith.mulf %129, %133 : vector<128x16xf32>
    %cst_63 = arith.constant dense<0.000000e+00> : vector<128x64xf32>
    %135 = tpu.matmul %134, %104, %cst_63 {dimension_numbers = #tpu.dot_dimension_numbers<[1], [0], [0], [1], [0, 0, 1, 1], [], []>} : vector<128x16xf32>, vector<16x64xf32>, vector<128x64xf32> -> vector<128x64xf32>
    %c0_64 = arith.constant 0 : index
    %c0_65 = arith.constant 0 : index
    %136 = vector.load %arg15[%c0_64, %c0_65] : memref<128x64xf32, #tpu.memory_space<vmem>>, vector<128x64xf32>
    %137 = arith.mulf %135, %136 : vector<128x64xf32>
    %cst_66 = arith.constant dense<0.000000e+00> : vector<16x64xf32>
    %138 = tpu.matmul %3, %137, %cst_66 {dimension_numbers = #tpu.dot_dimension_numbers<[1], [0], [0], [1], [0, 0, 1, 1], [], []>} : vector<16x128xf32>, vector<128x64xf32>, vector<16x64xf32> -> vector<16x64xf32>
    %c0_67 = arith.constant 0 : index
    %c0_68 = arith.constant 0 : index
    %139 = vector.load %arg8[%c0_67, %c0_68] : memref<1x64xf32, #tpu.memory_space<vmem>>, vector<1x64xf32>
    %140 = vector.broadcast %139 : vector<1x64xf32> to vector<16x64xf32>
    %141 = arith.addf %138, %140 : vector<16x64xf32>
    %cst_69 = arith.constant 0.000000e+00 : f32
    %142 = vector.broadcast %cst_69 : f32 to vector<16x64xf32>
    %143 = arith.cmpf ogt, %141, %142 : vector<16x64xf32>
    %144 = math.exp %141 : vector<16x64xf32>
    %cst_70 = arith.constant 1.000000e+00 : f32
    %145 = vector.broadcast %cst_70 : f32 to vector<16x64xf32>
    %146 = arith.subf %144, %145 : vector<16x64xf32>
    %147 = arith.select %143, %141, %146 : vector<16x64xi1>, vector<16x64xf32>
    %c0_71 = arith.constant 0 : index
    %c0_72 = arith.constant 0 : index
    %148 = vector.load %arg9[%c0_71, %c0_72] : memref<64x10xf32, #tpu.memory_space<vmem>>, vector<64x10xf32>
    %cst_73 = arith.constant dense<0.000000e+00> : vector<16x10xf32>
    %149 = tpu.matmul %147, %148, %cst_73 {dimension_numbers = #tpu.dot_dimension_numbers<[1], [0], [0], [1], [0, 0, 1, 1], [], []>} : vector<16x64xf32>, vector<64x10xf32>, vector<16x10xf32> -> vector<16x10xf32>
    %150 = vector.extract_strided_slice %149 {offsets = [0, 0], sizes = [16, 8], strides = [1, 1]} : vector<16x10xf32> to vector<16x8xf32>
    %151 = vector.extract_strided_slice %149 {offsets = [0, 8], sizes = [16, 1], strides = [1, 1]} : vector<16x10xf32> to vector<16x1xf32>
    %152 = vector.extract_strided_slice %149 {offsets = [0, 9], sizes = [16, 1], strides = [1, 1]} : vector<16x10xf32> to vector<16x1xf32>
    %153 = tpu.transpose %151, [1, 0] : vector<16x1xf32> -> vector<1x16xf32>
    %154 = vector.broadcast %152 : vector<16x1xf32> to vector<16x16xf32>
    %155 = vector.broadcast %153 : vector<1x16xf32> to vector<16x16xf32>
    %156 = arith.addf %154, %155 : vector<16x16xf32>
    %cst_74 = arith.constant 0.000000e+00 : f32
    %157 = vector.broadcast %cst_74 : f32 to vector<16x16xf32>
    %158 = arith.cmpf ogt, %156, %157 : vector<16x16xf32>
    %cst_75 = arith.constant 2.000000e-01 : f32
    %159 = vector.broadcast %cst_75 : f32 to vector<16x16xf32>
    %160 = arith.mulf %159, %156 : vector<16x16xf32>
    %161 = arith.select %158, %156, %160 : vector<16x16xi1>, vector<16x16xf32>
    %cst_76 = arith.constant -1.000000e+30 : f32
    %162 = vector.broadcast %cst_76 : f32 to vector<16x16xf32>
    %163 = arith.select %8, %161, %162 : vector<16x16xi1>, vector<16x16xf32>
    %cst_77 = arith.constant dense<0xFF800000> : vector<16xf32>
    %164 = vector.multi_reduction <maximumf>, %163, %cst_77 [1] : vector<16x16xf32> to vector<16xf32>
    %165 = vector.shape_cast %164 : vector<16xf32> to vector<16x1xf32>
    %166 = vector.broadcast %165 : vector<16x1xf32> to vector<16x16xf32>
    %167 = arith.subf %163, %166 : vector<16x16xf32>
    %168 = math.exp %167 : vector<16x16xf32>
    %cst_78 = arith.constant 0.000000e+00 : f32
    %169 = vector.broadcast %cst_78 : f32 to vector<16x16xf32>
    %170 = arith.select %8, %168, %169 : vector<16x16xi1>, vector<16x16xf32>
    %cst_79 = arith.constant dense<0.000000e+00> : vector<16xf32>
    %171 = vector.multi_reduction <add>, %170, %cst_79 [1] : vector<16x16xf32> to vector<16xf32>
    %172 = vector.shape_cast %171 : vector<16xf32> to vector<16x1xf32>
    %173 = tpu.reciprocal %172 {approx = true} : vector<16x1xf32> -> vector<16x1xf32>
    %174 = vector.broadcast %173 : vector<16x1xf32> to vector<16x16xf32>
    %175 = arith.mulf %170, %174 : vector<16x16xf32>
    %cst_80 = arith.constant dense<0.000000e+00> : vector<16x8xf32>
    %176 = tpu.matmul %175, %150, %cst_80 {dimension_numbers = #tpu.dot_dimension_numbers<[1], [0], [0], [1], [0, 0, 1, 1], [], []>} : vector<16x16xf32>, vector<16x8xf32>, vector<16x8xf32> -> vector<16x8xf32>
    %c0_81 = arith.constant 0 : index
    %c0_82 = arith.constant 0 : index
    %177 = vector.load %arg10[%c0_81, %c0_82] : memref<1x8xf32, #tpu.memory_space<vmem>>, vector<1x8xf32>
    %178 = vector.broadcast %177 : vector<1x8xf32> to vector<16x8xf32>
    %179 = arith.addf %176, %178 : vector<16x8xf32>
    %cst_83 = arith.constant dense<0xFF800000> : vector<16xf32>
    %180 = vector.multi_reduction <maximumf>, %179, %cst_83 [1] : vector<16x8xf32> to vector<16xf32>
    %181 = vector.shape_cast %180 : vector<16xf32> to vector<16x1xf32>
    %182 = vector.broadcast %181 : vector<16x1xf32> to vector<16x8xf32>
    %183 = arith.subf %179, %182 : vector<16x8xf32>
    %184 = math.exp %183 : vector<16x8xf32>
    %cst_84 = arith.constant dense<0.000000e+00> : vector<16xf32>
    %185 = vector.multi_reduction <add>, %184, %cst_84 [1] : vector<16x8xf32> to vector<16xf32>
    %186 = vector.shape_cast %185 : vector<16xf32> to vector<16x1xf32>
    %187 = math.log %186 : vector<16x1xf32>
    %188 = vector.broadcast %187 : vector<16x1xf32> to vector<16x8xf32>
    %189 = arith.subf %183, %188 : vector<16x8xf32>
    %c0_85 = arith.constant 0 : index
    %c0_86 = arith.constant 0 : index
    %190 = vector.load %arg16[%c0_85, %c0_86] : memref<16x8xf32, #tpu.memory_space<vmem>>, vector<16x8xf32>
    tpu.vector_store %arg16[%c0_85, %c0_86], %189 {strides = array<i32>} : memref<16x8xf32, #tpu.memory_space<vmem>>, vector<16x8xf32>,
    return
  }
  func.func @transform_0(%arg0: i32) -> (i32, i32) {
    %c0_i32 = arith.constant 0 : i32
    %c0_i32_0 = arith.constant 0 : i32
    %c0_i32_1 = arith.constant 0 : i32
    return %c0_i32, %c0_i32_0 : i32, i32
  }
  func.func @transform_1(%arg0: i32) -> (i32, i32) {
    %c0_i32 = arith.constant 0 : i32
    %c0_i32_0 = arith.constant 0 : i32
    %c0_i32_1 = arith.constant 0 : i32
    return %c0_i32, %c0_i32_0 : i32, i32
  }
  func.func @transform_2(%arg0: i32) -> (i32, i32) {
    %c0_i32 = arith.constant 0 : i32
    %c0_i32_0 = arith.constant 0 : i32
    %c0_i32_1 = arith.constant 0 : i32
    return %c0_i32, %c0_i32_0 : i32, i32
  }
  func.func @transform_3(%arg0: i32) -> (i32, i32) {
    %c0_i32 = arith.constant 0 : i32
    %c0_i32_0 = arith.constant 0 : i32
    %c0_i32_1 = arith.constant 0 : i32
    return %c0_i32, %c0_i32_0 : i32, i32
  }
  func.func @transform_4(%arg0: i32) -> (i32, i32) {
    %c0_i32 = arith.constant 0 : i32
    %c0_i32_0 = arith.constant 0 : i32
    %c0_i32_1 = arith.constant 0 : i32
    return %c0_i32, %c0_i32_0 : i32, i32
  }
  func.func @transform_5(%arg0: i32) -> (i32, i32) {
    %c0_i32 = arith.constant 0 : i32
    %c0_i32_0 = arith.constant 0 : i32
    %c0_i32_1 = arith.constant 0 : i32
    return %c0_i32, %c0_i32_0 : i32, i32
  }
  func.func @transform_6(%arg0: i32) -> (i32, i32) {
    %c0_i32 = arith.constant 0 : i32
    %c0_i32_0 = arith.constant 0 : i32
    %c0_i32_1 = arith.constant 0 : i32
    return %c0_i32, %c0_i32_0 : i32, i32
  }
  func.func @transform_7(%arg0: i32) -> (i32, i32) {
    %c0_i32 = arith.constant 0 : i32
    %c0_i32_0 = arith.constant 0 : i32
    %c0_i32_1 = arith.constant 0 : i32
    return %c0_i32, %c0_i32_0 : i32, i32
  }
  func.func @transform_8(%arg0: i32) -> (i32, i32) {
    %c0_i32 = arith.constant 0 : i32
    %c0_i32_0 = arith.constant 0 : i32
    %c0_i32_1 = arith.constant 0 : i32
    return %c0_i32, %c0_i32_0 : i32, i32
  }
  func.func @transform_9(%arg0: i32) -> (i32, i32) {
    %c0_i32 = arith.constant 0 : i32
    %c0_i32_0 = arith.constant 0 : i32
    %c0_i32_1 = arith.constant 0 : i32
    return %c0_i32, %c0_i32_0 : i32, i32
  }
  func.func @transform_10(%arg0: i32) -> (i32, i32) {
    %c0_i32 = arith.constant 0 : i32
    %c0_i32_0 = arith.constant 0 : i32
    %c0_i32_1 = arith.constant 0 : i32
    return %c0_i32, %c0_i32_0 : i32, i32
  }
  func.func @transform_11(%arg0: i32) -> (i32, i32) {
    %c0_i32 = arith.constant 0 : i32
    %c0_i32_0 = arith.constant 0 : i32
    %c0_i32_1 = arith.constant 0 : i32
    return %c0_i32, %c0_i32_0 : i32, i32
  }
  func.func @transform_12(%arg0: i32) -> (i32, i32) {
    %c0_i32 = arith.constant 0 : i32
    %c0_i32_0 = arith.constant 0 : i32
    %c0_i32_1 = arith.constant 0 : i32
    return %c0_i32, %c0_i32_0 : i32, i32
  }
  func.func @transform_13(%arg0: i32) -> (i32, i32) {
    %c0_i32 = arith.constant 0 : i32
    %c0_i32_0 = arith.constant 0 : i32
    %c0_i32_1 = arith.constant 0 : i32
    return %c0_i32, %c0_i32_0 : i32, i32
  }
  func.func @transform_14(%arg0: i32) -> (i32, i32) {
    %c0_i32 = arith.constant 0 : i32
    %c0_i32_0 = arith.constant 0 : i32
    %c0_i32_1 = arith.constant 0 : i32
    return %c0_i32, %c0_i32_0 : i32, i32
  }
  func.func @transform_15(%arg0: i32) -> (i32, i32) {
    %c0_i32 = arith.constant 0 : i32
    %c0_i32_0 = arith.constant 0 : i32
    %c0_i32_1 = arith.constant 0 : i32
    return %c0_i32, %c0_i32_0 : i32, i32
  }
}

</mosaic_0001>

<llo_original>
// kernel: net_amazon_gat_forward.1
$region0: #{net_amazon_gat_forward.1}
  #allocation0 [shape = 'u32[]', space=smem, size = 0x4, offset = 0x4, fixed_abs, tag = 'smem constant byte address 0x4 - core index']
  #allocation1 [shape = 'u32[144,128]{1,0:T(1,128)}', space=vmem, size = 0x12000, scoped, tag = 'internal scratch']
  %s0 = inlined_call_operand.vmem [shape: f32[16,32], index: 0, kind: input, shape index: {}]
  %s1 = inlined_call_operand.vmem [shape: f32[16,16], index: 1, kind: input, shape index: {}]
  %s2 = inlined_call_operand.vmem [shape: f32[32,144], index: 2, kind: input, shape index: {}]
  %s3 = inlined_call_operand.vmem [shape: f32[1,128], index: 3, kind: input, shape index: {}]
  %s4 = inlined_call_operand.vmem [shape: f32[128,80], index: 4, kind: input, shape index: {}]
  %s5 = inlined_call_operand.vmem [shape: f32[1,64], index: 5, kind: input, shape index: {}]
  %s6 = inlined_call_operand.vmem [shape: f32[64,80], index: 6, kind: input, shape index: {}]
  %s7 = inlined_call_operand.vmem [shape: f32[1,64], index: 7, kind: input, shape index: {}]
  %s8 = inlined_call_operand.vmem [shape: f32[64,10], index: 8, kind: input, shape index: {}]
  %s9 = inlined_call_operand.vmem [shape: f32[1,8], index: 9, kind: input, shape index: {}]
  %s10 = inlined_call_operand.vmem [shape: f32[128,8], index: 10, kind: input, shape index: {}]
  %s11 = inlined_call_operand.vmem [shape: f32[128,16], index: 11, kind: input, shape index: {}]
  %s12 = inlined_call_operand.vmem [shape: f32[16,128], index: 12, kind: input, shape index: {}]
  %s13 = inlined_call_operand.vmem [shape: f32[128,128], index: 13, kind: input, shape index: {}]
  %s14 = inlined_call_operand.vmem [shape: f32[128,64], index: 14, kind: input, shape index: {}]
  %s15 = inlined_call_operand.vmem [shape: f32[16,8], index: 15, kind: output, shape index: {}]
  %s16 = sld [smem:[#allocation0]]
  $region70: #{net_amazon_gat_forward.1} parent=0
    _
  %s18 = ssub.s32 1, %s16
  %s19 = scalar_select 0, %s18, %s16
  // Predicated region
  $region2: #{net_amazon_gat_forward.1} parent=0 // pred_check
    _
  $region3: #{net_amazon_gat_forward.1} parent=0 // pred_check_branch
    %21 = sbr.rel (0) target = $region5
  $region4: #{net_amazon_gat_forward.1} parent=0 // pred_region
    _
  $region5: #{net_amazon_gat_forward.1} parent=0 // pred_fallthru
    _
  // Predicated region
  $region6: #{net_amazon_gat_forward.1} parent=0 // pred_check
    _
  $region7: #{net_amazon_gat_forward.1} parent=0 // pred_check_branch
    %23 = sbr.rel (0) target = $region9
  $region8: #{net_amazon_gat_forward.1} parent=0 // pred_region
    _
  $region9: #{net_amazon_gat_forward.1} parent=0 // pred_fallthru
    _
  // Predicated region
  $region10: #{net_amazon_gat_forward.1} parent=0 // pred_check
    _
  $region11: #{net_amazon_gat_forward.1} parent=0 // pred_check_branch
    %25 = sbr.rel (0) target = $region13
  $region12: #{net_amazon_gat_forward.1} parent=0 // pred_region
    _
  $region13: #{net_amazon_gat_forward.1} parent=0 // pred_fallthru
    _
  // Predicated region
  $region14: #{net_amazon_gat_forward.1} parent=0 // pred_check
    _
  $region15: #{net_amazon_gat_forward.1} parent=0 // pred_check_branch
    %27 = sbr.rel (0) target = $region17
  $region16: #{net_amazon_gat_forward.1} parent=0 // pred_region
    _
  $region17: #{net_amazon_gat_forward.1} parent=0 // pred_fallthru
    _
  // Predicated region
  $region18: #{net_amazon_gat_forward.1} parent=0 // pred_check
    _
  $region19: #{net_amazon_gat_forward.1} parent=0 // pred_check_branch
    %29 = sbr.rel (0) target = $region21
  $region20: #{net_amazon_gat_forward.1} parent=0 // pred_region
    _
  $region21: #{net_amazon_gat_forward.1} parent=0 // pred_fallthru
    _
  // Predicated region
  $region22: #{net_amazon_gat_forward.1} parent=0 // pred_check
    _
  $region23: #{net_amazon_gat_forward.1} parent=0 // pred_check_branch
    %31 = sbr.rel (0) target = $region25
  $region24: #{net_amazon_gat_forward.1} parent=0 // pred_region
    _
  $region25: #{net_amazon_gat_forward.1} parent=0 // pred_fallthru
    _
  // Predicated region
  $region26: #{net_amazon_gat_forward.1} parent=0 // pred_check
    _
  $region27: #{net_amazon_gat_forward.1} parent=0 // pred_check_branch
    %33 = sbr.rel (0) target = $region29
  $region28: #{net_amazon_gat_forward.1} parent=0 // pred_region
    _
  $region29: #{net_amazon_gat_forward.1} parent=0 // pred_fallthru
    _
  // Predicated region
  $region30: #{net_amazon_gat_forward.1} parent=0 // pred_check
    _
  $region31: #{net_amazon_gat_forward.1} parent=0 // pred_check_branch
    %35 = sbr.rel (0) target = $region33
  $region32: #{net_amazon_gat_forward.1} parent=0 // pred_region
    _
  $region33: #{net_amazon_gat_forward.1} parent=0 // pred_fallthru
    _
  // Predicated region
  $region34: #{net_amazon_gat_forward.1} parent=0 // pred_check
    _
  $region35: #{net_amazon_gat_forward.1} parent=0 // pred_check_branch
    %37 = sbr.rel (0) target = $region37
  $region36: #{net_amazon_gat_forward.1} parent=0 // pred_region
    _
  $region37: #{net_amazon_gat_forward.1} parent=0 // pred_fallthru
    _
  // Predicated region
  $region38: #{net_amazon_gat_forward.1} parent=0 // pred_check
    _
  $region39: #{net_amazon_gat_forward.1} parent=0 // pred_check_branch
    %39 = sbr.rel (0) target = $region41
  $region40: #{net_amazon_gat_forward.1} parent=0 // pred_region
    _
  $region41: #{net_amazon_gat_forward.1} parent=0 // pred_fallthru
    _
  // Predicated region
  $region42: #{net_amazon_gat_forward.1} parent=0 // pred_check
    _
  $region43: #{net_amazon_gat_forward.1} parent=0 // pred_check_branch
    %41 = sbr.rel (0) target = $region45
  $region44: #{net_amazon_gat_forward.1} parent=0 // pred_region
    _
  $region45: #{net_amazon_gat_forward.1} parent=0 // pred_fallthru
    _
  // Predicated region
  $region46: #{net_amazon_gat_forward.1} parent=0 // pred_check
    _
  $region47: #{net_amazon_gat_forward.1} parent=0 // pred_check_branch
    %43 = sbr.rel (0) target = $region49
  $region48: #{net_amazon_gat_forward.1} parent=0 // pred_region
    _
  $region49: #{net_amazon_gat_forward.1} parent=0 // pred_fallthru
    _
  // Predicated region
  $region50: #{net_amazon_gat_forward.1} parent=0 // pred_check
    _
  $region51: #{net_amazon_gat_forward.1} parent=0 // pred_check_branch
    %45 = sbr.rel (0) target = $region53
  $region52: #{net_amazon_gat_forward.1} parent=0 // pred_region
    _
  $region53: #{net_amazon_gat_forward.1} parent=0 // pred_fallthru
    _
  // Predicated region
  $region54: #{net_amazon_gat_forward.1} parent=0 // pred_check
    _
  $region55: #{net_amazon_gat_forward.1} parent=0 // pred_check_branch
    %47 = sbr.rel (0) target = $region57
  $region56: #{net_amazon_gat_forward.1} parent=0 // pred_region
    _
  $region57: #{net_amazon_gat_forward.1} parent=0 // pred_fallthru
    _
  // Predicated region
  $region58: #{net_amazon_gat_forward.1} parent=0 // pred_check
    _
  $region59: #{net_amazon_gat_forward.1} parent=0 // pred_check_branch
    %49 = sbr.rel (0) target = $region61
  $region60: #{net_amazon_gat_forward.1} parent=0 // pred_region
    _
  $region61: #{net_amazon_gat_forward.1} parent=0 // pred_fallthru
    _
  %v50 = vld [vmem:[%s1] sm:$0xff]
  %v51 = vld [vmem:[%s1 + $0x8] sm:$0xff]
  %v52 = vld [vmem:[%s10] sm:$0xff]
  %v53 = vld [vmem:[%s10 + $0x8] sm:$0xff]
  %v54 = vld [vmem:[%s10 + $0x10] sm:$0xff]
  %v55 = vld [vmem:[%s10 + $0x18] sm:$0xff]
  %v56 = vld [vmem:[%s10 + $0x20] sm:$0xff]
  %v57 = vld [vmem:[%s10 + $0x28] sm:$0xff]
  %v58 = vld [vmem:[%s10 + $0x30] sm:$0xff]
  %v59 = vld [vmem:[%s10 + $0x38] sm:$0xff]
  %v60 = vld [vmem:[%s10 + $0x40] sm:$0xff]
  %v61 = vld [vmem:[%s10 + $0x48] sm:$0xff]
  %v62 = vld [vmem:[%s10 + $0x50] sm:$0xff]
  %v63 = vld [vmem:[%s10 + $0x58] sm:$0xff]
  %v64 = vld [vmem:[%s10 + $0x60] sm:$0xff]
  %v65 = vld [vmem:[%s10 + $0x68] sm:$0xff]
  %v66 = vld [vmem:[%s10 + $0x70] sm:$0xff]
  %v67 = vld [vmem:[%s10 + $0x78] sm:$0xff]
  %v68 = vld [vmem:[%s11] sm:$0xff]
  %v69 = vld [vmem:[%s11 + $0x8] sm:$0xff]
  %v70 = vld [vmem:[%s11 + $0x10] sm:$0xff]
  %v71 = vld [vmem:[%s11 + $0x18] sm:$0xff]
  %v72 = vld [vmem:[%s11 + $0x20] sm:$0xff]
  %v73 = vld [vmem:[%s11 + $0x28] sm:$0xff]
  %v74 = vld [vmem:[%s11 + $0x30] sm:$0xff]
  %v75 = vld [vmem:[%s11 + $0x38] sm:$0xff]
  %v76 = vld [vmem:[%s11 + $0x40] sm:$0xff]
  %v77 = vld [vmem:[%s11 + $0x48] sm:$0xff]
  %v78 = vld [vmem:[%s11 + $0x50] sm:$0xff]
  %v79 = vld [vmem:[%s11 + $0x58] sm:$0xff]
  %v80 = vld [vmem:[%s11 + $0x60] sm:$0xff]
  %v81 = vld [vmem:[%s11 + $0x68] sm:$0xff]
  %v82 = vld [vmem:[%s11 + $0x70] sm:$0xff]
  %v83 = vld [vmem:[%s11 + $0x78] sm:$0xff]
  %v84 = vld [vmem:[%s12] sm:$0xff]
  %v85 = vld [vmem:[%s12 + $0x8] sm:$0xff]
  %vm86 = vcmask 130048
  %v88 = vsel %vm86, %v68, 0
  %v91 = vsel %vm86, %v69, 0
  %v94 = vsel %vm86, %v70, 0
  %v97 = vsel %vm86, %v71, 0
  %v100 = vsel %vm86, %v72, 0
  %v103 = vsel %vm86, %v73, 0
  %v106 = vsel %vm86, %v74, 0
  %v109 = vsel %vm86, %v75, 0
  %v112 = vsel %vm86, %v76, 0
  %v115 = vsel %vm86, %v77, 0
  %v118 = vsel %vm86, %v78, 0
  %v121 = vsel %vm86, %v79, 0
  %v124 = vsel %vm86, %v80, 0
  %v127 = vsel %vm86, %v81, 0
  %v130 = vsel %vm86, %v82, 0
  %v133 = vsel %vm86, %v83, 0
  %135 = vmatprep.subr.mxu0 0.0
  %136 = vmatpush1.msra.mxu0 %v50
  %137 = vmatprep.subr.mxu0 0.0
  %138 = vmatpush1.msra.mxu0 %v51
  %139 = vmatprep.subr.mxu0 0.0
  %140 = vmatpush1.msra.mxu0 0.0
  %141 = vmatprep.subr.mxu0 0.0
  %142 = vmatpush1.msra.mxu0 0.0
  %143 = vmatprep.subr.mxu0 0.0
  %144 = vmatpush1.msra.mxu0 0.0
  %145 = vmatprep.subr.mxu0 0.0
  %146 = vmatpush1.msra.mxu0 0.0
  %147 = vmatprep.subr.mxu0 0.0
  %148 = vmatpush1.msra.mxu0 0.0
  %149 = vmatprep.subr.mxu0 0.0
  %150 = vmatpush1.msra.mxu0 0.0
  %151 = vmatprep.subr.mxu0 0.0
  %152 = vmatpush1.msra.mxu0 0.0
  %153 = vmatprep.subr.mxu0 0.0
  %154 = vmatpush1.msra.mxu0 0.0
  %155 = vmatprep.subr.mxu0 0.0
  %156 = vmatpush1.msra.mxu0 0.0
  %157 = vmatprep.subr.mxu0 0.0
  %158 = vmatpush1.msra.mxu0 0.0
  %159 = vmatprep.subr.mxu0 0.0
  %160 = vmatpush1.msra.mxu0 0.0
  %161 = vmatprep.subr.mxu0 0.0
  %162 = vmatpush1.msra.mxu0 0.0
  %163 = vmatprep.subr.mxu0 0.0
  %164 = vmatpush1.msra.mxu0 0.0
  %165 = vmatprep.subr.mxu0 0.0
  %166 = vmatpush1.msra.mxu0 0.0
  %167 = vmatprep.subr.mxu0 0.0
  %168 = vmatpush1.msra.mxu0 0.0
  %169 = vmatprep.subr.mxu0 0.0
  %170 = vmatpush1.msra.mxu0 0.0
  %171 = vmatprep.subr.mxu0 0.0
  %172 = vmatpush1.msra.mxu0 0.0
  %173 = vmatprep.subr.mxu0 0.0
  %174 = vmatpush1.msra.mxu0 0.0
  %175 = vmatprep.subr.mxu0 0.0
  %176 = vmatpush1.msra.mxu0 0.0
  %177 = vmatprep.subr.mxu0 0.0
  %178 = vmatpush1.msra.mxu0 0.0
  %179 = vmatprep.subr.mxu0 0.0
  %180 = vmatpush1.msra.mxu0 0.0
  %181 = vmatprep.subr.mxu0 0.0
  %182 = vmatpush1.msra.mxu0 0.0
  %183 = vmatprep.subr.mxu0 0.0
  %184 = vmatpush1.msra.mxu0 0.0
  %185 = vmatprep.subr.mxu0 0.0
  %186 = vmatpush1.msra.mxu0 0.0
  %187 = vmatprep.subr.mxu0 0.0
  %188 = vmatpush1.msra.mxu0 0.0
  %189 = vmatprep.subr.mxu0 0.0
  %190 = vmatpush1.msra.mxu0 0.0
  %191 = vmatprep.subr.mxu0 0.0
  %192 = vmatpush1.msra.mxu0 0.0
  %193 = vmatprep.subr.mxu0 0.0
  %194 = vmatpush1.msra.mxu0 0.0
  %195 = vmatprep.subr.mxu0 0.0
  %196 = vmatpush1.msra.mxu0 0.0
  %197 = vmatprep.subr.mxu0 0.0
  %198 = vmatpush1.msra.mxu0 0.0
  %199 = vmatprep.mubr.f32.mxu0 0.0
  %200 = vmatmul.mubr.f32.gmra.mrb[0].mxu0 %v88
  %v201 = vpop.f32.mrb[0].mxu0
  %v202 = vadd.f32 0.0, %v201
  %v203 = vpop.f32.mrb[0].mxu0
  %204 = vmatprep.mubr.f32.mxu0 0.0
  %205 = vmatmul.mubr.f32.gmra.mrb[0].mxu0 %v91
  %v206 = vpop.f32.mrb[0].mxu0
  %v207 = vadd.f32 0.0, %v206
  %v208 = vpop.f32.mrb[0].mxu0
  %209 = vmatprep.mubr.f32.mxu0 0.0
  %210 = vmatmul.mubr.f32.gmra.mrb[0].mxu0 %v94
  %v211 = vpop.f32.mrb[0].mxu0
  %v212 = vadd.f32 0.0, %v211
  %v213 = vpop.f32.mrb[0].mxu0
  %214 = vmatprep.mubr.f32.mxu0 0.0
  %215 = vmatmul.mubr.f32.gmra.mrb[0].mxu0 %v97
  %v216 = vpop.f32.mrb[0].mxu0
  %v217 = vadd.f32 0.0, %v216
  %v218 = vpop.f32.mrb[0].mxu0
  %219 = vmatprep.mubr.f32.mxu0 0.0
  %220 = vmatmul.mubr.f32.gmra.mrb[0].mxu0 %v100
  %v221 = vpop.f32.mrb[0].mxu0
  %v222 = vadd.f32 0.0, %v221
  %v223 = vpop.f32.mrb[0].mxu0
  %224 = vmatprep.mubr.f32.mxu0 0.0
  %225 = vmatmul.mubr.f32.gmra.mrb[0].mxu0 %v103
  %v226 = vpop.f32.mrb[0].mxu0
  %v227 = vadd.f32 0.0, %v226
  %v228 = vpop.f32.mrb[0].mxu0
  %229 = vmatprep.mubr.f32.mxu0 0.0
  %230 = vmatmul.mubr.f32.gmra.mrb[0].mxu0 %v106
  %v231 = vpop.f32.mrb[0].mxu0
  %v232 = vadd.f32 0.0, %v231
  %v233 = vpop.f32.mrb[0].mxu0
  %234 = vmatprep.mubr.f32.mxu0 0.0
  %235 = vmatmul.mubr.f32.gmra.mrb[0].mxu0 %v109
  %v236 = vpop.f32.mrb[0].mxu0
  %v237 = vadd.f32 0.0, %v236
  %v238 = vpop.f32.mrb[0].mxu0
  %239 = vmatprep.mubr.f32.mxu0 0.0
  %240 = vmatmul.mubr.f32.gmra.mrb[0].mxu0 %v112
  %v241 = vpop.f32.mrb[0].mxu0
  %v242 = vadd.f32 0.0, %v241
  %v243 = vpop.f32.mrb[0].mxu0
  %244 = vmatprep.mubr.f32.mxu0 0.0
  %245 = vmatmul.mubr.f32.gmra.mrb[0].mxu0 %v115
  %v246 = vpop.f32.mrb[0].mxu0
  %v247 = vadd.f32 0.0, %v246
  %v248 = vpop.f32.mrb[0].mxu0
  %249 = vmatprep.mubr.f32.mxu0 0.0
  %250 = vmatmul.mubr.f32.gmra.mrb[0].mxu0 %v118
  %v251 = vpop.f32.mrb[0].mxu0
  %v252 = vadd.f32 0.0, %v251
  %v253 = vpop.f32.mrb[0].mxu0
  %254 = vmatprep.mubr.f32.mxu0 0.0
  %255 = vmatmul.mubr.f32.gmra.mrb[0].mxu0 %v121
  %v256 = vpop.f32.mrb[0].mxu0
  %v257 = vadd.f32 0.0, %v256
  %v258 = vpop.f32.mrb[0].mxu0
  %259 = vmatprep.mubr.f32.mxu0 0.0
  %260 = vmatmul.mubr.f32.gmra.mrb[0].mxu0 %v124
  %v261 = vpop.f32.mrb[0].mxu0
  %v262 = vadd.f32 0.0, %v261
  %v263 = vpop.f32.mrb[0].mxu0
  %264 = vmatprep.mubr.f32.mxu0 0.0
  %265 = vmatmul.mubr.f32.gmra.mrb[0].mxu0 %v127
  %v266 = vpop.f32.mrb[0].mxu0
  %v267 = vadd.f32 0.0, %v266
  %v268 = vpop.f32.mrb[0].mxu0
  %269 = vmatprep.mubr.f32.mxu0 0.0
  %270 = vmatmul.mubr.f32.gmra.mrb[0].mxu0 %v130
  %v271 = vpop.f32.mrb[0].mxu0
  %v272 = vadd.f32 0.0, %v271
  %v273 = vpop.f32.mrb[0].mxu0
  %274 = vmatprep.mubr.f32.mxu0 0.0
  %275 = vmatmul.mubr.f32.gmra.mrb[0].mxu0 %v133
  %v276 = vpop.f32.mrb[0].mxu0
  %v277 = vadd.f32 0.0, %v276
  %v278 = vpop.f32.mrb[0].mxu0
  %279 = vdwg.mxu0
  %vm280 = vcmp.gt.f32.partialorder %v202, 0.0
  %vm281 = vcmp.gt.f32.partialorder %v207, 0.0
  %vm282 = vcmp.gt.f32.partialorder %v212, 0.0
  %vm283 = vcmp.gt.f32.partialorder %v217, 0.0
  %vm284 = vcmp.gt.f32.partialorder %v222, 0.0
  %vm285 = vcmp.gt.f32.partialorder %v227, 0.0
  %vm286 = vcmp.gt.f32.partialorder %v232, 0.0
  %vm287 = vcmp.gt.f32.partialorder %v237, 0.0
  %vm288 = vcmp.gt.f32.partialorder %v242, 0.0
  %vm289 = vcmp.gt.f32.partialorder %v247, 0.0
  %vm290 = vcmp.gt.f32.partialorder %v252, 0.0
  %vm291 = vcmp.gt.f32.partialorder %v257, 0.0
  %vm292 = vcmp.gt.f32.partialorder %v262, 0.0
  %vm293 = vcmp.gt.f32.partialorder %v267, 0.0
  %vm294 = vcmp.gt.f32.partialorder %v272, 0.0
  %vm295 = vcmp.gt.f32.partialorder %v277, 0.0
  %vm296 = vcmp.gt.f32.partialorder %v50, 0.0
  %vm297 = vcmp.gt.f32.partialorder %v51, 0.0
  %v298 = vld [vmem:[%s0] sm:$0xff]
  %v299 = vld [vmem:[%s0 + $0x8] sm:$0xff]
  %v300 = vld [vmem:[%s2] sm:$0xff]
  %v301 = vld [vmem:[%s2 + $0x8] sm:$0xff]
  %v302 = vld [vmem:[%s2 + $0x10] sm:$0xff]
  %v303 = vld [vmem:[%s2 + $0x18] sm:$0xff]
  %v304 = vld [vmem:[%s2 + $0x20] sm:$0xff]
  %v305 = vld [vmem:[%s2 + $0x28] sm:$0xff]
  %v306 = vld [vmem:[%s2 + $0x30] sm:$0xff]
  %v307 = vld [vmem:[%s2 + $0x38] sm:$0xff]
  %vm308 = vcmask 261120
  %v310 = vsel %vm308, %v298, 0
  %v313 = vsel %vm308, %v299, 0
  %315 = vmatprep.subr.mxu0 %v301
  %316 = vmatpush1.msra.mxu0 %v300
  %317 = vmatprep.subr.mxu0 %v303
  %318 = vmatpush1.msra.mxu0 %v302
  %319 = vmatprep.subr.mxu0 %v305
  %320 = vmatpush1.msra.mxu0 %v304
  %321 = vmatprep.subr.mxu0 %v307
  %322 = vmatpush1.msra.mxu0 %v306
  %323 = vmatprep.subr.mxu0 0.0
  %324 = vmatpush1.msra.mxu0 0.0
  %325 = vmatprep.subr.mxu0 0.0
  %326 = vmatpush1.msra.mxu0 0.0
  %327 = vmatprep.subr.mxu0 0.0
  %328 = vmatpush1.msra.mxu0 0.0
  %329 = vmatprep.subr.mxu0 0.0
  %330 = vmatpush1.msra.mxu0 0.0
  %331 = vmatprep.subr.mxu0 0.0
  %332 = vmatpush1.msra.mxu0 0.0
  %333 = vmatprep.subr.mxu0 0.0
  %334 = vmatpush1.msra.mxu0 0.0
  %335 = vmatprep.subr.mxu0 0.0
  %336 = vmatpush1.msra.mxu0 0.0
  %337 = vmatprep.subr.mxu0 0.0
  %338 = vmatpush1.msra.mxu0 0.0
  %339 = vmatprep.subr.mxu0 0.0
  %340 = vmatpush1.msra.mxu0 0.0
  %341 = vmatprep.subr.mxu0 0.0
  %342 = vmatpush1.msra.mxu0 0.0
  %343 = vmatprep.subr.mxu0 0.0
  %344 = vmatpush1.msra.mxu0 0.0
  %345 = vmatprep.subr.mxu0 0.0
  %346 = vmatpush1.msra.mxu0 0.0
  %347 = vmatprep.subr.mxu0 0.0
  %348 = vmatpush1.msra.mxu0 0.0
  %349 = vmatprep.subr.mxu0 0.0
  %350 = vmatpush1.msra.mxu0 0.0
  %351 = vmatprep.subr.mxu0 0.0
  %352 = vmatpush1.msra.mxu0 0.0
  %353 = vmatprep.subr.mxu0 0.0
  %354 = vmatpush1.msra.mxu0 0.0
  %355 = vmatprep.subr.mxu0 0.0
  %356 = vmatpush1.msra.mxu0 0.0
  %357 = vmatprep.subr.mxu0 0.0
  %358 = vmatpush1.msra.mxu0 0.0
  %359 = vmatprep.subr.mxu0 0.0
  %360 = vmatpush1.msra.mxu0 0.0
  %361 = vmatprep.subr.mxu0 0.0
  %362 = vmatpush1.msra.mxu0 0.0
  %363 = vmatprep.subr.mxu0 0.0
  %364 = vmatpush1.msra.mxu0 0.0
  %365 = vmatprep.subr.mxu0 0.0
  %366 = vmatpush1.msra.mxu0 0.0
  %367 = vmatprep.subr.mxu0 0.0
  %368 = vmatpush1.msra.mxu0 0.0
  %369 = vmatprep.subr.mxu0 0.0
  %370 = vmatpush1.msra.mxu0 0.0
  %371 = vmatprep.subr.mxu0 0.0
  %372 = vmatpush1.msra.mxu0 0.0
  %373 = vmatprep.subr.mxu0 0.0
  %374 = vmatpush1.msra.mxu0 0.0
  %375 = vmatprep.subr.mxu0 0.0
  %376 = vmatpush1.msra.mxu0 0.0
  %377 = vmatprep.subr.mxu0 0.0
  %378 = vmatpush1.msra.mxu0 0.0
  %379 = vmatprep.mubr.f32.mxu0 0.0
  %380 = vmatmul.mubr.f32.gmra.mrb[0].mxu0 %v310
  %v381 = vpop.f32.mrb[0].mxu0
  %v382 = vadd.f32 0.0, %v381
  %v383 = vpop.f32.mrb[0].mxu0
  %v384 = vadd.f32 0.0, %v383
  %385 = vmatprep.mubr.f32.mxu0 0.0
  %386 = vmatmul.mubr.f32.gmra.mrb[0].mxu0 %v313
  %v387 = vpop.f32.mrb[0].mxu0
  %v388 = vadd.f32 0.0, %v387
  %v389 = vpop.f32.mrb[0].mxu0
  %v390 = vadd.f32 0.0, %v389
  %391 = vdwg.mxu0
  %vm392 = vcmask 64512
  %v394 = vsel %vm392, %v52, 0
  %v397 = vsel %vm392, %v53, 0
  %v400 = vsel %vm392, %v54, 0
  %v403 = vsel %vm392, %v55, 0
  %v406 = vsel %vm392, %v56, 0
  %v409 = vsel %vm392, %v57, 0
  %v412 = vsel %vm392, %v58, 0
  %v415 = vsel %vm392, %v59, 0
  %v418 = vsel %vm392, %v60, 0
  %v421 = vsel %vm392, %v61, 0
  %v424 = vsel %vm392, %v62, 0
  %v427 = vsel %vm392, %v63, 0
  %v430 = vsel %vm392, %v64, 0
  %v433 = vsel %vm392, %v65, 0
  %v436 = vsel %vm392, %v66, 0
  %v439 = vsel %vm392, %v67, 0
  %v442 = vsel %vm392, %v384, 0
  %v445 = vsel %vm392, %v390, 0
  %447 = vmatprep.subr.mxu0 0.0
  %448 = vmatpush1.xpose.msra.mxu0 %v442
  %449 = vmatprep.subr.mxu0 0.0
  %450 = vmatpush1.xpose.msra.mxu0 %v445
  %451 = vmatprep.subr.mxu0 0.0
  %452 = vmatpush1.xpose.msra.mxu0 0.0
  %453 = vmatprep.subr.mxu0 0.0
  %454 = vmatpush1.xpose.msra.mxu0 0.0
  %455 = vmatprep.subr.mxu0 0.0
  %456 = vmatpush1.xpose.msra.mxu0 0.0
  %457 = vmatprep.subr.mxu0 0.0
  %458 = vmatpush1.xpose.msra.mxu0 0.0
  %459 = vmatprep.subr.mxu0 0.0
  %460 = vmatpush1.xpose.msra.mxu0 0.0
  %461 = vmatprep.subr.mxu0 0.0
  %462 = vmatpush1.xpose.msra.mxu0 0.0
  %463 = vmatprep.subr.mxu0 0.0
  %464 = vmatpush1.xpose.msra.mxu0 0.0
  %465 = vmatprep.subr.mxu0 0.0
  %466 = vmatpush1.xpose.msra.mxu0 0.0
  %467 = vmatprep.subr.mxu0 0.0
  %468 = vmatpush1.xpose.msra.mxu0 0.0
  %469 = vmatprep.subr.mxu0 0.0
  %470 = vmatpush1.xpose.msra.mxu0 0.0
  %471 = vmatprep.subr.mxu0 0.0
  %472 = vmatpush1.xpose.msra.mxu0 0.0
  %473 = vmatprep.subr.mxu0 0.0
  %474 = vmatpush1.xpose.msra.mxu0 0.0
  %475 = vmatprep.subr.mxu0 0.0
  %476 = vmatpush1.xpose.msra.mxu0 0.0
  %477 = vmatprep.subr.mxu0 0.0
  %478 = vmatpush1.xpose.msra.mxu0 0.0
  %479 = vmatprep.subr.mxu0 0.0
  %480 = vmatpush1.xpose.msra.mxu0 0.0
  %481 = vmatprep.subr.mxu0 0.0
  %482 = vmatpush1.xpose.msra.mxu0 0.0
  %483 = vmatprep.subr.mxu0 0.0
  %484 = vmatpush1.xpose.msra.mxu0 0.0
  %485 = vmatprep.subr.mxu0 0.0
  %486 = vmatpush1.xpose.msra.mxu0 0.0
  %487 = vmatprep.subr.mxu0 0.0
  %488 = vmatpush1.xpose.msra.mxu0 0.0
  %489 = vmatprep.subr.mxu0 0.0
  %490 = vmatpush1.xpose.msra.mxu0 0.0
  %491 = vmatprep.subr.mxu0 0.0
  %492 = vmatpush1.xpose.msra.mxu0 0.0
  %493 = vmatprep.subr.mxu0 0.0
  %494 = vmatpush1.xpose.msra.mxu0 0.0
  %495 = vmatprep.subr.mxu0 0.0
  %496 = vmatpush1.xpose.msra.mxu0 0.0
  %497 = vmatprep.subr.mxu0 0.0
  %498 = vmatpush1.xpose.msra.mxu0 0.0
  %499 = vmatprep.subr.mxu0 0.0
  %500 = vmatpush1.xpose.msra.mxu0 0.0
  %501 = vmatprep.subr.mxu0 0.0
  %502 = vmatpush1.xpose.msra.mxu0 0.0
  %503 = vmatprep.subr.mxu0 0.0
  %504 = vmatpush1.xpose.msra.mxu0 0.0
  %505 = vmatprep.subr.mxu0 0.0
  %506 = vmatpush1.xpose.msra.mxu0 0.0
  %507 = vmatprep.subr.mxu0 0.0
  %508 = vmatpush1.xpose.msra.mxu0 0.0
  %509 = vmatprep.subr.mxu0 0.0
  %510 = vmatpush1.xpose.msra.mxu0 0.0
  %511 = vmatprep.mubr.f32.mxu0 0.0
  %512 = vmatmul.mubr.f32.gmra.mrb[0].mxu0 %v394
  %v513 = vpop.f32.mrb[0].mxu0
  %v514 = vadd.f32 0.0, %v513
  %v515 = vpop.f32.mrb[0].mxu0
  %516 = vmatprep.mubr.f32.mxu0 0.0
  %517 = vmatmul.mubr.f32.gmra.mrb[0].mxu0 %v397
  %v518 = vpop.f32.mrb[0].mxu0
  %v519 = vadd.f32 0.0, %v518
  %v520 = vpop.f32.mrb[0].mxu0
  %521 = vmatprep.mubr.f32.mxu0 0.0
  %522 = vmatmul.mubr.f32.gmra.mrb[0].mxu0 %v400
  %v523 = vpop.f32.mrb[0].mxu0
  %v524 = vadd.f32 0.0, %v523
  %v525 = vpop.f32.mrb[0].mxu0
  %526 = vmatprep.mubr.f32.mxu0 0.0
  %527 = vmatmul.mubr.f32.gmra.mrb[0].mxu0 %v403
  %v528 = vpop.f32.mrb[0].mxu0
  %v529 = vadd.f32 0.0, %v528
  %v530 = vpop.f32.mrb[0].mxu0
  %531 = vmatprep.mubr.f32.mxu0 0.0
  %532 = vmatmul.mubr.f32.gmra.mrb[0].mxu0 %v406
  %v533 = vpop.f32.mrb[0].mxu0
  %v534 = vadd.f32 0.0, %v533
  %v535 = vpop.f32.mrb[0].mxu0
  %536 = vmatprep.mubr.f32.mxu0 0.0
  %537 = vmatmul.mubr.f32.gmra.mrb[0].mxu0 %v409
  %v538 = vpop.f32.mrb[0].mxu0
  %v539 = vadd.f32 0.0, %v538
  %v540 = vpop.f32.mrb[0].mxu0
  %541 = vmatprep.mubr.f32.mxu0 0.0
  %542 = vmatmul.mubr.f32.gmra.mrb[0].mxu0 %v412
  %v543 = vpop.f32.mrb[0].mxu0
  %v544 = vadd.f32 0.0, %v543
  %v545 = vpop.f32.mrb[0].mxu0
  %546 = vmatprep.mubr.f32.mxu0 0.0
  %547 = vmatmul.mubr.f32.gmra.mrb[0].mxu0 %v415
  %v548 = vpop.f32.mrb[0].mxu0
  %v549 = vadd.f32 0.0, %v548
  %v550 = vpop.f32.mrb[0].mxu0
  %551 = vmatprep.mubr.f32.mxu0 0.0
  %552 = vmatmul.mubr.f32.gmra.mrb[0].mxu0 %v418
  %v553 = vpop.f32.mrb[0].mxu0
  %v554 = vadd.f32 0.0, %v553
  %v555 = vpop.f32.mrb[0].mxu0
  %556 = vmatprep.mubr.f32.mxu0 0.0
  %557 = vmatmul.mubr.f32.gmra.mrb[0].mxu0 %v421
  %v558 = vpop.f32.mrb[0].mxu0
  %v559 = vadd.f32 0.0, %v558
  %v560 = vpop.f32.mrb[0].mxu0
  %561 = vmatprep.mubr.f32.mxu0 0.0
  %562 = vmatmul.mubr.f32.gmra.mrb[0].mxu0 %v424
  %v563 = vpop.f32.mrb[0].mxu0
  %v564 = vadd.f32 0.0, %v563
  %v565 = vpop.f32.mrb[0].mxu0
  %566 = vmatprep.mubr.f32.mxu0 0.0
  %567 = vmatmul.mubr.f32.gmra.mrb[0].mxu0 %v427
  %v568 = vpop.f32.mrb[0].mxu0
  %v569 = vadd.f32 0.0, %v568
  %v570 = vpop.f32.mrb[0].mxu0
  %571 = vmatprep.mubr.f32.mxu0 0.0
  %572 = vmatmul.mubr.f32.gmra.mrb[0].mxu0 %v430
  %v573 = vpop.f32.mrb[0].mxu0
  %v574 = vadd.f32 0.0, %v573
  %v575 = vpop.f32.mrb[0].mxu0
  %576 = vmatprep.mubr.f32.mxu0 0.0
  %577 = vmatmul.mubr.f32.gmra.mrb[0].mxu0 %v433
  %v578 = vpop.f32.mrb[0].mxu0
  %v579 = vadd.f32 0.0, %v578
  %v580 = vpop.f32.mrb[0].mxu0
  %581 = vmatprep.mubr.f32.mxu0 0.0
  %582 = vmatmul.mubr.f32.gmra.mrb[0].mxu0 %v436
  %v583 = vpop.f32.mrb[0].mxu0
  %v584 = vadd.f32 0.0, %v583
  %v585 = vpop.f32.mrb[0].mxu0
  %586 = vmatprep.mubr.f32.mxu0 0.0
  %587 = vmatmul.mubr.f32.gmra.mrb[0].mxu0 %v439
  %v588 = vpop.f32.mrb[0].mxu0
  %v589 = vadd.f32 0.0, %v588
  %v590 = vpop.f32.mrb[0].mxu0
  %591 = vdwg.mxu0
  %592 = vrot.lane.b32.xlu0 %v384, 120
  %v593 = vpop.permute.xlu0 %592
  %594 = vrot.lane.b32.xlu0 %v390, 120
  %v595 = vpop.permute.xlu0 %594
  %v596 = vsel %vm392, %v593, 0
  %v598 = vsel %vm392, %v595, 0
  %600 = vmatprep.subr.mxu0 0.0
  %601 = vmatpush1.xpose.msra.mxu0 %v596
  %602 = vmatprep.subr.mxu0 0.0
  %603 = vmatpush1.xpose.msra.mxu0 %v598
  %604 = vmatprep.subr.mxu0 0.0
  %605 = vmatpush1.xpose.msra.mxu0 0.0
  %606 = vmatprep.subr.mxu0 0.0
  %607 = vmatpush1.xpose.msra.mxu0 0.0
  %608 = vmatprep.subr.mxu0 0.0
  %609 = vmatpush1.xpose.msra.mxu0 0.0
  %610 = vmatprep.subr.mxu0 0.0
  %611 = vmatpush1.xpose.msra.mxu0 0.0
  %612 = vmatprep.subr.mxu0 0.0
  %613 = vmatpush1.xpose.msra.mxu0 0.0
  %614 = vmatprep.subr.mxu0 0.0
  %615 = vmatpush1.xpose.msra.mxu0 0.0
  %616 = vmatprep.subr.mxu0 0.0
  %617 = vmatpush1.xpose.msra.mxu0 0.0
  %618 = vmatprep.subr.mxu0 0.0
  %619 = vmatpush1.xpose.msra.mxu0 0.0
  %620 = vmatprep.subr.mxu0 0.0
  %621 = vmatpush1.xpose.msra.mxu0 0.0
  %622 = vmatprep.subr.mxu0 0.0
  %623 = vmatpush1.xpose.msra.mxu0 0.0
  %624 = vmatprep.subr.mxu0 0.0
  %625 = vmatpush1.xpose.msra.mxu0 0.0
  %626 = vmatprep.subr.mxu0 0.0
  %627 = vmatpush1.xpose.msra.mxu0 0.0
  %628 = vmatprep.subr.mxu0 0.0
  %629 = vmatpush1.xpose.msra.mxu0 0.0
  %630 = vmatprep.subr.mxu0 0.0
  %631 = vmatpush1.xpose.msra.mxu0 0.0
  %632 = vmatprep.subr.mxu0 0.0
  %633 = vmatpush1.xpose.msra.mxu0 0.0
  %634 = vmatprep.subr.mxu0 0.0
  %635 = vmatpush1.xpose.msra.mxu0 0.0
  %636 = vmatprep.subr.mxu0 0.0
  %637 = vmatpush1.xpose.msra.mxu0 0.0
  %638 = vmatprep.subr.mxu0 0.0
  %639 = vmatpush1.xpose.msra.mxu0 0.0
  %640 = vmatprep.subr.mxu0 0.0
  %641 = vmatpush1.xpose.msra.mxu0 0.0
  %642 = vmatprep.subr.mxu0 0.0
  %643 = vmatpush1.xpose.msra.mxu0 0.0
  %644 = vmatprep.subr.mxu0 0.0
  %645 = vmatpush1.xpose.msra.mxu0 0.0
  %646 = vmatprep.subr.mxu0 0.0
  %647 = vmatpush1.xpose.msra.mxu0 0.0
  %648 = vmatprep.subr.mxu0 0.0
  %649 = vmatpush1.xpose.msra.mxu0 0.0
  %650 = vmatprep.subr.mxu0 0.0
  %651 = vmatpush1.xpose.msra.mxu0 0.0
  %652 = vmatprep.subr.mxu0 0.0
  %653 = vmatpush1.xpose.msra.mxu0 0.0
  %654 = vmatprep.subr.mxu0 0.0
  %655 = vmatpush1.xpose.msra.mxu0 0.0
  %656 = vmatprep.subr.mxu0 0.0
  %657 = vmatpush1.xpose.msra.mxu0 0.0
  %658 = vmatprep.subr.mxu0 0.0
  %659 = vmatpush1.xpose.msra.mxu0 0.0
  %660 = vmatprep.subr.mxu0 0.0
  %661 = vmatpush1.xpose.msra.mxu0 0.0
  %662 = vmatprep.subr.mxu0 0.0
  %663 = vmatpush1.xpose.msra.mxu0 0.0
  %664 = vmatprep.mubr.f32.mxu0 0.0
  %665 = vmatmul.mubr.f32.gmra.mrb[0].mxu0 %v394
  %v666 = vpop.f32.mrb[0].mxu0
  %v667 = vadd.f32 0.0, %v666
  %v668 = vpop.f32.mrb[0].mxu0
  %669 = vmatprep.mubr.f32.mxu0 0.0
  %670 = vmatmul.mubr.f32.gmra.mrb[0].mxu0 %v397
  %v671 = vpop.f32.mrb[0].mxu0
  %v672 = vadd.f32 0.0, %v671
  %v673 = vpop.f32.mrb[0].mxu0
  %674 = vmatprep.mubr.f32.mxu0 0.0
  %675 = vmatmul.mubr.f32.gmra.mrb[0].mxu0 %v400
  %v676 = vpop.f32.mrb[0].mxu0
  %v677 = vadd.f32 0.0, %v676
  %v678 = vpop.f32.mrb[0].mxu0
  %679 = vmatprep.mubr.f32.mxu0 0.0
  %680 = vmatmul.mubr.f32.gmra.mrb[0].mxu0 %v403
  %v681 = vpop.f32.mrb[0].mxu0
  %v682 = vadd.f32 0.0, %v681
  %v683 = vpop.f32.mrb[0].mxu0
  %684 = vmatprep.mubr.f32.mxu0 0.0
  %685 = vmatmul.mubr.f32.gmra.mrb[0].mxu0 %v406
  %v686 = vpop.f32.mrb[0].mxu0
  %v687 = vadd.f32 0.0, %v686
  %v688 = vpop.f32.mrb[0].mxu0
  %689 = vmatprep.mubr.f32.mxu0 0.0
  %690 = vmatmul.mubr.f32.gmra.mrb[0].mxu0 %v409
  %v691 = vpop.f32.mrb[0].mxu0
  %v692 = vadd.f32 0.0, %v691
  %v693 = vpop.f32.mrb[0].mxu0
  %694 = vmatprep.mubr.f32.mxu0 0.0
  %695 = vmatmul.mubr.f32.gmra.mrb[0].mxu0 %v412
  %v696 = vpop.f32.mrb[0].mxu0
  %v697 = vadd.f32 0.0, %v696
  %v698 = vpop.f32.mrb[0].mxu0
  %699 = vmatprep.mubr.f32.mxu0 0.0
  %700 = vmatmul.mubr.f32.gmra.mrb[0].mxu0 %v415
  %v701 = vpop.f32.mrb[0].mxu0
  %v702 = vadd.f32 0.0, %v701
  %v703 = vpop.f32.mrb[0].mxu0
  %704 = vmatprep.mubr.f32.mxu0 0.0
  %705 = vmatmul.mubr.f32.gmra.mrb[0].mxu0 %v418
  %v706 = vpop.f32.mrb[0].mxu0
  %v707 = vadd.f32 0.0, %v706
  %v708 = vpop.f32.mrb[0].mxu0
  %709 = vmatprep.mubr.f32.mxu0 0.0
  %710 = vmatmul.mubr.f32.gmra.mrb[0].mxu0 %v421
  %v711 = vpop.f32.mrb[0].mxu0
  %v712 = vadd.f32 0.0, %v711
  %v713 = vpop.f32.mrb[0].mxu0
  %714 = vmatprep.mubr.f32.mxu0 0.0
  %715 = vmatmul.mubr.f32.gmra.mrb[0].mxu0 %v424
  %v716 = vpop.f32.mrb[0].mxu0
  %v717 = vadd.f32 0.0, %v716
  %v718 = vpop.f32.mrb[0].mxu0
  %719 = vmatprep.mubr.f32.mxu0 0.0
  %720 = vmatmul.mubr.f32.gmra.mrb[0].mxu0 %v427
  %v721 = vpop.f32.mrb[0].mxu0
  %v722 = vadd.f32 0.0, %v721
  %v723 = vpop.f32.mrb[0].mxu0
  %724 = vmatprep.mubr.f32.mxu0 0.0
  %725 = vmatmul.mubr.f32.gmra.mrb[0].mxu0 %v430
  %v726 = vpop.f32.mrb[0].mxu0
  %v727 = vadd.f32 0.0, %v726
  %v728 = vpop.f32.mrb[0].mxu0
  %729 = vmatprep.mubr.f32.mxu0 0.0
  %730 = vmatmul.mubr.f32.gmra.mrb[0].mxu0 %v433
  %v731 = vpop.f32.mrb[0].mxu0
  %v732 = vadd.f32 0.0, %v731
  %v733 = vpop.f32.mrb[0].mxu0
  %734 = vmatprep.mubr.f32.mxu0 0.0
  %735 = vmatmul.mubr.f32.gmra.mrb[0].mxu0 %v436
  %v736 = vpop.f32.mrb[0].mxu0
  %v737 = vadd.f32 0.0, %v736
  %v738 = vpop.f32.mrb[0].mxu0
  %739 = vmatprep.mubr.f32.mxu0 0.0
  %740 = vmatmul.mubr.f32.gmra.mrb[0].mxu0 %v439
  %v741 = vpop.f32.mrb[0].mxu0
  %v742 = vadd.f32 0.0, %v741
  %v743 = vpop.f32.mrb[0].mxu0
  %744 = vdwg.mxu0
  %v745 = vmul.f32 %v667, %v68
  %v746 = vmul.f32 %v672, %v69
  %v747 = vmul.f32 %v677, %v70
  %v748 = vmul.f32 %v682, %v71
  %v749 = vmul.f32 %v687, %v72
  %v750 = vmul.f32 %v692, %v73
  %v751 = vmul.f32 %v697, %v74
  %v752 = vmul.f32 %v702, %v75
  %v753 = vmul.f32 %v707, %v76
  %v754 = vmul.f32 %v712, %v77
  %v755 = vmul.f32 %v717, %v78
  %v756 = vmul.f32 %v722, %v79
  %v757 = vmul.f32 %v727, %v80
  %v758 = vmul.f32 %v732, %v81
  %v759 = vmul.f32 %v737, %v82
  %v760 = vmul.f32 %v742, %v83
  %v761 = vsel %vm86, %v745, 0.0
  %762 = vadd.xlane.f32.xlu0 %v761
  %v763 = vpop.xlane.xlu0 %762
  %v764 = vsel %vm86, %v746, 0.0
  %765 = vadd.xlane.f32.xlu0 %v764
  %v766 = vpop.xlane.xlu0 %765
  %v767 = vsel %vm86, %v747, 0.0
  %768 = vadd.xlane.f32.xlu0 %v767
  %v769 = vpop.xlane.xlu0 %768
  %v770 = vsel %vm86, %v748, 0.0
  %771 = vadd.xlane.f32.xlu0 %v770
  %v772 = vpop.xlane.xlu0 %771
  %v773 = vsel %vm86, %v749, 0.0
  %774 = vadd.xlane.f32.xlu0 %v773
  %v775 = vpop.xlane.xlu0 %774
  %v776 = vsel %vm86, %v750, 0.0
  %777 = vadd.xlane.f32.xlu0 %v776
  %v778 = vpop.xlane.xlu0 %777
  %v779 = vsel %vm86, %v751, 0.0
  %780 = vadd.xlane.f32.xlu0 %v779
  %v781 = vpop.xlane.xlu0 %780
  %v782 = vsel %vm86, %v752, 0.0
  %783 = vadd.xlane.f32.xlu0 %v782
  %v784 = vpop.xlane.xlu0 %783
  %v785 = vsel %vm86, %v753, 0.0
  %786 = vadd.xlane.f32.xlu0 %v785
  %v787 = vpop.xlane.xlu0 %786
  %v788 = vsel %vm86, %v754, 0.0
  %789 = vadd.xlane.f32.xlu0 %v788
  %v790 = vpop.xlane.xlu0 %789
  %v791 = vsel %vm86, %v755, 0.0
  %792 = vadd.xlane.f32.xlu0 %v791
  %v793 = vpop.xlane.xlu0 %792
  %v794 = vsel %vm86, %v756, 0.0
  %795 = vadd.xlane.f32.xlu0 %v794
  %v796 = vpop.xlane.xlu0 %795
  %v797 = vsel %vm86, %v757, 0.0
  %798 = vadd.xlane.f32.xlu0 %v797
  %v799 = vpop.xlane.xlu0 %798
  %v800 = vsel %vm86, %v758, 0.0
  %801 = vadd.xlane.f32.xlu0 %v800
  %v802 = vpop.xlane.xlu0 %801
  %v803 = vsel %vm86, %v759, 0.0
  %804 = vadd.xlane.f32.xlu0 %v803
  %v805 = vpop.xlane.xlu0 %804
  %v806 = vsel %vm86, %v760, 0.0
  %807 = vadd.xlane.f32.xlu0 %v806
  %v808 = vpop.xlane.xlu0 %807
  %v809 = vadd.f32 %v763, %v514
  %v810 = vadd.f32 %v766, %v519
  %v811 = vadd.f32 %v769, %v524
  %v812 = vadd.f32 %v772, %v529
  %v813 = vadd.f32 %v775, %v534
  %v814 = vadd.f32 %v778, %v539
  %v815 = vadd.f32 %v781, %v544
  %v816 = vadd.f32 %v784, %v549
  %v817 = vadd.f32 %v787, %v554
  %v818 = vadd.f32 %v790, %v559
  %v819 = vadd.f32 %v793, %v564
  %v820 = vadd.f32 %v796, %v569
  %v821 = vadd.f32 %v799, %v574
  %v822 = vadd.f32 %v802, %v579
  %v823 = vadd.f32 %v805, %v584
  %v824 = vadd.f32 %v808, %v589
  %vm825 = vcmp.gt.f32.partialorder %v809, 0.0
  %vm826 = vcmp.gt.f32.partialorder %v810, 0.0
  %vm827 = vcmp.gt.f32.partialorder %v811, 0.0
  %vm828 = vcmp.gt.f32.partialorder %v812, 0.0
  %vm829 = vcmp.gt.f32.partialorder %v813, 0.0
  %vm830 = vcmp.gt.f32.partialorder %v814, 0.0
  %vm831 = vcmp.gt.f32.partialorder %v815, 0.0
  %vm832 = vcmp.gt.f32.partialorder %v816, 0.0
  %vm833 = vcmp.gt.f32.partialorder %v817, 0.0
  %vm834 = vcmp.gt.f32.partialorder %v818, 0.0
  %vm835 = vcmp.gt.f32.partialorder %v819, 0.0
  %vm836 = vcmp.gt.f32.partialorder %v820, 0.0
  %vm837 = vcmp.gt.f32.partialorder %v821, 0.0
  %vm838 = vcmp.gt.f32.partialorder %v822, 0.0
  %vm839 = vcmp.gt.f32.partialorder %v823, 0.0
  %vm840 = vcmp.gt.f32.partialorder %v824, 0.0
  %v841 = vmul.f32 %v809, 0.2
  %v842 = vmul.f32 %v810, 0.2
  %v843 = vmul.f32 %v811, 0.2
  %v844 = vmul.f32 %v812, 0.2
  %v845 = vmul.f32 %v813, 0.2
  %v846 = vmul.f32 %v814, 0.2
  %v847 = vmul.f32 %v815, 0.2
  %v848 = vmul.f32 %v816, 0.2
  %v849 = vmul.f32 %v817, 0.2
  %v850 = vmul.f32 %v818, 0.2
  %v851 = vmul.f32 %v819, 0.2
  %v852 = vmul.f32 %v820, 0.2
  %v853 = vmul.f32 %v821, 0.2
  %v854 = vmul.f32 %v822, 0.2
  %v855 = vmul.f32 %v823, 0.2
  %v856 = vmul.f32 %v824, 0.2
  %v857 = vsel %vm825, %v809, %v841
  %v858 = vsel %vm826, %v810, %v842
  %v859 = vsel %vm827, %v811, %v843
  %v860 = vsel %vm828, %v812, %v844
  %v861 = vsel %vm829, %v813, %v845
  %v862 = vsel %vm830, %v814, %v846
  %v863 = vsel %vm831, %v815, %v847
  %v864 = vsel %vm832, %v816, %v848
  %v865 = vsel %vm833, %v817, %v849
  %v866 = vsel %vm834, %v818, %v850
  %v867 = vsel %vm835, %v819, %v851
  %v868 = vsel %vm836, %v820, %v852
  %v869 = vsel %vm837, %v821, %v853
  %v870 = vsel %vm838, %v822, %v854
  %v871 = vsel %vm839, %v823, %v855
  %v872 = vsel %vm840, %v824, %v856
  %v873 = vsel %vm280, %v857, -1e+30
  %v874 = vsel %vm281, %v858, -1e+30
  %v875 = vsel %vm282, %v859, -1e+30
  %v876 = vsel %vm283, %v860, -1e+30
  %v877 = vsel %vm284, %v861, -1e+30
  %v878 = vsel %vm285, %v862, -1e+30
  %v879 = vsel %vm286, %v863, -1e+30
  %v880 = vsel %vm287, %v864, -1e+30
  %v881 = vsel %vm288, %v865, -1e+30
  %v882 = vsel %vm289, %v866, -1e+30
  %v883 = vsel %vm290, %v867, -1e+30
  %v884 = vsel %vm291, %v868, -1e+30
  %v885 = vsel %vm292, %v869, -1e+30
  %v886 = vsel %vm293, %v870, -1e+30
  %v887 = vsel %vm294, %v871, -1e+30
  %v888 = vsel %vm295, %v872, -1e+30
  %v889 = vsel %vm86, %v873, -inf
  %890 = vmax.xlane.f32.xlu0 %v889
  %v891 = vpop.xlane.xlu0 %890
  %v892 = vsel %vm86, %v874, -inf
  %893 = vmax.xlane.f32.xlu0 %v892
  %v894 = vpop.xlane.xlu0 %893
  %v895 = vsel %vm86, %v875, -inf
  %896 = vmax.xlane.f32.xlu0 %v895
  %v897 = vpop.xlane.xlu0 %896
  %v898 = vsel %vm86, %v876, -inf
  %899 = vmax.xlane.f32.xlu0 %v898
  %v900 = vpop.xlane.xlu0 %899
  %v901 = vsel %vm86, %v877, -inf
  %902 = vmax.xlane.f32.xlu0 %v901
  %v903 = vpop.xlane.xlu0 %902
  %v904 = vsel %vm86, %v878, -inf
  %905 = vmax.xlane.f32.xlu0 %v904
  %v906 = vpop.xlane.xlu0 %905
  %v907 = vsel %vm86, %v879, -inf
  %908 = vmax.xlane.f32.xlu0 %v907
  %v909 = vpop.xlane.xlu0 %908
  %v910 = vsel %vm86, %v880, -inf
  %911 = vmax.xlane.f32.xlu0 %v910
  %v912 = vpop.xlane.xlu0 %911
  %v913 = vsel %vm86, %v881, -inf
  %914 = vmax.xlane.f32.xlu0 %v913
  %v915 = vpop.xlane.xlu0 %914
  %v916 = vsel %vm86, %v882, -inf
  %917 = vmax.xlane.f32.xlu0 %v916
  %v918 = vpop.xlane.xlu0 %917
  %v919 = vsel %vm86, %v883, -inf
  %920 = vmax.xlane.f32.xlu0 %v919
  %v921 = vpop.xlane.xlu0 %920
  %v922 = vsel %vm86, %v884, -inf
  %923 = vmax.xlane.f32.xlu0 %v922
  %v924 = vpop.xlane.xlu0 %923
  %v925 = vsel %vm86, %v885, -inf
  %926 = vmax.xlane.f32.xlu0 %v925
  %v927 = vpop.xlane.xlu0 %926
  %v928 = vsel %vm86, %v886, -inf
  %929 = vmax.xlane.f32.xlu0 %v928
  %v930 = vpop.xlane.xlu0 %929
  %v931 = vsel %vm86, %v887, -inf
  %932 = vmax.xlane.f32.xlu0 %v931
  %v933 = vpop.xlane.xlu0 %932
  %v934 = vsel %vm86, %v888, -inf
  %935 = vmax.xlane.f32.xlu0 %v934
  %v936 = vpop.xlane.xlu0 %935
  %v937 = vsub.f32 %v873, %v891
  %v938 = vsub.f32 %v874, %v894
  %v939 = vsub.f32 %v875, %v897
  %v940 = vsub.f32 %v876, %v900
  %v941 = vsub.f32 %v877, %v903
  %v942 = vsub.f32 %v878, %v906
  %v943 = vsub.f32 %v879, %v909
  %v944 = vsub.f32 %v880, %v912
  %v945 = vsub.f32 %v881, %v915
  %v946 = vsub.f32 %v882, %v918
  %v947 = vsub.f32 %v883, %v921
  %v948 = vsub.f32 %v884, %v924
  %v949 = vsub.f32 %v885, %v927
  %v950 = vsub.f32 %v886, %v930
  %v951 = vsub.f32 %v887, %v933
  %v952 = vsub.f32 %v888, %v936
  %v953 = vmul.f32 %v937, 1.442695
  %v954 = vpow.pop %v953
  %v955 = vmul.f32 %v938, 1.442695
  %v956 = vpow.pop %v955
  %v957 = vmul.f32 %v939, 1.442695
  %v958 = vpow.pop %v957
  %v959 = vmul.f32 %v940, 1.442695
  %v960 = vpow.pop %v959
  %v961 = vmul.f32 %v941, 1.442695
  %v962 = vpow.pop %v961
  %v963 = vmul.f32 %v942, 1.442695
  %v964 = vpow.pop %v963
  %v965 = vmul.f32 %v943, 1.442695
  %v966 = vpow.pop %v965
  %v967 = vmul.f32 %v944, 1.442695
  %v968 = vpow.pop %v967
  %v969 = vmul.f32 %v945, 1.442695
  %v970 = vpow.pop %v969
  %v971 = vmul.f32 %v946, 1.442695
  %v972 = vpow.pop %v971
  %v973 = vmul.f32 %v947, 1.442695
  %v974 = vpow.pop %v973
  %v975 = vmul.f32 %v948, 1.442695
  %v976 = vpow.pop %v975
  %v977 = vmul.f32 %v949, 1.442695
  %v978 = vpow.pop %v977
  %v979 = vmul.f32 %v950, 1.442695
  %v980 = vpow.pop %v979
  %v981 = vmul.f32 %v951, 1.442695
  %v982 = vpow.pop %v981
  %v983 = vmul.f32 %v952, 1.442695
  %v984 = vpow.pop %v983
  %v985 = vsel %vm280, %v954, 0.0
  %v986 = vsel %vm281, %v956, 0.0
  %v987 = vsel %vm282, %v958, 0.0
  %v988 = vsel %vm283, %v960, 0.0
  %v989 = vsel %vm284, %v962, 0.0
  %v990 = vsel %vm285, %v964, 0.0
  %v991 = vsel %vm286, %v966, 0.0
  %v992 = vsel %vm287, %v968, 0.0
  %v993 = vsel %vm288, %v970, 0.0
  %v994 = vsel %vm289, %v972, 0.0
  %v995 = vsel %vm290, %v974, 0.0
  %v996 = vsel %vm291, %v976, 0.0
  %v997 = vsel %vm292, %v978, 0.0
  %v998 = vsel %vm293, %v980, 0.0
  %v999 = vsel %vm294, %v982, 0.0
  %v1000 = vsel %vm295, %v984, 0.0
  %v1001 = vsel %vm86, %v985, 0.0
  %1002 = vadd.xlane.f32.xlu0 %v1001
  %v1003 = vpop.xlane.xlu0 %1002
  %v1004 = vsel %vm86, %v986, 0.0
  %1005 = vadd.xlane.f32.xlu0 %v1004
  %v1006 = vpop.xlane.xlu0 %1005
  %v1007 = vsel %vm86, %v987, 0.0
  %1008 = vadd.xlane.f32.xlu0 %v1007
  %v1009 = vpop.xlane.xlu0 %1008
  %v1010 = vsel %vm86, %v988, 0.0
  %1011 = vadd.xlane.f32.xlu0 %v1010
  %v1012 = vpop.xlane.xlu0 %1011
  %v1013 = vsel %vm86, %v989, 0.0
  %1014 = vadd.xlane.f32.xlu0 %v1013
  %v1015 = vpop.xlane.xlu0 %1014
  %v1016 = vsel %vm86, %v990, 0.0
  %1017 = vadd.xlane.f32.xlu0 %v1016
  %v1018 = vpop.xlane.xlu0 %1017
  %v1019 = vsel %vm86, %v991, 0.0
  %1020 = vadd.xlane.f32.xlu0 %v1019
  %v1021 = vpop.xlane.xlu0 %1020
  %v1022 = vsel %vm86, %v992, 0.0
  %1023 = vadd.xlane.f32.xlu0 %v1022
  %v1024 = vpop.xlane.xlu0 %1023
  %v1025 = vsel %vm86, %v993, 0.0
  %1026 = vadd.xlane.f32.xlu0 %v1025
  %v1027 = vpop.xlane.xlu0 %1026
  %v1028 = vsel %vm86, %v994, 0.0
  %1029 = vadd.xlane.f32.xlu0 %v1028
  %v1030 = vpop.xlane.xlu0 %1029
  %v1031 = vsel %vm86, %v995, 0.0
  %1032 = vadd.xlane.f32.xlu0 %v1031
  %v1033 = vpop.xlane.xlu0 %1032
  %v1034 = vsel %vm86, %v996, 0.0
  %1035 = vadd.xlane.f32.xlu0 %v1034
  %v1036 = vpop.xlane.xlu0 %1035
  %v1037 = vsel %vm86, %v997, 0.0
  %1038 = vadd.xlane.f32.xlu0 %v1037
  %v1039 = vpop.xlane.xlu0 %1038
  %v1040 = vsel %vm86, %v998, 0.0
  %1041 = vadd.xlane.f32.xlu0 %v1040
  %v1042 = vpop.xlane.xlu0 %1041
  %v1043 = vsel %vm86, %v999, 0.0
  %1044 = vadd.xlane.f32.xlu0 %v1043
  %v1045 = vpop.xlane.xlu0 %1044
  %v1046 = vsel %vm86, %v1000, 0.0
  %1047 = vadd.xlane.f32.xlu0 %v1046
  %v1048 = vpop.xlane.xlu0 %1047
  %v1049 = vrcp.pop %v1003
  %v1050 = vrcp.pop %v1006
  %v1051 = vrcp.pop %v1009
  %v1052 = vrcp.pop %v1012
  %v1053 = vrcp.pop %v1015
  %v1054 = vrcp.pop %v1018
  %v1055 = vrcp.pop %v1021
  %v1056 = vrcp.pop %v1024
  %v1057 = vrcp.pop %v1027
  %v1058 = vrcp.pop %v1030
  %v1059 = vrcp.pop %v1033
  %v1060 = vrcp.pop %v1036
  %v1061 = vrcp.pop %v1039
  %v1062 = vrcp.pop %v1042
  %v1063 = vrcp.pop %v1045
  %v1064 = vrcp.pop %v1048
  %v1065 = vmul.f32 %v985, %v1049
  %v1066 = vmul.f32 %v986, %v1050
  %v1067 = vmul.f32 %v987, %v1051
  %v1068 = vmul.f32 %v988, %v1052
  %v1069 = vmul.f32 %v989, %v1053
  %v1070 = vmul.f32 %v990, %v1054
  %v1071 = vmul.f32 %v991, %v1055
  %v1072 = vmul.f32 %v992, %v1056
  %v1073 = vmul.f32 %v993, %v1057
  %v1074 = vmul.f32 %v994, %v1058
  %v1075 = vmul.f32 %v995, %v1059
  %v1076 = vmul.f32 %v996, %v1060
  %v1077 = vmul.f32 %v997, %v1061
  %v1078 = vmul.f32 %v998, %v1062
  %v1079 = vmul.f32 %v999, %v1063
  %v1080 = vmul.f32 %v1000, %v1064
  %v1082 = vsel %vm86, %v1065, 0
  %v1085 = vsel %vm86, %v1066, 0
  %v1088 = vsel %vm86, %v1067, 0
  %v1091 = vsel %vm86, %v1068, 0
  %v1094 = vsel %vm86, %v1069, 0
  %v1097 = vsel %vm86, %v1070, 0
  %v1100 = vsel %vm86, %v1071, 0
  %v1103 = vsel %vm86, %v1072, 0
  %v1106 = vsel %vm86, %v1073, 0
  %v1109 = vsel %vm86, %v1074, 0
  %v1112 = vsel %vm86, %v1075, 0
  %v1115 = vsel %vm86, %v1076, 0
  %v1118 = vsel %vm86, %v1077, 0
  %v1121 = vsel %vm86, %v1078, 0
  %v1124 = vsel %vm86, %v1079, 0
  %v1127 = vsel %vm86, %v1080, 0
  %1129 = vmatprep.subr.mxu0 0.0
  %1130 = vmatpush1.msra.mxu0 %v382
  %1131 = vmatprep.subr.mxu0 0.0
  %1132 = vmatpush1.msra.mxu0 %v388
  %1133 = vmatprep.subr.mxu0 0.0
  %1134 = vmatpush1.msra.mxu0 0.0
  %1135 = vmatprep.subr.mxu0 0.0
  %1136 = vmatpush1.msra.mxu0 0.0
  %1137 = vmatprep.subr.mxu0 0.0
  %1138 = vmatpush1.msra.mxu0 0.0
  %1139 = vmatprep.subr.mxu0 0.0
  %1140 = vmatpush1.msra.mxu0 0.0
  %1141 = vmatprep.subr.mxu0 0.0
  %1142 = vmatpush1.msra.mxu0 0.0
  %1143 = vmatprep.subr.mxu0 0.0
  %1144 = vmatpush1.msra.mxu0 0.0
  %1145 = vmatprep.subr.mxu0 0.0
  %1146 = vmatpush1.msra.mxu0 0.0
  %1147 = vmatprep.subr.mxu0 0.0
  %1148 = vmatpush1.msra.mxu0 0.0
  %1149 = vmatprep.subr.mxu0 0.0
  %1150 = vmatpush1.msra.mxu0 0.0
  %1151 = vmatprep.subr.mxu0 0.0
  %1152 = vmatpush1.msra.mxu0 0.0
  %1153 = vmatprep.subr.mxu0 0.0
  %1154 = vmatpush1.msra.mxu0 0.0
  %1155 = vmatprep.subr.mxu0 0.0
  %1156 = vmatpush1.msra.mxu0 0.0
  %1157 = vmatprep.subr.mxu0 0.0
  %1158 = vmatpush1.msra.mxu0 0.0
  %1159 = vmatprep.subr.mxu0 0.0
  %1160 = vmatpush1.msra.mxu0 0.0
  %1161 = vmatprep.subr.mxu0 0.0
  %1162 = vmatpush1.msra.mxu0 0.0
  %1163 = vmatprep.subr.mxu0 0.0
  %1164 = vmatpush1.msra.mxu0 0.0
  %1165 = vmatprep.subr.mxu0 0.0
  %1166 = vmatpush1.msra.mxu0 0.0
  %1167 = vmatprep.subr.mxu0 0.0
  %1168 = vmatpush1.msra.mxu0 0.0
  %1169 = vmatprep.subr.mxu0 0.0
  %1170 = vmatpush1.msra.mxu0 0.0
  %1171 = vmatprep.subr.mxu0 0.0
  %1172 = vmatpush1.msra.mxu0 0.0
  %1173 = vmatprep.subr.mxu0 0.0
  %1174 = vmatpush1.msra.mxu0 0.0
  %1175 = vmatprep.subr.mxu0 0.0
  %1176 = vmatpush1.msra.mxu0 0.0
  %1177 = vmatprep.subr.mxu0 0.0
  %1178 = vmatpush1.msra.mxu0 0.0
  %1179 = vmatprep.subr.mxu0 0.0
  %1180 = vmatpush1.msra.mxu0 0.0
  %1181 = vmatprep.subr.mxu0 0.0
  %1182 = vmatpush1.msra.mxu0 0.0
  %1183 = vmatprep.subr.mxu0 0.0
  %1184 = vmatpush1.msra.mxu0 0.0
  %1185 = vmatprep.subr.mxu0 0.0
  %1186 = vmatpush1.msra.mxu0 0.0
  %1187 = vmatprep.subr.mxu0 0.0
  %1188 = vmatpush1.msra.mxu0 0.0
  %1189 = vmatprep.subr.mxu0 0.0
  %1190 = vmatpush1.msra.mxu0 0.0
  %1191 = vmatprep.subr.mxu0 0.0
  %1192 = vmatpush1.msra.mxu0 0.0
  %1193 = vmatprep.mubr.f32.mxu0 0.0
  %1194 = vmatmul.mubr.f32.gmra.mrb[0].mxu0 %v1082
  %v1195 = vpop.f32.mrb[0].mxu0
  %v1196 = vadd.f32 0.0, %v1195
  %v1197 = vpop.f32.mrb[0].mxu0
  %1198 = vmatprep.mubr.f32.mxu0 0.0
  %1199 = vmatmul.mubr.f32.gmra.mrb[0].mxu0 %v1085
  %v1200 = vpop.f32.mrb[0].mxu0
  %v1201 = vadd.f32 0.0, %v1200
  %v1202 = vpop.f32.mrb[0].mxu0
  %1203 = vmatprep.mubr.f32.mxu0 0.0
  %1204 = vmatmul.mubr.f32.gmra.mrb[0].mxu0 %v1088
  %v1205 = vpop.f32.mrb[0].mxu0
  %v1206 = vadd.f32 0.0, %v1205
  %v1207 = vpop.f32.mrb[0].mxu0
  %1208 = vmatprep.mubr.f32.mxu0 0.0
  %1209 = vmatmul.mubr.f32.gmra.mrb[0].mxu0 %v1091
  %v1210 = vpop.f32.mrb[0].mxu0
  %v1211 = vadd.f32 0.0, %v1210
  %v1212 = vpop.f32.mrb[0].mxu0
  %1213 = vmatprep.mubr.f32.mxu0 0.0
  %1214 = vmatmul.mubr.f32.gmra.mrb[0].mxu0 %v1094
  %v1215 = vpop.f32.mrb[0].mxu0
  %v1216 = vadd.f32 0.0, %v1215
  %v1217 = vpop.f32.mrb[0].mxu0
  %1218 = vmatprep.mubr.f32.mxu0 0.0
  %1219 = vmatmul.mubr.f32.gmra.mrb[0].mxu0 %v1097
  %v1220 = vpop.f32.mrb[0].mxu0
  %v1221 = vadd.f32 0.0, %v1220
  %v1222 = vpop.f32.mrb[0].mxu0
  %1223 = vmatprep.mubr.f32.mxu0 0.0
  %1224 = vmatmul.mubr.f32.gmra.mrb[0].mxu0 %v1100
  %v1225 = vpop.f32.mrb[0].mxu0
  %v1226 = vadd.f32 0.0, %v1225
  %v1227 = vpop.f32.mrb[0].mxu0
  %1228 = vmatprep.mubr.f32.mxu0 0.0
  %1229 = vmatmul.mubr.f32.gmra.mrb[0].mxu0 %v1103
  %v1230 = vpop.f32.mrb[0].mxu0
  %v1231 = vadd.f32 0.0, %v1230
  %v1232 = vpop.f32.mrb[0].mxu0
  %1233 = vmatprep.mubr.f32.mxu0 0.0
  %1234 = vmatmul.mubr.f32.gmra.mrb[0].mxu0 %v1106
  %v1235 = vpop.f32.mrb[0].mxu0
  %v1236 = vadd.f32 0.0, %v1235
  %v1237 = vpop.f32.mrb[0].mxu0
  %1238 = vmatprep.mubr.f32.mxu0 0.0
  %1239 = vmatmul.mubr.f32.gmra.mrb[0].mxu0 %v1109
  %v1240 = vpop.f32.mrb[0].mxu0
  %v1241 = vadd.f32 0.0, %v1240
  %v1242 = vpop.f32.mrb[0].mxu0
  %1243 = vmatprep.mubr.f32.mxu0 0.0
  %1244 = vmatmul.mubr.f32.gmra.mrb[0].mxu0 %v1112
  %v1245 = vpop.f32.mrb[0].mxu0
  %v1246 = vadd.f32 0.0, %v1245
  %v1247 = vpop.f32.mrb[0].mxu0
  %1248 = vmatprep.mubr.f32.mxu0 0.0
  %1249 = vmatmul.mubr.f32.gmra.mrb[0].mxu0 %v1115
  %v1250 = vpop.f32.mrb[0].mxu0
  %v1251 = vadd.f32 0.0, %v1250
  %v1252 = vpop.f32.mrb[0].mxu0
  %1253 = vmatprep.mubr.f32.mxu0 0.0
  %1254 = vmatmul.mubr.f32.gmra.mrb[0].mxu0 %v1118
  %v1255 = vpop.f32.mrb[0].mxu0
  %v1256 = vadd.f32 0.0, %v1255
  %v1257 = vpop.f32.mrb[0].mxu0
  %1258 = vmatprep.mubr.f32.mxu0 0.0
  %1259 = vmatmul.mubr.f32.gmra.mrb[0].mxu0 %v1121
  %v1260 = vpop.f32.mrb[0].mxu0
  %v1261 = vadd.f32 0.0, %v1260
  %v1262 = vpop.f32.mrb[0].mxu0
  %1263 = vmatprep.mubr.f32.mxu0 0.0
  %1264 = vmatmul.mubr.f32.gmra.mrb[0].mxu0 %v1124
  %v1265 = vpop.f32.mrb[0].mxu0
  %v1266 = vadd.f32 0.0, %v1265
  %v1267 = vpop.f32.mrb[0].mxu0
  %1268 = vmatprep.mubr.f32.mxu0 0.0
  %1269 = vmatmul.mubr.f32.gmra.mrb[0].mxu0 %v1127
  %v1270 = vpop.f32.mrb[0].mxu0
  %v1271 = vadd.f32 0.0, %v1270
  %v1272 = vpop.f32.mrb[0].mxu0
  %1273 = vdwg.mxu0
  %v1274 = vld [vmem:[%s13] sm:$0xff]
  %v1275 = vld [vmem:[%s13 + $0x8] sm:$0xff]
  %v1276 = vld [vmem:[%s13 + $0x10] sm:$0xff]
  %v1277 = vld [vmem:[%s13 + $0x18] sm:$0xff]
  %v1278 = vld [vmem:[%s13 + $0x20] sm:$0xff]
  %v1279 = vld [vmem:[%s13 + $0x28] sm:$0xff]
  %v1280 = vld [vmem:[%s13 + $0x30] sm:$0xff]
  %v1281 = vld [vmem:[%s13 + $0x38] sm:$0xff]
  %v1282 = vld [vmem:[%s13 + $0x40] sm:$0xff]
  %v1283 = vld [vmem:[%s13 + $0x48] sm:$0xff]
  %v1284 = vld [vmem:[%s13 + $0x50] sm:$0xff]
  %v1285 = vld [vmem:[%s13 + $0x58] sm:$0xff]
  %v1286 = vld [vmem:[%s13 + $0x60] sm:$0xff]
  %v1287 = vld [vmem:[%s13 + $0x68] sm:$0xff]
  %v1288 = vld [vmem:[%s13 + $0x70] sm:$0xff]
  %v1289 = vld [vmem:[%s13 + $0x78] sm:$0xff]
  %v1290 = vmul.f32 %v1196, %v1274
  %v1291 = vmul.f32 %v1201, %v1275
  %v1292 = vmul.f32 %v1206, %v1276
  %v1293 = vmul.f32 %v1211, %v1277
  %v1294 = vmul.f32 %v1216, %v1278
  %v1295 = vmul.f32 %v1221, %v1279
  %v1296 = vmul.f32 %v1226, %v1280
  %v1297 = vmul.f32 %v1231, %v1281
  %v1298 = vmul.f32 %v1236, %v1282
  %v1299 = vmul.f32 %v1241, %v1283
  %v1300 = vmul.f32 %v1246, %v1284
  %v1301 = vmul.f32 %v1251, %v1285
  %v1302 = vmul.f32 %v1256, %v1286
  %v1303 = vmul.f32 %v1261, %v1287
  %v1304 = vmul.f32 %v1266, %v1288
  %v1305 = vmul.f32 %v1271, %v1289
  %v1306 = vld [vmem:[%s3] sm:$0x1]
  %v1308 = vlaneseq
  %v1309 = vshrl.u32 %v1308, 7
  %v1310 = vsub.s32 0, %v1309
  %v1311 = vrot.slane %v1306, %v1310
  %1313 = vmatprep.subr.mxu0 0.0
  %1314 = vmatpush1.msra.mxu0 %v1290
  %1315 = vmatprep.subr.mxu0 0.0
  %1316 = vmatpush1.msra.mxu0 %v1291
  %1317 = vmatprep.subr.mxu0 0.0
  %1318 = vmatpush1.msra.mxu0 %v1292
  %1319 = vmatprep.subr.mxu0 0.0
  %1320 = vmatpush1.msra.mxu0 %v1293
  %1321 = vmatprep.subr.mxu0 0.0
  %1322 = vmatpush1.msra.mxu0 %v1294
  %1323 = vmatprep.subr.mxu0 0.0
  %1324 = vmatpush1.msra.mxu0 %v1295
  %1325 = vmatprep.subr.mxu0 0.0
  %1326 = vmatpush1.msra.mxu0 %v1296
  %1327 = vmatprep.subr.mxu0 0.0
  %1328 = vmatpush1.msra.mxu0 %v1297
  %1329 = vmatprep.subr.mxu0 0.0
  %1330 = vmatpush1.msra.mxu0 %v1298
  %1331 = vmatprep.subr.mxu0 0.0
  %1332 = vmatpush1.msra.mxu0 %v1299
  %1333 = vmatprep.subr.mxu0 0.0
  %1334 = vmatpush1.msra.mxu0 %v1300
  %1335 = vmatprep.subr.mxu0 0.0
  %1336 = vmatpush1.msra.mxu0 %v1301
  %1337 = vmatprep.subr.mxu0 0.0
  %1338 = vmatpush1.msra.mxu0 %v1302
  %1339 = vmatprep.subr.mxu0 0.0
  %1340 = vmatpush1.msra.mxu0 %v1303
  %1341 = vmatprep.subr.mxu0 0.0
  %1342 = vmatpush1.msra.mxu0 %v1304
  %1343 = vmatprep.subr.mxu0 0.0
  %1344 = vmatpush1.msra.mxu0 %v1305
  %1345 = vmatprep.subr.mxu0 0.0
  %1346 = vmatpush1.msra.mxu0 0.0
  %1347 = vmatprep.subr.mxu0 0.0
  %1348 = vmatpush1.msra.mxu0 0.0
  %1349 = vmatprep.subr.mxu0 0.0
  %1350 = vmatpush1.msra.mxu0 0.0
  %1351 = vmatprep.subr.mxu0 0.0
  %1352 = vmatpush1.msra.mxu0 0.0
  %1353 = vmatprep.subr.mxu0 0.0
  %1354 = vmatpush1.msra.mxu0 0.0
  %1355 = vmatprep.subr.mxu0 0.0
  %1356 = vmatpush1.msra.mxu0 0.0
  %1357 = vmatprep.subr.mxu0 0.0
  %1358 = vmatpush1.msra.mxu0 0.0
  %1359 = vmatprep.subr.mxu0 0.0
  %1360 = vmatpush1.msra.mxu0 0.0
  %1361 = vmatprep.subr.mxu0 0.0
  %1362 = vmatpush1.msra.mxu0 0.0
  %1363 = vmatprep.subr.mxu0 0.0
  %1364 = vmatpush1.msra.mxu0 0.0
  %1365 = vmatprep.subr.mxu0 0.0
  %1366 = vmatpush1.msra.mxu0 0.0
  %1367 = vmatprep.subr.mxu0 0.0
  %1368 = vmatpush1.msra.mxu0 0.0
  %1369 = vmatprep.subr.mxu0 0.0
  %1370 = vmatpush1.msra.mxu0 0.0
  %1371 = vmatprep.subr.mxu0 0.0
  %1372 = vmatpush1.msra.mxu0 0.0
  %1373 = vmatprep.subr.mxu0 0.0
  %1374 = vmatpush1.msra.mxu0 0.0
  %1375 = vmatprep.subr.mxu0 0.0
  %1376 = vmatpush1.msra.mxu0 0.0
  %1377 = vmatprep.mubr.f32.mxu0 0.0
  %1378 = vmatmul.mubr.f32.gmra.mrb[0].mxu0 %v84
  %v1379 = vpop.f32.mrb[0].mxu0
  %v1380 = vadd.f32 %v1311, %v1379
  %v1381 = vpop.f32.mrb[0].mxu0
  %1382 = vmatprep.mubr.f32.mxu0 0.0
  %1383 = vmatmul.mubr.f32.gmra.mrb[0].mxu0 %v85
  %v1384 = vpop.f32.mrb[0].mxu0
  %v1385 = vadd.f32 %v1311, %v1384
  %v1386 = vpop.f32.mrb[0].mxu0
  %1387 = vdwg.mxu0
  %vm1388 = vcmp.gt.f32.partialorder %v1380, 0.0
  %vm1389 = vcmp.gt.f32.partialorder %v1385, 0.0
  %v1390 = vmul.f32 %v1380, 1.442695
  %v1391 = vpow.pop %v1390
  %v1392 = vmul.f32 %v1385, 1.442695
  %v1393 = vpow.pop %v1392
  %v1394 = vsub.f32 %v1391, 1.0
  %v1395 = vsub.f32 %v1393, 1.0
  %v1396 = vsel %vm1388, %v1380, %v1394
  %v1397 = vsel %vm1389, %v1385, %v1395
  %v1398 = vld [vmem:[%s4] sm:$0xff]
  %v1399 = vld [vmem:[%s4 + $0x8] sm:$0xff]
  %v1400 = vld [vmem:[%s4 + $0x10] sm:$0xff]
  %v1401 = vld [vmem:[%s4 + $0x18] sm:$0xff]
  %v1402 = vld [vmem:[%s4 + $0x20] sm:$0xff]
  %v1403 = vld [vmem:[%s4 + $0x28] sm:$0xff]
  %v1404 = vld [vmem:[%s4 + $0x30] sm:$0xff]
  %v1405 = vld [vmem:[%s4 + $0x38] sm:$0xff]
  %v1406 = vld [vmem:[%s4 + $0x40] sm:$0xff]
  %v1407 = vld [vmem:[%s4 + $0x48] sm:$0xff]
  %v1408 = vld [vmem:[%s4 + $0x50] sm:$0xff]
  %v1409 = vld [vmem:[%s4 + $0x58] sm:$0xff]
  %v1410 = vld [vmem:[%s4 + $0x60] sm:$0xff]
  %v1411 = vld [vmem:[%s4 + $0x68] sm:$0xff]
  %v1412 = vld [vmem:[%s4 + $0x70] sm:$0xff]
  %v1413 = vld [vmem:[%s4 + $0x78] sm:$0xff]
  %1414 = vmatprep.subr.mxu0 0.0
  %1415 = vmatpush1.msra.mxu0 %v1398
  %1416 = vmatprep.subr.mxu0 0.0
  %1417 = vmatpush1.msra.mxu0 %v1399
  %1418 = vmatprep.subr.mxu0 0.0
  %1419 = vmatpush1.msra.mxu0 %v1400
  %1420 = vmatprep.subr.mxu0 0.0
  %1421 = vmatpush1.msra.mxu0 %v1401
  %1422 = vmatprep.subr.mxu0 0.0
  %1423 = vmatpush1.msra.mxu0 %v1402
  %1424 = vmatprep.subr.mxu0 0.0
  %1425 = vmatpush1.msra.mxu0 %v1403
  %1426 = vmatprep.subr.mxu0 0.0
  %1427 = vmatpush1.msra.mxu0 %v1404
  %1428 = vmatprep.subr.mxu0 0.0
  %1429 = vmatpush1.msra.mxu0 %v1405
  %1430 = vmatprep.subr.mxu0 0.0
  %1431 = vmatpush1.msra.mxu0 %v1406
  %1432 = vmatprep.subr.mxu0 0.0
  %1433 = vmatpush1.msra.mxu0 %v1407
  %1434 = vmatprep.subr.mxu0 0.0
  %1435 = vmatpush1.msra.mxu0 %v1408
  %1436 = vmatprep.subr.mxu0 0.0
  %1437 = vmatpush1.msra.mxu0 %v1409
  %1438 = vmatprep.subr.mxu0 0.0
  %1439 = vmatpush1.msra.mxu0 %v1410
  %1440 = vmatprep.subr.mxu0 0.0
  %1441 = vmatpush1.msra.mxu0 %v1411
  %1442 = vmatprep.subr.mxu0 0.0
  %1443 = vmatpush1.msra.mxu0 %v1412
  %1444 = vmatprep.subr.mxu0 0.0
  %1445 = vmatpush1.msra.mxu0 %v1413
  %1446 = vmatprep.subr.mxu0 0.0
  %1447 = vmatpush1.msra.mxu0 0.0
  %1448 = vmatprep.subr.mxu0 0.0
  %1449 = vmatpush1.msra.mxu0 0.0
  %1450 = vmatprep.subr.mxu0 0.0
  %1451 = vmatpush1.msra.mxu0 0.0
  %1452 = vmatprep.subr.mxu0 0.0
  %1453 = vmatpush1.msra.mxu0 0.0
  %1454 = vmatprep.subr.mxu0 0.0
  %1455 = vmatpush1.msra.mxu0 0.0
  %1456 = vmatprep.subr.mxu0 0.0
  %1457 = vmatpush1.msra.mxu0 0.0
  %1458 = vmatprep.subr.mxu0 0.0
  %1459 = vmatpush1.msra.mxu0 0.0
  %1460 = vmatprep.subr.mxu0 0.0
  %1461 = vmatpush1.msra.mxu0 0.0
  %1462 = vmatprep.subr.mxu0 0.0
  %1463 = vmatpush1.msra.mxu0 0.0
  %1464 = vmatprep.subr.mxu0 0.0
  %1465 = vmatpush1.msra.mxu0 0.0
  %1466 = vmatprep.subr.mxu0 0.0
  %1467 = vmatpush1.msra.mxu0 0.0
  %1468 = vmatprep.subr.mxu0 0.0
  %1469 = vmatpush1.msra.mxu0 0.0
  %1470 = vmatprep.subr.mxu0 0.0
  %1471 = vmatpush1.msra.mxu0 0.0
  %1472 = vmatprep.subr.mxu0 0.0
  %1473 = vmatpush1.msra.mxu0 0.0
  %1474 = vmatprep.subr.mxu0 0.0
  %1475 = vmatpush1.msra.mxu0 0.0
  %1476 = vmatprep.subr.mxu0 0.0
  %1477 = vmatpush1.msra.mxu0 0.0
  %1478 = vmatprep.mubr.f32.mxu0 0.0
  %1479 = vmatmul.mubr.f32.gmra.mrb[0].mxu0 %v1396
  %v1480 = vpop.f32.mrb[0].mxu0
  %v1481 = vadd.f32 0.0, %v1480
  %v1482 = vpop.f32.mrb[0].mxu0
  %1483 = vmatprep.mubr.f32.mxu0 0.0
  %1484 = vmatmul.mubr.f32.gmra.mrb[0].mxu0 %v1397
  %v1485 = vpop.f32.mrb[0].mxu0
  %v1486 = vadd.f32 0.0, %v1485
  %v1487 = vpop.f32.mrb[0].mxu0
  %1488 = vdwg.mxu0
  %1491 = vrot.lane.b32.xlu0 %v1481, 64
  %v1492 = vpop.permute.xlu0 %1491
  %1493 = vrot.lane.b32.xlu0 %v1486, 64
  %v1494 = vpop.permute.xlu0 %1493
  %v1495 = vsel %vm392, %v1492, 0
  %v1497 = vsel %vm392, %v1494, 0
  %1499 = vmatprep.subr.mxu0 0.0
  %1500 = vmatpush1.xpose.msra.mxu0 %v1495
  %1501 = vmatprep.subr.mxu0 0.0
  %1502 = vmatpush1.xpose.msra.mxu0 %v1497
  %1503 = vmatprep.subr.mxu0 0.0
  %1504 = vmatpush1.xpose.msra.mxu0 0.0
  %1505 = vmatprep.subr.mxu0 0.0
  %1506 = vmatpush1.xpose.msra.mxu0 0.0
  %1507 = vmatprep.subr.mxu0 0.0
  %1508 = vmatpush1.xpose.msra.mxu0 0.0
  %1509 = vmatprep.subr.mxu0 0.0
  %1510 = vmatpush1.xpose.msra.mxu0 0.0
  %1511 = vmatprep.subr.mxu0 0.0
  %1512 = vmatpush1.xpose.msra.mxu0 0.0
  %1513 = vmatprep.subr.mxu0 0.0
  %1514 = vmatpush1.xpose.msra.mxu0 0.0
  %1515 = vmatprep.subr.mxu0 0.0
  %1516 = vmatpush1.xpose.msra.mxu0 0.0
  %1517 = vmatprep.subr.mxu0 0.0
  %1518 = vmatpush1.xpose.msra.mxu0 0.0
  %1519 = vmatprep.subr.mxu0 0.0
  %1520 = vmatpush1.xpose.msra.mxu0 0.0
  %1521 = vmatprep.subr.mxu0 0.0
  %1522 = vmatpush1.xpose.msra.mxu0 0.0
  %1523 = vmatprep.subr.mxu0 0.0
  %1524 = vmatpush1.xpose.msra.mxu0 0.0
  %1525 = vmatprep.subr.mxu0 0.0
  %1526 = vmatpush1.xpose.msra.mxu0 0.0
  %1527 = vmatprep.subr.mxu0 0.0
  %1528 = vmatpush1.xpose.msra.mxu0 0.0
  %1529 = vmatprep.subr.mxu0 0.0
  %1530 = vmatpush1.xpose.msra.mxu0 0.0
  %1531 = vmatprep.subr.mxu0 0.0
  %1532 = vmatpush1.xpose.msra.mxu0 0.0
  %1533 = vmatprep.subr.mxu0 0.0
  %1534 = vmatpush1.xpose.msra.mxu0 0.0
  %1535 = vmatprep.subr.mxu0 0.0
  %1536 = vmatpush1.xpose.msra.mxu0 0.0
  %1537 = vmatprep.subr.mxu0 0.0
  %1538 = vmatpush1.xpose.msra.mxu0 0.0
  %1539 = vmatprep.subr.mxu0 0.0
  %1540 = vmatpush1.xpose.msra.mxu0 0.0
  %1541 = vmatprep.subr.mxu0 0.0
  %1542 = vmatpush1.xpose.msra.mxu0 0.0
  %1543 = vmatprep.subr.mxu0 0.0
  %1544 = vmatpush1.xpose.msra.mxu0 0.0
  %1545 = vmatprep.subr.mxu0 0.0
  %1546 = vmatpush1.xpose.msra.mxu0 0.0
  %1547 = vmatprep.subr.mxu0 0.0
  %1548 = vmatpush1.xpose.msra.mxu0 0.0
  %1549 = vmatprep.subr.mxu0 0.0
  %1550 = vmatpush1.xpose.msra.mxu0 0.0
  %1551 = vmatprep.subr.mxu0 0.0
  %1552 = vmatpush1.xpose.msra.mxu0 0.0
  %1553 = vmatprep.subr.mxu0 0.0
  %1554 = vmatpush1.xpose.msra.mxu0 0.0
  %1555 = vmatprep.subr.mxu0 0.0
  %1556 = vmatpush1.xpose.msra.mxu0 0.0
  %1557 = vmatprep.subr.mxu0 0.0
  %1558 = vmatpush1.xpose.msra.mxu0 0.0
  %1559 = vmatprep.subr.mxu0 0.0
  %1560 = vmatpush1.xpose.msra.mxu0 0.0
  %1561 = vmatprep.subr.mxu0 0.0
  %1562 = vmatpush1.xpose.msra.mxu0 0.0
  %1563 = vmatprep.mubr.f32.mxu0 0.0
  %1564 = vmatmul.mubr.f32.gmra.mrb[0].mxu0 %v394
  %v1565 = vpop.f32.mrb[0].mxu0
  %v1566 = vadd.f32 0.0, %v1565
  %v1567 = vpop.f32.mrb[0].mxu0
  %1568 = vmatprep.mubr.f32.mxu0 0.0
  %1569 = vmatmul.mubr.f32.gmra.mrb[0].mxu0 %v397
  %v1570 = vpop.f32.mrb[0].mxu0
  %v1571 = vadd.f32 0.0, %v1570
  %v1572 = vpop.f32.mrb[0].mxu0
  %1573 = vmatprep.mubr.f32.mxu0 0.0
  %1574 = vmatmul.mubr.f32.gmra.mrb[0].mxu0 %v400
  %v1575 = vpop.f32.mrb[0].mxu0
  %v1576 = vadd.f32 0.0, %v1575
  %v1577 = vpop.f32.mrb[0].mxu0
  %1578 = vmatprep.mubr.f32.mxu0 0.0
  %1579 = vmatmul.mubr.f32.gmra.mrb[0].mxu0 %v403
  %v1580 = vpop.f32.mrb[0].mxu0
  %v1581 = vadd.f32 0.0, %v1580
  %v1582 = vpop.f32.mrb[0].mxu0
  %1583 = vmatprep.mubr.f32.mxu0 0.0
  %1584 = vmatmul.mubr.f32.gmra.mrb[0].mxu0 %v406
  %v1585 = vpop.f32.mrb[0].mxu0
  %v1586 = vadd.f32 0.0, %v1585
  %v1587 = vpop.f32.mrb[0].mxu0
  %1588 = vmatprep.mubr.f32.mxu0 0.0
  %1589 = vmatmul.mubr.f32.gmra.mrb[0].mxu0 %v409
  %v1590 = vpop.f32.mrb[0].mxu0
  %v1591 = vadd.f32 0.0, %v1590
  %v1592 = vpop.f32.mrb[0].mxu0
  %1593 = vmatprep.mubr.f32.mxu0 0.0
  %1594 = vmatmul.mubr.f32.gmra.mrb[0].mxu0 %v412
  %v1595 = vpop.f32.mrb[0].mxu0
  %v1596 = vadd.f32 0.0, %v1595
  %v1597 = vpop.f32.mrb[0].mxu0
  %1598 = vmatprep.mubr.f32.mxu0 0.0
  %1599 = vmatmul.mubr.f32.gmra.mrb[0].mxu0 %v415
  %v1600 = vpop.f32.mrb[0].mxu0
  %v1601 = vadd.f32 0.0, %v1600
  %v1602 = vpop.f32.mrb[0].mxu0
  %1603 = vmatprep.mubr.f32.mxu0 0.0
  %1604 = vmatmul.mubr.f32.gmra.mrb[0].mxu0 %v418
  %v1605 = vpop.f32.mrb[0].mxu0
  %v1606 = vadd.f32 0.0, %v1605
  %v1607 = vpop.f32.mrb[0].mxu0
  %1608 = vmatprep.mubr.f32.mxu0 0.0
  %1609 = vmatmul.mubr.f32.gmra.mrb[0].mxu0 %v421
  %v1610 = vpop.f32.mrb[0].mxu0
  %v1611 = vadd.f32 0.0, %v1610
  %v1612 = vpop.f32.mrb[0].mxu0
  %1613 = vmatprep.mubr.f32.mxu0 0.0
  %1614 = vmatmul.mubr.f32.gmra.mrb[0].mxu0 %v424
  %v1615 = vpop.f32.mrb[0].mxu0
  %v1616 = vadd.f32 0.0, %v1615
  %v1617 = vpop.f32.mrb[0].mxu0
  %1618 = vmatprep.mubr.f32.mxu0 0.0
  %1619 = vmatmul.mubr.f32.gmra.mrb[0].mxu0 %v427
  %v1620 = vpop.f32.mrb[0].mxu0
  %v1621 = vadd.f32 0.0, %v1620
  %v1622 = vpop.f32.mrb[0].mxu0
  %1623 = vmatprep.mubr.f32.mxu0 0.0
  %1624 = vmatmul.mubr.f32.gmra.mrb[0].mxu0 %v430
  %v1625 = vpop.f32.mrb[0].mxu0
  %v1626 = vadd.f32 0.0, %v1625
  %v1627 = vpop.f32.mrb[0].mxu0
  %1628 = vmatprep.mubr.f32.mxu0 0.0
  %1629 = vmatmul.mubr.f32.gmra.mrb[0].mxu0 %v433
  %v1630 = vpop.f32.mrb[0].mxu0
  %v1631 = vadd.f32 0.0, %v1630
  %v1632 = vpop.f32.mrb[0].mxu0
  %1633 = vmatprep.mubr.f32.mxu0 0.0
  %1634 = vmatmul.mubr.f32.gmra.mrb[0].mxu0 %v436
  %v1635 = vpop.f32.mrb[0].mxu0
  %v1636 = vadd.f32 0.0, %v1635
  %v1637 = vpop.f32.mrb[0].mxu0
  %1638 = vmatprep.mubr.f32.mxu0 0.0
  %1639 = vmatmul.mubr.f32.gmra.mrb[0].mxu0 %v439
  %v1640 = vpop.f32.mrb[0].mxu0
  %v1641 = vadd.f32 0.0, %v1640
  %v1642 = vpop.f32.mrb[0].mxu0
  %1643 = vdwg.mxu0
  %1644 = vrot.lane.b32.xlu0 %v1481, 56
  %v1645 = vpop.permute.xlu0 %1644
  %1646 = vrot.lane.b32.xlu0 %v1486, 56
  %v1647 = vpop.permute.xlu0 %1646
  %v1648 = vsel %vm392, %v1645, 0
  %v1650 = vsel %vm392, %v1647, 0
  %1652 = vmatprep.subr.mxu0 0.0
  %1653 = vmatpush1.xpose.msra.mxu0 %v1648
  %1654 = vmatprep.subr.mxu0 0.0
  %1655 = vmatpush1.xpose.msra.mxu0 %v1650
  %1656 = vmatprep.subr.mxu0 0.0
  %1657 = vmatpush1.xpose.msra.mxu0 0.0
  %1658 = vmatprep.subr.mxu0 0.0
  %1659 = vmatpush1.xpose.msra.mxu0 0.0
  %1660 = vmatprep.subr.mxu0 0.0
  %1661 = vmatpush1.xpose.msra.mxu0 0.0
  %1662 = vmatprep.subr.mxu0 0.0
  %1663 = vmatpush1.xpose.msra.mxu0 0.0
  %1664 = vmatprep.subr.mxu0 0.0
  %1665 = vmatpush1.xpose.msra.mxu0 0.0
  %1666 = vmatprep.subr.mxu0 0.0
  %1667 = vmatpush1.xpose.msra.mxu0 0.0
  %1668 = vmatprep.subr.mxu0 0.0
  %1669 = vmatpush1.xpose.msra.mxu0 0.0
  %1670 = vmatprep.subr.mxu0 0.0
  %1671 = vmatpush1.xpose.msra.mxu0 0.0
  %1672 = vmatprep.subr.mxu0 0.0
  %1673 = vmatpush1.xpose.msra.mxu0 0.0
  %1674 = vmatprep.subr.mxu0 0.0
  %1675 = vmatpush1.xpose.msra.mxu0 0.0
  %1676 = vmatprep.subr.mxu0 0.0
  %1677 = vmatpush1.xpose.msra.mxu0 0.0
  %1678 = vmatprep.subr.mxu0 0.0
  %1679 = vmatpush1.xpose.msra.mxu0 0.0
  %1680 = vmatprep.subr.mxu0 0.0
  %1681 = vmatpush1.xpose.msra.mxu0 0.0
  %1682 = vmatprep.subr.mxu0 0.0
  %1683 = vmatpush1.xpose.msra.mxu0 0.0
  %1684 = vmatprep.subr.mxu0 0.0
  %1685 = vmatpush1.xpose.msra.mxu0 0.0
  %1686 = vmatprep.subr.mxu0 0.0
  %1687 = vmatpush1.xpose.msra.mxu0 0.0
  %1688 = vmatprep.subr.mxu0 0.0
  %1689 = vmatpush1.xpose.msra.mxu0 0.0
  %1690 = vmatprep.subr.mxu0 0.0
  %1691 = vmatpush1.xpose.msra.mxu0 0.0
  %1692 = vmatprep.subr.mxu0 0.0
  %1693 = vmatpush1.xpose.msra.mxu0 0.0
  %1694 = vmatprep.subr.mxu0 0.0
  %1695 = vmatpush1.xpose.msra.mxu0 0.0
  %1696 = vmatprep.subr.mxu0 0.0
  %1697 = vmatpush1.xpose.msra.mxu0 0.0
  %1698 = vmatprep.subr.mxu0 0.0
  %1699 = vmatpush1.xpose.msra.mxu0 0.0
  %1700 = vmatprep.subr.mxu0 0.0
  %1701 = vmatpush1.xpose.msra.mxu0 0.0
  %1702 = vmatprep.subr.mxu0 0.0
  %1703 = vmatpush1.xpose.msra.mxu0 0.0
  %1704 = vmatprep.subr.mxu0 0.0
  %1705 = vmatpush1.xpose.msra.mxu0 0.0
  %1706 = vmatprep.subr.mxu0 0.0
  %1707 = vmatpush1.xpose.msra.mxu0 0.0
  %1708 = vmatprep.subr.mxu0 0.0
  %1709 = vmatpush1.xpose.msra.mxu0 0.0
  %1710 = vmatprep.subr.mxu0 0.0
  %1711 = vmatpush1.xpose.msra.mxu0 0.0
  %1712 = vmatprep.subr.mxu0 0.0
  %1713 = vmatpush1.xpose.msra.mxu0 0.0
  %1714 = vmatprep.subr.mxu0 0.0
  %1715 = vmatpush1.xpose.msra.mxu0 0.0
  %1716 = vmatprep.mubr.f32.mxu0 0.0
  %1717 = vmatmul.mubr.f32.gmra.mrb[0].mxu0 %v394
  %v1718 = vpop.f32.mrb[0].mxu0
  %v1719 = vadd.f32 0.0, %v1718
  %v1720 = vpop.f32.mrb[0].mxu0
  %1721 = vmatprep.mubr.f32.mxu0 0.0
  %1722 = vmatmul.mubr.f32.gmra.mrb[0].mxu0 %v397
  %v1723 = vpop.f32.mrb[0].mxu0
  %v1724 = vadd.f32 0.0, %v1723
  %v1725 = vpop.f32.mrb[0].mxu0
  %1726 = vmatprep.mubr.f32.mxu0 0.0
  %1727 = vmatmul.mubr.f32.gmra.mrb[0].mxu0 %v400
  %v1728 = vpop.f32.mrb[0].mxu0
  %v1729 = vadd.f32 0.0, %v1728
  %v1730 = vpop.f32.mrb[0].mxu0
  %1731 = vmatprep.mubr.f32.mxu0 0.0
  %1732 = vmatmul.mubr.f32.gmra.mrb[0].mxu0 %v403
  %v1733 = vpop.f32.mrb[0].mxu0
  %v1734 = vadd.f32 0.0, %v1733
  %v1735 = vpop.f32.mrb[0].mxu0
  %1736 = vmatprep.mubr.f32.mxu0 0.0
  %1737 = vmatmul.mubr.f32.gmra.mrb[0].mxu0 %v406
  %v1738 = vpop.f32.mrb[0].mxu0
  %v1739 = vadd.f32 0.0, %v1738
  %v1740 = vpop.f32.mrb[0].mxu0
  %1741 = vmatprep.mubr.f32.mxu0 0.0
  %1742 = vmatmul.mubr.f32.gmra.mrb[0].mxu0 %v409
  %v1743 = vpop.f32.mrb[0].mxu0
  %v1744 = vadd.f32 0.0, %v1743
  %v1745 = vpop.f32.mrb[0].mxu0
  %1746 = vmatprep.mubr.f32.mxu0 0.0
  %1747 = vmatmul.mubr.f32.gmra.mrb[0].mxu0 %v412
  %v1748 = vpop.f32.mrb[0].mxu0
  %v1749 = vadd.f32 0.0, %v1748
  %v1750 = vpop.f32.mrb[0].mxu0
  %1751 = vmatprep.mubr.f32.mxu0 0.0
  %1752 = vmatmul.mubr.f32.gmra.mrb[0].mxu0 %v415
  %v1753 = vpop.f32.mrb[0].mxu0
  %v1754 = vadd.f32 0.0, %v1753
  %v1755 = vpop.f32.mrb[0].mxu0
  %1756 = vmatprep.mubr.f32.mxu0 0.0
  %1757 = vmatmul.mubr.f32.gmra.mrb[0].mxu0 %v418
  %v1758 = vpop.f32.mrb[0].mxu0
  %v1759 = vadd.f32 0.0, %v1758
  %v1760 = vpop.f32.mrb[0].mxu0
  %1761 = vmatprep.mubr.f32.mxu0 0.0
  %1762 = vmatmul.mubr.f32.gmra.mrb[0].mxu0 %v421
  %v1763 = vpop.f32.mrb[0].mxu0
  %v1764 = vadd.f32 0.0, %v1763
  %v1765 = vpop.f32.mrb[0].mxu0
  %1766 = vmatprep.mubr.f32.mxu0 0.0
  %1767 = vmatmul.mubr.f32.gmra.mrb[0].mxu0 %v424
  %v1768 = vpop.f32.mrb[0].mxu0
  %v1769 = vadd.f32 0.0, %v1768
  %v1770 = vpop.f32.mrb[0].mxu0
  %1771 = vmatprep.mubr.f32.mxu0 0.0
  %1772 = vmatmul.mubr.f32.gmra.mrb[0].mxu0 %v427
  %v1773 = vpop.f32.mrb[0].mxu0
  %v1774 = vadd.f32 0.0, %v1773
  %v1775 = vpop.f32.mrb[0].mxu0
  %1776 = vmatprep.mubr.f32.mxu0 0.0
  %1777 = vmatmul.mubr.f32.gmra.mrb[0].mxu0 %v430
  %v1778 = vpop.f32.mrb[0].mxu0
  %v1779 = vadd.f32 0.0, %v1778
  %v1780 = vpop.f32.mrb[0].mxu0
  %1781 = vmatprep.mubr.f32.mxu0 0.0
  %1782 = vmatmul.mubr.f32.gmra.mrb[0].mxu0 %v433
  %v1783 = vpop.f32.mrb[0].mxu0
  %v1784 = vadd.f32 0.0, %v1783
  %v1785 = vpop.f32.mrb[0].mxu0
  %1786 = vmatprep.mubr.f32.mxu0 0.0
  %1787 = vmatmul.mubr.f32.gmra.mrb[0].mxu0 %v436
  %v1788 = vpop.f32.mrb[0].mxu0
  %v1789 = vadd.f32 0.0, %v1788
  %v1790 = vpop.f32.mrb[0].mxu0
  %1791 = vmatprep.mubr.f32.mxu0 0.0
  %1792 = vmatmul.mubr.f32.gmra.mrb[0].mxu0 %v439
  %v1793 = vpop.f32.mrb[0].mxu0
  %v1794 = vadd.f32 0.0, %v1793
  %v1795 = vpop.f32.mrb[0].mxu0
  %1796 = vdwg.mxu0
  %v1797 = vmul.f32 %v1719, %v68
  %v1798 = vmul.f32 %v1724, %v69
  %v1799 = vmul.f32 %v1729, %v70
  %v1800 = vmul.f32 %v1734, %v71
  %v1801 = vmul.f32 %v1739, %v72
  %v1802 = vmul.f32 %v1744, %v73
  %v1803 = vmul.f32 %v1749, %v74
  %v1804 = vmul.f32 %v1754, %v75
  %v1805 = vmul.f32 %v1759, %v76
  %v1806 = vmul.f32 %v1764, %v77
  %v1807 = vmul.f32 %v1769, %v78
  %v1808 = vmul.f32 %v1774, %v79
  %v1809 = vmul.f32 %v1779, %v80
  %v1810 = vmul.f32 %v1784, %v81
  %v1811 = vmul.f32 %v1789, %v82
  %v1812 = vmul.f32 %v1794, %v83
  %v1813 = vsel %vm86, %v1797, 0.0
  %1814 = vadd.xlane.f32.xlu0 %v1813
  %v1815 = vpop.xlane.xlu0 %1814
  %v1816 = vsel %vm86, %v1798, 0.0
  %1817 = vadd.xlane.f32.xlu0 %v1816
  %v1818 = vpop.xlane.xlu0 %1817
  %v1819 = vsel %vm86, %v1799, 0.0
  %1820 = vadd.xlane.f32.xlu0 %v1819
  %v1821 = vpop.xlane.xlu0 %1820
  %v1822 = vsel %vm86, %v1800, 0.0
  %1823 = vadd.xlane.f32.xlu0 %v1822
  %v1824 = vpop.xlane.xlu0 %1823
  %v1825 = vsel %vm86, %v1801, 0.0
  %1826 = vadd.xlane.f32.xlu0 %v1825
  %v1827 = vpop.xlane.xlu0 %1826
  %v1828 = vsel %vm86, %v1802, 0.0
  %1829 = vadd.xlane.f32.xlu0 %v1828
  %v1830 = vpop.xlane.xlu0 %1829
  %v1831 = vsel %vm86, %v1803, 0.0
  %1832 = vadd.xlane.f32.xlu0 %v1831
  %v1833 = vpop.xlane.xlu0 %1832
  %v1834 = vsel %vm86, %v1804, 0.0
  %1835 = vadd.xlane.f32.xlu0 %v1834
  %v1836 = vpop.xlane.xlu0 %1835
  %v1837 = vsel %vm86, %v1805, 0.0
  %1838 = vadd.xlane.f32.xlu0 %v1837
  %v1839 = vpop.xlane.xlu0 %1838
  %v1840 = vsel %vm86, %v1806, 0.0
  %1841 = vadd.xlane.f32.xlu0 %v1840
  %v1842 = vpop.xlane.xlu0 %1841
  %v1843 = vsel %vm86, %v1807, 0.0
  %1844 = vadd.xlane.f32.xlu0 %v1843
  %v1845 = vpop.xlane.xlu0 %1844
  %v1846 = vsel %vm86, %v1808, 0.0
  %1847 = vadd.xlane.f32.xlu0 %v1846
  %v1848 = vpop.xlane.xlu0 %1847
  %v1849 = vsel %vm86, %v1809, 0.0
  %1850 = vadd.xlane.f32.xlu0 %v1849
  %v1851 = vpop.xlane.xlu0 %1850
  %v1852 = vsel %vm86, %v1810, 0.0
  %1853 = vadd.xlane.f32.xlu0 %v1852
  %v1854 = vpop.xlane.xlu0 %1853
  %v1855 = vsel %vm86, %v1811, 0.0
  %1856 = vadd.xlane.f32.xlu0 %v1855
  %v1857 = vpop.xlane.xlu0 %1856
  %v1858 = vsel %vm86, %v1812, 0.0
  %1859 = vadd.xlane.f32.xlu0 %v1858
  %v1860 = vpop.xlane.xlu0 %1859
  %v1861 = vadd.f32 %v1815, %v1566
  %v1862 = vadd.f32 %v1818, %v1571
  %v1863 = vadd.f32 %v1821, %v1576
  %v1864 = vadd.f32 %v1824, %v1581
  %v1865 = vadd.f32 %v1827, %v1586
  %v1866 = vadd.f32 %v1830, %v1591
  %v1867 = vadd.f32 %v1833, %v1596
  %v1868 = vadd.f32 %v1836, %v1601
  %v1869 = vadd.f32 %v1839, %v1606
  %v1870 = vadd.f32 %v1842, %v1611
  %v1871 = vadd.f32 %v1845, %v1616
  %v1872 = vadd.f32 %v1848, %v1621
  %v1873 = vadd.f32 %v1851, %v1626
  %v1874 = vadd.f32 %v1854, %v1631
  %v1875 = vadd.f32 %v1857, %v1636
  %v1876 = vadd.f32 %v1860, %v1641
  %vm1877 = vcmp.gt.f32.partialorder %v1861, 0.0
  %vm1878 = vcmp.gt.f32.partialorder %v1862, 0.0
  %vm1879 = vcmp.gt.f32.partialorder %v1863, 0.0
  %vm1880 = vcmp.gt.f32.partialorder %v1864, 0.0
  %vm1881 = vcmp.gt.f32.partialorder %v1865, 0.0
  %vm1882 = vcmp.gt.f32.partialorder %v1866, 0.0
  %vm1883 = vcmp.gt.f32.partialorder %v1867, 0.0
  %vm1884 = vcmp.gt.f32.partialorder %v1868, 0.0
  %vm1885 = vcmp.gt.f32.partialorder %v1869, 0.0
  %vm1886 = vcmp.gt.f32.partialorder %v1870, 0.0
  %vm1887 = vcmp.gt.f32.partialorder %v1871, 0.0
  %vm1888 = vcmp.gt.f32.partialorder %v1872, 0.0
  %vm1889 = vcmp.gt.f32.partialorder %v1873, 0.0
  %vm1890 = vcmp.gt.f32.partialorder %v1874, 0.0
  %vm1891 = vcmp.gt.f32.partialorder %v1875, 0.0
  %vm1892 = vcmp.gt.f32.partialorder %v1876, 0.0
  %v1893 = vmul.f32 %v1861, 0.2
  %v1894 = vmul.f32 %v1862, 0.2
  %v1895 = vmul.f32 %v1863, 0.2
  %v1896 = vmul.f32 %v1864, 0.2
  %v1897 = vmul.f32 %v1865, 0.2
  %v1898 = vmul.f32 %v1866, 0.2
  %v1899 = vmul.f32 %v1867, 0.2
  %v1900 = vmul.f32 %v1868, 0.2
  %v1901 = vmul.f32 %v1869, 0.2
  %v1902 = vmul.f32 %v1870, 0.2
  %v1903 = vmul.f32 %v1871, 0.2
  %v1904 = vmul.f32 %v1872, 0.2
  %v1905 = vmul.f32 %v1873, 0.2
  %v1906 = vmul.f32 %v1874, 0.2
  %v1907 = vmul.f32 %v1875, 0.2
  %v1908 = vmul.f32 %v1876, 0.2
  %v1909 = vsel %vm1877, %v1861, %v1893
  %v1910 = vsel %vm1878, %v1862, %v1894
  %v1911 = vsel %vm1879, %v1863, %v1895
  %v1912 = vsel %vm1880, %v1864, %v1896
  %v1913 = vsel %vm1881, %v1865, %v1897
  %v1914 = vsel %vm1882, %v1866, %v1898
  %v1915 = vsel %vm1883, %v1867, %v1899
  %v1916 = vsel %vm1884, %v1868, %v1900
  %v1917 = vsel %vm1885, %v1869, %v1901
  %v1918 = vsel %vm1886, %v1870, %v1902
  %v1919 = vsel %vm1887, %v1871, %v1903
  %v1920 = vsel %vm1888, %v1872, %v1904
  %v1921 = vsel %vm1889, %v1873, %v1905
  %v1922 = vsel %vm1890, %v1874, %v1906
  %v1923 = vsel %vm1891, %v1875, %v1907
  %v1924 = vsel %vm1892, %v1876, %v1908
  %v1925 = vsel %vm280, %v1909, -1e+30
  %v1926 = vsel %vm281, %v1910, -1e+30
  %v1927 = vsel %vm282, %v1911, -1e+30
  %v1928 = vsel %vm283, %v1912, -1e+30
  %v1929 = vsel %vm284, %v1913, -1e+30
  %v1930 = vsel %vm285, %v1914, -1e+30
  %v1931 = vsel %vm286, %v1915, -1e+30
  %v1932 = vsel %vm287, %v1916, -1e+30
  %v1933 = vsel %vm288, %v1917, -1e+30
  %v1934 = vsel %vm289, %v1918, -1e+30
  %v1935 = vsel %vm290, %v1919, -1e+30
  %v1936 = vsel %vm291, %v1920, -1e+30
  %v1937 = vsel %vm292, %v1921, -1e+30
  %v1938 = vsel %vm293, %v1922, -1e+30
  %v1939 = vsel %vm294, %v1923, -1e+30
  %v1940 = vsel %vm295, %v1924, -1e+30
  %v1941 = vsel %vm86, %v1925, -inf
  %1942 = vmax.xlane.f32.xlu0 %v1941
  %v1943 = vpop.xlane.xlu0 %1942
  %v1944 = vsel %vm86, %v1926, -inf
  %1945 = vmax.xlane.f32.xlu0 %v1944
  %v1946 = vpop.xlane.xlu0 %1945
  %v1947 = vsel %vm86, %v1927, -inf
  %1948 = vmax.xlane.f32.xlu0 %v1947
  %v1949 = vpop.xlane.xlu0 %1948
  %v1950 = vsel %vm86, %v1928, -inf
  %1951 = vmax.xlane.f32.xlu0 %v1950
  %v1952 = vpop.xlane.xlu0 %1951
  %v1953 = vsel %vm86, %v1929, -inf
  %1954 = vmax.xlane.f32.xlu0 %v1953
  %v1955 = vpop.xlane.xlu0 %1954
  %v1956 = vsel %vm86, %v1930, -inf
  %1957 = vmax.xlane.f32.xlu0 %v1956
  %v1958 = vpop.xlane.xlu0 %1957
  %v1959 = vsel %vm86, %v1931, -inf
  %1960 = vmax.xlane.f32.xlu0 %v1959
  %v1961 = vpop.xlane.xlu0 %1960
  %v1962 = vsel %vm86, %v1932, -inf
  %1963 = vmax.xlane.f32.xlu0 %v1962
  %v1964 = vpop.xlane.xlu0 %1963
  %v1965 = vsel %vm86, %v1933, -inf
  %1966 = vmax.xlane.f32.xlu0 %v1965
  %v1967 = vpop.xlane.xlu0 %1966
  %v1968 = vsel %vm86, %v1934, -inf
  %1969 = vmax.xlane.f32.xlu0 %v1968
  %v1970 = vpop.xlane.xlu0 %1969
  %v1971 = vsel %vm86, %v1935, -inf
  %1972 = vmax.xlane.f32.xlu0 %v1971
  %v1973 = vpop.xlane.xlu0 %1972
  %v1974 = vsel %vm86, %v1936, -inf
  %1975 = vmax.xlane.f32.xlu0 %v1974
  %v1976 = vpop.xlane.xlu0 %1975
  %v1977 = vsel %vm86, %v1937, -inf
  %1978 = vmax.xlane.f32.xlu0 %v1977
  %v1979 = vpop.xlane.xlu0 %1978
  %v1980 = vsel %vm86, %v1938, -inf
  %1981 = vmax.xlane.f32.xlu0 %v1980
  %v1982 = vpop.xlane.xlu0 %1981
  %v1983 = vsel %vm86, %v1939, -inf
  %1984 = vmax.xlane.f32.xlu0 %v1983
  %v1985 = vpop.xlane.xlu0 %1984
  %v1986 = vsel %vm86, %v1940, -inf
  %1987 = vmax.xlane.f32.xlu0 %v1986
  %v1988 = vpop.xlane.xlu0 %1987
  %v1989 = vsub.f32 %v1925, %v1943
  %v1990 = vsub.f32 %v1926, %v1946
  %v1991 = vsub.f32 %v1927, %v1949
  %v1992 = vsub.f32 %v1928, %v1952
  %v1993 = vsub.f32 %v1929, %v1955
  %v1994 = vsub.f32 %v1930, %v1958
  %v1995 = vsub.f32 %v1931, %v1961
  %v1996 = vsub.f32 %v1932, %v1964
  %v1997 = vsub.f32 %v1933, %v1967
  %v1998 = vsub.f32 %v1934, %v1970
  %v1999 = vsub.f32 %v1935, %v1973
  %v2000 = vsub.f32 %v1936, %v1976
  %v2001 = vsub.f32 %v1937, %v1979
  %v2002 = vsub.f32 %v1938, %v1982
  %v2003 = vsub.f32 %v1939, %v1985
  %v2004 = vsub.f32 %v1940, %v1988
  %v2005 = vmul.f32 %v1989, 1.442695
  %v2006 = vpow.pop %v2005
  %v2007 = vmul.f32 %v1990, 1.442695
  %v2008 = vpow.pop %v2007
  %v2009 = vmul.f32 %v1991, 1.442695
  %v2010 = vpow.pop %v2009
  %v2011 = vmul.f32 %v1992, 1.442695
  %v2012 = vpow.pop %v2011
  %v2013 = vmul.f32 %v1993, 1.442695
  %v2014 = vpow.pop %v2013
  %v2015 = vmul.f32 %v1994, 1.442695
  %v2016 = vpow.pop %v2015
  %v2017 = vmul.f32 %v1995, 1.442695
  %v2018 = vpow.pop %v2017
  %v2019 = vmul.f32 %v1996, 1.442695
  %v2020 = vpow.pop %v2019
  %v2021 = vmul.f32 %v1997, 1.442695
  %v2022 = vpow.pop %v2021
  %v2023 = vmul.f32 %v1998, 1.442695
  %v2024 = vpow.pop %v2023
  %v2025 = vmul.f32 %v1999, 1.442695
  %v2026 = vpow.pop %v2025
  %v2027 = vmul.f32 %v2000, 1.442695
  %v2028 = vpow.pop %v2027
  %v2029 = vmul.f32 %v2001, 1.442695
  %v2030 = vpow.pop %v2029
  %v2031 = vmul.f32 %v2002, 1.442695
  %v2032 = vpow.pop %v2031
  %v2033 = vmul.f32 %v2003, 1.442695
  %v2034 = vpow.pop %v2033
  %v2035 = vmul.f32 %v2004, 1.442695
  %v2036 = vpow.pop %v2035
  %v2037 = vsel %vm280, %v2006, 0.0
  %v2038 = vsel %vm281, %v2008, 0.0
  %v2039 = vsel %vm282, %v2010, 0.0
  %v2040 = vsel %vm283, %v2012, 0.0
  %v2041 = vsel %vm284, %v2014, 0.0
  %v2042 = vsel %vm285, %v2016, 0.0
  %v2043 = vsel %vm286, %v2018, 0.0
  %v2044 = vsel %vm287, %v2020, 0.0
  %v2045 = vsel %vm288, %v2022, 0.0
  %v2046 = vsel %vm289, %v2024, 0.0
  %v2047 = vsel %vm290, %v2026, 0.0
  %v2048 = vsel %vm291, %v2028, 0.0
  %v2049 = vsel %vm292, %v2030, 0.0
  %v2050 = vsel %vm293, %v2032, 0.0
  %v2051 = vsel %vm294, %v2034, 0.0
  %v2052 = vsel %vm295, %v2036, 0.0
  %v2053 = vsel %vm86, %v2037, 0.0
  %2054 = vadd.xlane.f32.xlu0 %v2053
  %v2055 = vpop.xlane.xlu0 %2054
  %v2056 = vsel %vm86, %v2038, 0.0
  %2057 = vadd.xlane.f32.xlu0 %v2056
  %v2058 = vpop.xlane.xlu0 %2057
  %v2059 = vsel %vm86, %v2039, 0.0
  %2060 = vadd.xlane.f32.xlu0 %v2059
  %v2061 = vpop.xlane.xlu0 %2060
  %v2062 = vsel %vm86, %v2040, 0.0
  %2063 = vadd.xlane.f32.xlu0 %v2062
  %v2064 = vpop.xlane.xlu0 %2063
  %v2065 = vsel %vm86, %v2041, 0.0
  %2066 = vadd.xlane.f32.xlu0 %v2065
  %v2067 = vpop.xlane.xlu0 %2066
  %v2068 = vsel %vm86, %v2042, 0.0
  %2069 = vadd.xlane.f32.xlu0 %v2068
  %v2070 = vpop.xlane.xlu0 %2069
  %v2071 = vsel %vm86, %v2043, 0.0
  %2072 = vadd.xlane.f32.xlu0 %v2071
  %v2073 = vpop.xlane.xlu0 %2072
  %v2074 = vsel %vm86, %v2044, 0.0
  %2075 = vadd.xlane.f32.xlu0 %v2074
  %v2076 = vpop.xlane.xlu0 %2075
  %v2077 = vsel %vm86, %v2045, 0.0
  %2078 = vadd.xlane.f32.xlu0 %v2077
  %v2079 = vpop.xlane.xlu0 %2078
  %v2080 = vsel %vm86, %v2046, 0.0
  %2081 = vadd.xlane.f32.xlu0 %v2080
  %v2082 = vpop.xlane.xlu0 %2081
  %v2083 = vsel %vm86, %v2047, 0.0
  %2084 = vadd.xlane.f32.xlu0 %v2083
  %v2085 = vpop.xlane.xlu0 %2084
  %v2086 = vsel %vm86, %v2048, 0.0
  %2087 = vadd.xlane.f32.xlu0 %v2086
  %v2088 = vpop.xlane.xlu0 %2087
  %v2089 = vsel %vm86, %v2049, 0.0
  %2090 = vadd.xlane.f32.xlu0 %v2089
  %v2091 = vpop.xlane.xlu0 %2090
  %v2092 = vsel %vm86, %v2050, 0.0
  %2093 = vadd.xlane.f32.xlu0 %v2092
  %v2094 = vpop.xlane.xlu0 %2093
  %v2095 = vsel %vm86, %v2051, 0.0
  %2096 = vadd.xlane.f32.xlu0 %v2095
  %v2097 = vpop.xlane.xlu0 %2096
  %v2098 = vsel %vm86, %v2052, 0.0
  %2099 = vadd.xlane.f32.xlu0 %v2098
  %v2100 = vpop.xlane.xlu0 %2099
  %v2101 = vrcp.pop %v2055
  %v2102 = vrcp.pop %v2058
  %v2103 = vrcp.pop %v2061
  %v2104 = vrcp.pop %v2064
  %v2105 = vrcp.pop %v2067
  %v2106 = vrcp.pop %v2070
  %v2107 = vrcp.pop %v2073
  %v2108 = vrcp.pop %v2076
  %v2109 = vrcp.pop %v2079
  %v2110 = vrcp.pop %v2082
  %v2111 = vrcp.pop %v2085
  %v2112 = vrcp.pop %v2088
  %v2113 = vrcp.pop %v2091
  %v2114 = vrcp.pop %v2094
  %v2115 = vrcp.pop %v2097
  %v2116 = vrcp.pop %v2100
  %v2117 = vmul.f32 %v2037, %v2101
  %v2118 = vmul.f32 %v2038, %v2102
  %v2119 = vmul.f32 %v2039, %v2103
  %v2120 = vmul.f32 %v2040, %v2104
  %v2121 = vmul.f32 %v2041, %v2105
  %v2122 = vmul.f32 %v2042, %v2106
  %v2123 = vmul.f32 %v2043, %v2107
  %v2124 = vmul.f32 %v2044, %v2108
  %v2125 = vmul.f32 %v2045, %v2109
  %v2126 = vmul.f32 %v2046, %v2110
  %v2127 = vmul.f32 %v2047, %v2111
  %v2128 = vmul.f32 %v2048, %v2112
  %v2129 = vmul.f32 %v2049, %v2113
  %v2130 = vmul.f32 %v2050, %v2114
  %v2131 = vmul.f32 %v2051, %v2115
  %v2132 = vmul.f32 %v2052, %v2116
  %v2134 = vsel %vm86, %v2117, 0
  %v2137 = vsel %vm86, %v2118, 0
  %v2140 = vsel %vm86, %v2119, 0
  %v2143 = vsel %vm86, %v2120, 0
  %v2146 = vsel %vm86, %v2121, 0
  %v2149 = vsel %vm86, %v2122, 0
  %v2152 = vsel %vm86, %v2123, 0
  %v2155 = vsel %vm86, %v2124, 0
  %v2158 = vsel %vm86, %v2125, 0
  %v2161 = vsel %vm86, %v2126, 0
  %v2164 = vsel %vm86, %v2127, 0
  %v2167 = vsel %vm86, %v2128, 0
  %v2170 = vsel %vm86, %v2129, 0
  %v2173 = vsel %vm86, %v2130, 0
  %v2176 = vsel %vm86, %v2131, 0
  %v2179 = vsel %vm86, %v2132, 0
  %2181 = vmatprep.subr.mxu0 0.0
  %2182 = vmatpush1.msra.mxu0 %v1481
  %2183 = vmatprep.subr.mxu0 0.0
  %2184 = vmatpush1.msra.mxu0 %v1486
  %2185 = vmatprep.subr.mxu0 0.0
  %2186 = vmatpush1.msra.mxu0 0.0
  %2187 = vmatprep.subr.mxu0 0.0
  %2188 = vmatpush1.msra.mxu0 0.0
  %2189 = vmatprep.subr.mxu0 0.0
  %2190 = vmatpush1.msra.mxu0 0.0
  %2191 = vmatprep.subr.mxu0 0.0
  %2192 = vmatpush1.msra.mxu0 0.0
  %2193 = vmatprep.subr.mxu0 0.0
  %2194 = vmatpush1.msra.mxu0 0.0
  %2195 = vmatprep.subr.mxu0 0.0
  %2196 = vmatpush1.msra.mxu0 0.0
  %2197 = vmatprep.subr.mxu0 0.0
  %2198 = vmatpush1.msra.mxu0 0.0
  %2199 = vmatprep.subr.mxu0 0.0
  %2200 = vmatpush1.msra.mxu0 0.0
  %2201 = vmatprep.subr.mxu0 0.0
  %2202 = vmatpush1.msra.mxu0 0.0
  %2203 = vmatprep.subr.mxu0 0.0
  %2204 = vmatpush1.msra.mxu0 0.0
  %2205 = vmatprep.subr.mxu0 0.0
  %2206 = vmatpush1.msra.mxu0 0.0
  %2207 = vmatprep.subr.mxu0 0.0
  %2208 = vmatpush1.msra.mxu0 0.0
  %2209 = vmatprep.subr.mxu0 0.0
  %2210 = vmatpush1.msra.mxu0 0.0
  %2211 = vmatprep.subr.mxu0 0.0
  %2212 = vmatpush1.msra.mxu0 0.0
  %2213 = vmatprep.subr.mxu0 0.0
  %2214 = vmatpush1.msra.mxu0 0.0
  %2215 = vmatprep.subr.mxu0 0.0
  %2216 = vmatpush1.msra.mxu0 0.0
  %2217 = vmatprep.subr.mxu0 0.0
  %2218 = vmatpush1.msra.mxu0 0.0
  %2219 = vmatprep.subr.mxu0 0.0
  %2220 = vmatpush1.msra.mxu0 0.0
  %2221 = vmatprep.subr.mxu0 0.0
  %2222 = vmatpush1.msra.mxu0 0.0
  %2223 = vmatprep.subr.mxu0 0.0
  %2224 = vmatpush1.msra.mxu0 0.0
  %2225 = vmatprep.subr.mxu0 0.0
  %2226 = vmatpush1.msra.mxu0 0.0
  %2227 = vmatprep.subr.mxu0 0.0
  %2228 = vmatpush1.msra.mxu0 0.0
  %2229 = vmatprep.subr.mxu0 0.0
  %2230 = vmatpush1.msra.mxu0 0.0
  %2231 = vmatprep.subr.mxu0 0.0
  %2232 = vmatpush1.msra.mxu0 0.0
  %2233 = vmatprep.subr.mxu0 0.0
  %2234 = vmatpush1.msra.mxu0 0.0
  %2235 = vmatprep.subr.mxu0 0.0
  %2236 = vmatpush1.msra.mxu0 0.0
  %2237 = vmatprep.subr.mxu0 0.0
  %2238 = vmatpush1.msra.mxu0 0.0
  %2239 = vmatprep.subr.mxu0 0.0
  %2240 = vmatpush1.msra.mxu0 0.0
  %2241 = vmatprep.subr.mxu0 0.0
  %2242 = vmatpush1.msra.mxu0 0.0
  %2243 = vmatprep.subr.mxu0 0.0
  %2244 = vmatpush1.msra.mxu0 0.0
  %2245 = vmatprep.mubr.f32.mxu0 0.0
  %2246 = vmatmul.mubr.f32.gmra.mrb[0].mxu0 %v2134
  %v2247 = vpop.f32.mrb[0].mxu0
  %v2248 = vadd.f32 0.0, %v2247
  %v2249 = vpop.f32.mrb[0].mxu0
  %2250 = vmatprep.mubr.f32.mxu0 0.0
  %2251 = vmatmul.mubr.f32.gmra.mrb[0].mxu0 %v2137
  %v2252 = vpop.f32.mrb[0].mxu0
  %v2253 = vadd.f32 0.0, %v2252
  %v2254 = vpop.f32.mrb[0].mxu0
  %2255 = vmatprep.mubr.f32.mxu0 0.0
  %2256 = vmatmul.mubr.f32.gmra.mrb[0].mxu0 %v2140
  %v2257 = vpop.f32.mrb[0].mxu0
  %v2258 = vadd.f32 0.0, %v2257
  %v2259 = vpop.f32.mrb[0].mxu0
  %2260 = vmatprep.mubr.f32.mxu0 0.0
  %2261 = vmatmul.mubr.f32.gmra.mrb[0].mxu0 %v2143
  %v2262 = vpop.f32.mrb[0].mxu0
  %v2263 = vadd.f32 0.0, %v2262
  %v2264 = vpop.f32.mrb[0].mxu0
  %2265 = vmatprep.mubr.f32.mxu0 0.0
  %2266 = vmatmul.mubr.f32.gmra.mrb[0].mxu0 %v2146
  %v2267 = vpop.f32.mrb[0].mxu0
  %v2268 = vadd.f32 0.0, %v2267
  %v2269 = vpop.f32.mrb[0].mxu0
  %2270 = vmatprep.mubr.f32.mxu0 0.0
  %2271 = vmatmul.mubr.f32.gmra.mrb[0].mxu0 %v2149
  %v2272 = vpop.f32.mrb[0].mxu0
  %v2273 = vadd.f32 0.0, %v2272
  %v2274 = vpop.f32.mrb[0].mxu0
  %2275 = vmatprep.mubr.f32.mxu0 0.0
  %2276 = vmatmul.mubr.f32.gmra.mrb[0].mxu0 %v2152
  %v2277 = vpop.f32.mrb[0].mxu0
  %v2278 = vadd.f32 0.0, %v2277
  %v2279 = vpop.f32.mrb[0].mxu0
  %2280 = vmatprep.mubr.f32.mxu0 0.0
  %2281 = vmatmul.mubr.f32.gmra.mrb[0].mxu0 %v2155
  %v2282 = vpop.f32.mrb[0].mxu0
  %v2283 = vadd.f32 0.0, %v2282
  %v2284 = vpop.f32.mrb[0].mxu0
  %2285 = vmatprep.mubr.f32.mxu0 0.0
  %2286 = vmatmul.mubr.f32.gmra.mrb[0].mxu0 %v2158
  %v2287 = vpop.f32.mrb[0].mxu0
  %v2288 = vadd.f32 0.0, %v2287
  %v2289 = vpop.f32.mrb[0].mxu0
  %2290 = vmatprep.mubr.f32.mxu0 0.0
  %2291 = vmatmul.mubr.f32.gmra.mrb[0].mxu0 %v2161
  %v2292 = vpop.f32.mrb[0].mxu0
  %v2293 = vadd.f32 0.0, %v2292
  %v2294 = vpop.f32.mrb[0].mxu0
  %2295 = vmatprep.mubr.f32.mxu0 0.0
  %2296 = vmatmul.mubr.f32.gmra.mrb[0].mxu0 %v2164
  %v2297 = vpop.f32.mrb[0].mxu0
  %v2298 = vadd.f32 0.0, %v2297
  %v2299 = vpop.f32.mrb[0].mxu0
  %2300 = vmatprep.mubr.f32.mxu0 0.0
  %2301 = vmatmul.mubr.f32.gmra.mrb[0].mxu0 %v2167
  %v2302 = vpop.f32.mrb[0].mxu0
  %v2303 = vadd.f32 0.0, %v2302
  %v2304 = vpop.f32.mrb[0].mxu0
  %2305 = vmatprep.mubr.f32.mxu0 0.0
  %2306 = vmatmul.mubr.f32.gmra.mrb[0].mxu0 %v2170
  %v2307 = vpop.f32.mrb[0].mxu0
  %v2308 = vadd.f32 0.0, %v2307
  %v2309 = vpop.f32.mrb[0].mxu0
  %2310 = vmatprep.mubr.f32.mxu0 0.0
  %2311 = vmatmul.mubr.f32.gmra.mrb[0].mxu0 %v2173
  %v2312 = vpop.f32.mrb[0].mxu0
  %v2313 = vadd.f32 0.0, %v2312
  %v2314 = vpop.f32.mrb[0].mxu0
  %2315 = vmatprep.mubr.f32.mxu0 0.0
  %2316 = vmatmul.mubr.f32.gmra.mrb[0].mxu0 %v2176
  %v2317 = vpop.f32.mrb[0].mxu0
  %v2318 = vadd.f32 0.0, %v2317
  %v2319 = vpop.f32.mrb[0].mxu0
  %2320 = vmatprep.mubr.f32.mxu0 0.0
  %2321 = vmatmul.mubr.f32.gmra.mrb[0].mxu0 %v2179
  %v2322 = vpop.f32.mrb[0].mxu0
  %v2323 = vadd.f32 0.0, %v2322
  %v2324 = vpop.f32.mrb[0].mxu0
  %2325 = vdwg.mxu0
  %v2326 = vld [vmem:[%s14] sm:$0xff]
  %v2327 = vld [vmem:[%s14 + $0x8] sm:$0xff]
  %v2328 = vld [vmem:[%s14 + $0x10] sm:$0xff]
  %v2329 = vld [vmem:[%s14 + $0x18] sm:$0xff]
  %v2330 = vld [vmem:[%s14 + $0x20] sm:$0xff]
  %v2331 = vld [vmem:[%s14 + $0x28] sm:$0xff]
  %v2332 = vld [vmem:[%s14 + $0x30] sm:$0xff]
  %v2333 = vld [vmem:[%s14 + $0x38] sm:$0xff]
  %v2334 = vld [vmem:[%s14 + $0x40] sm:$0xff]
  %v2335 = vld [vmem:[%s14 + $0x48] sm:$0xff]
  %v2336 = vld [vmem:[%s14 + $0x50] sm:$0xff]
  %v2337 = vld [vmem:[%s14 + $0x58] sm:$0xff]
  %v2338 = vld [vmem:[%s14 + $0x60] sm:$0xff]
  %v2339 = vld [vmem:[%s14 + $0x68] sm:$0xff]
  %v2340 = vld [vmem:[%s14 + $0x70] sm:$0xff]
  %v2341 = vld [vmem:[%s14 + $0x78] sm:$0xff]
  %v2342 = vmul.f32 %v2248, %v2326
  %v2343 = vmul.f32 %v2253, %v2327
  %v2344 = vmul.f32 %v2258, %v2328
  %v2345 = vmul.f32 %v2263, %v2329
  %v2346 = vmul.f32 %v2268, %v2330
  %v2347 = vmul.f32 %v2273, %v2331
  %v2348 = vmul.f32 %v2278, %v2332
  %v2349 = vmul.f32 %v2283, %v2333
  %v2350 = vmul.f32 %v2288, %v2334
  %v2351 = vmul.f32 %v2293, %v2335
  %v2352 = vmul.f32 %v2298, %v2336
  %v2353 = vmul.f32 %v2303, %v2337
  %v2354 = vmul.f32 %v2308, %v2338
  %v2355 = vmul.f32 %v2313, %v2339
  %v2356 = vmul.f32 %v2318, %v2340
  %v2357 = vmul.f32 %v2323, %v2341
  %v2358 = vld [vmem:[%s5] sm:$0x1]
  %v2360 = vlaneseq
  %v2361 = vshrl.u32 %v2360, 7
  %v2362 = vsub.s32 0, %v2361
  %v2363 = vrot.slane %v2358, %v2362
  %2365 = vmatprep.subr.mxu0 0.0
  %2366 = vmatpush1.msra.mxu0 %v2342
  %2367 = vmatprep.subr.mxu0 0.0
  %2368 = vmatpush1.msra.mxu0 %v2343
  %2369 = vmatprep.subr.mxu0 0.0
  %2370 = vmatpush1.msra.mxu0 %v2344
  %2371 = vmatprep.subr.mxu0 0.0
  %2372 = vmatpush1.msra.mxu0 %v2345
  %2373 = vmatprep.subr.mxu0 0.0
  %2374 = vmatpush1.msra.mxu0 %v2346
  %2375 = vmatprep.subr.mxu0 0.0
  %2376 = vmatpush1.msra.mxu0 %v2347
  %2377 = vmatprep.subr.mxu0 0.0
  %2378 = vmatpush1.msra.mxu0 %v2348
  %2379 = vmatprep.subr.mxu0 0.0
  %2380 = vmatpush1.msra.mxu0 %v2349
  %2381 = vmatprep.subr.mxu0 0.0
  %2382 = vmatpush1.msra.mxu0 %v2350
  %2383 = vmatprep.subr.mxu0 0.0
  %2384 = vmatpush1.msra.mxu0 %v2351
  %2385 = vmatprep.subr.mxu0 0.0
  %2386 = vmatpush1.msra.mxu0 %v2352
  %2387 = vmatprep.subr.mxu0 0.0
  %2388 = vmatpush1.msra.mxu0 %v2353
  %2389 = vmatprep.subr.mxu0 0.0
  %2390 = vmatpush1.msra.mxu0 %v2354
  %2391 = vmatprep.subr.mxu0 0.0
  %2392 = vmatpush1.msra.mxu0 %v2355
  %2393 = vmatprep.subr.mxu0 0.0
  %2394 = vmatpush1.msra.mxu0 %v2356
  %2395 = vmatprep.subr.mxu0 0.0
  %2396 = vmatpush1.msra.mxu0 %v2357
  %2397 = vmatprep.subr.mxu0 0.0
  %2398 = vmatpush1.msra.mxu0 0.0
  %2399 = vmatprep.subr.mxu0 0.0
  %2400 = vmatpush1.msra.mxu0 0.0
  %2401 = vmatprep.subr.mxu0 0.0
  %2402 = vmatpush1.msra.mxu0 0.0
  %2403 = vmatprep.subr.mxu0 0.0
  %2404 = vmatpush1.msra.mxu0 0.0
  %2405 = vmatprep.subr.mxu0 0.0
  %2406 = vmatpush1.msra.mxu0 0.0
  %2407 = vmatprep.subr.mxu0 0.0
  %2408 = vmatpush1.msra.mxu0 0.0
  %2409 = vmatprep.subr.mxu0 0.0
  %2410 = vmatpush1.msra.mxu0 0.0
  %2411 = vmatprep.subr.mxu0 0.0
  %2412 = vmatpush1.msra.mxu0 0.0
  %2413 = vmatprep.subr.mxu0 0.0
  %2414 = vmatpush1.msra.mxu0 0.0
  %2415 = vmatprep.subr.mxu0 0.0
  %2416 = vmatpush1.msra.mxu0 0.0
  %2417 = vmatprep.subr.mxu0 0.0
  %2418 = vmatpush1.msra.mxu0 0.0
  %2419 = vmatprep.subr.mxu0 0.0
  %2420 = vmatpush1.msra.mxu0 0.0
  %2421 = vmatprep.subr.mxu0 0.0
  %2422 = vmatpush1.msra.mxu0 0.0
  %2423 = vmatprep.subr.mxu0 0.0
  %2424 = vmatpush1.msra.mxu0 0.0
  %2425 = vmatprep.subr.mxu0 0.0
  %2426 = vmatpush1.msra.mxu0 0.0
  %2427 = vmatprep.subr.mxu0 0.0
  %2428 = vmatpush1.msra.mxu0 0.0
  %2429 = vmatprep.mubr.f32.mxu0 0.0
  %2430 = vmatmul.mubr.f32.gmra.mrb[0].mxu0 %v84
  %v2431 = vpop.f32.mrb[0].mxu0
  %v2432 = vadd.f32 %v2363, %v2431
  %v2433 = vpop.f32.mrb[0].mxu0
  %2434 = vmatprep.mubr.f32.mxu0 0.0
  %2435 = vmatmul.mubr.f32.gmra.mrb[0].mxu0 %v85
  %v2436 = vpop.f32.mrb[0].mxu0
  %v2437 = vadd.f32 %v2363, %v2436
  %v2438 = vpop.f32.mrb[0].mxu0
  %2439 = vdwg.mxu0
  %vm2440 = vcmp.gt.f32.partialorder %v2432, 0.0
  %vm2441 = vcmp.gt.f32.partialorder %v2437, 0.0
  %v2442 = vmul.f32 %v2432, 1.442695
  %v2443 = vpow.pop %v2442
  %v2444 = vmul.f32 %v2437, 1.442695
  %v2445 = vpow.pop %v2444
  %v2446 = vsub.f32 %v2443, 1.0
  %v2447 = vsub.f32 %v2445, 1.0
  %v2448 = vsel %vm2440, %v2432, %v2446
  %v2449 = vsel %vm2441, %v2437, %v2447
  %v2450 = vld [vmem:[%s6] sm:$0xff]
  %v2451 = vld [vmem:[%s6 + $0x8] sm:$0xff]
  %v2452 = vld [vmem:[%s6 + $0x10] sm:$0xff]
  %v2453 = vld [vmem:[%s6 + $0x18] sm:$0xff]
  %v2454 = vld [vmem:[%s6 + $0x20] sm:$0xff]
  %v2455 = vld [vmem:[%s6 + $0x28] sm:$0xff]
  %v2456 = vld [vmem:[%s6 + $0x30] sm:$0xff]
  %v2457 = vld [vmem:[%s6 + $0x38] sm:$0xff]
  %vm2458 = vcmask 523264
  %v2460 = vsel %vm2458, %v2448, 0
  %v2463 = vsel %vm2458, %v2449, 0
  %2465 = vmatprep.subr.mxu0 0.0
  %2466 = vmatpush1.msra.mxu0 %v2450
  %2467 = vmatprep.subr.mxu0 0.0
  %2468 = vmatpush1.msra.mxu0 %v2451
  %2469 = vmatprep.subr.mxu0 0.0
  %2470 = vmatpush1.msra.mxu0 %v2452
  %2471 = vmatprep.subr.mxu0 0.0
  %2472 = vmatpush1.msra.mxu0 %v2453
  %2473 = vmatprep.subr.mxu0 0.0
  %2474 = vmatpush1.msra.mxu0 %v2454
  %2475 = vmatprep.subr.mxu0 0.0
  %2476 = vmatpush1.msra.mxu0 %v2455
  %2477 = vmatprep.subr.mxu0 0.0
  %2478 = vmatpush1.msra.mxu0 %v2456
  %2479 = vmatprep.subr.mxu0 0.0
  %2480 = vmatpush1.msra.mxu0 %v2457
  %2481 = vmatprep.subr.mxu0 0.0
  %2482 = vmatpush1.msra.mxu0 0.0
  %2483 = vmatprep.subr.mxu0 0.0
  %2484 = vmatpush1.msra.mxu0 0.0
  %2485 = vmatprep.subr.mxu0 0.0
  %2486 = vmatpush1.msra.mxu0 0.0
  %2487 = vmatprep.subr.mxu0 0.0
  %2488 = vmatpush1.msra.mxu0 0.0
  %2489 = vmatprep.subr.mxu0 0.0
  %2490 = vmatpush1.msra.mxu0 0.0
  %2491 = vmatprep.subr.mxu0 0.0
  %2492 = vmatpush1.msra.mxu0 0.0
  %2493 = vmatprep.subr.mxu0 0.0
  %2494 = vmatpush1.msra.mxu0 0.0
  %2495 = vmatprep.subr.mxu0 0.0
  %2496 = vmatpush1.msra.mxu0 0.0
  %2497 = vmatprep.subr.mxu0 0.0
  %2498 = vmatpush1.msra.mxu0 0.0
  %2499 = vmatprep.subr.mxu0 0.0
  %2500 = vmatpush1.msra.mxu0 0.0
  %2501 = vmatprep.subr.mxu0 0.0
  %2502 = vmatpush1.msra.mxu0 0.0
  %2503 = vmatprep.subr.mxu0 0.0
  %2504 = vmatpush1.msra.mxu0 0.0
  %2505 = vmatprep.subr.mxu0 0.0
  %2506 = vmatpush1.msra.mxu0 0.0
  %2507 = vmatprep.subr.mxu0 0.0
  %2508 = vmatpush1.msra.mxu0 0.0
  %2509 = vmatprep.subr.mxu0 0.0
  %2510 = vmatpush1.msra.mxu0 0.0
  %2511 = vmatprep.subr.mxu0 0.0
  %2512 = vmatpush1.msra.mxu0 0.0
  %2513 = vmatprep.subr.mxu0 0.0
  %2514 = vmatpush1.msra.mxu0 0.0
  %2515 = vmatprep.subr.mxu0 0.0
  %2516 = vmatpush1.msra.mxu0 0.0
  %2517 = vmatprep.subr.mxu0 0.0
  %2518 = vmatpush1.msra.mxu0 0.0
  %2519 = vmatprep.subr.mxu0 0.0
  %2520 = vmatpush1.msra.mxu0 0.0
  %2521 = vmatprep.subr.mxu0 0.0
  %2522 = vmatpush1.msra.mxu0 0.0
  %2523 = vmatprep.subr.mxu0 0.0
  %2524 = vmatpush1.msra.mxu0 0.0
  %2525 = vmatprep.subr.mxu0 0.0
  %2526 = vmatpush1.msra.mxu0 0.0
  %2527 = vmatprep.subr.mxu0 0.0
  %2528 = vmatpush1.msra.mxu0 0.0
  %2529 = vmatprep.mubr.f32.mxu0 0.0
  %2530 = vmatmul.mubr.f32.gmra.mrb[0].mxu0 %v2460
  %v2531 = vpop.f32.mrb[0].mxu0
  %v2532 = vadd.f32 0.0, %v2531
  %v2533 = vpop.f32.mrb[0].mxu0
  %2534 = vmatprep.mubr.f32.mxu0 0.0
  %2535 = vmatmul.mubr.f32.gmra.mrb[0].mxu0 %v2463
  %v2536 = vpop.f32.mrb[0].mxu0
  %v2537 = vadd.f32 0.0, %v2536
  %v2538 = vpop.f32.mrb[0].mxu0
  %2539 = vdwg.mxu0
  %2542 = vrot.lane.b32.xlu0 %v2532, 64
  %v2543 = vpop.permute.xlu0 %2542
  %2544 = vrot.lane.b32.xlu0 %v2537, 64
  %v2545 = vpop.permute.xlu0 %2544
  %v2546 = vsel %vm392, %v2543, 0
  %v2548 = vsel %vm392, %v2545, 0
  %2550 = vmatprep.subr.mxu0 0.0
  %2551 = vmatpush1.xpose.msra.mxu0 %v2546
  %2552 = vmatprep.subr.mxu0 0.0
  %2553 = vmatpush1.xpose.msra.mxu0 %v2548
  %2554 = vmatprep.subr.mxu0 0.0
  %2555 = vmatpush1.xpose.msra.mxu0 0.0
  %2556 = vmatprep.subr.mxu0 0.0
  %2557 = vmatpush1.xpose.msra.mxu0 0.0
  %2558 = vmatprep.subr.mxu0 0.0
  %2559 = vmatpush1.xpose.msra.mxu0 0.0
  %2560 = vmatprep.subr.mxu0 0.0
  %2561 = vmatpush1.xpose.msra.mxu0 0.0
  %2562 = vmatprep.subr.mxu0 0.0
  %2563 = vmatpush1.xpose.msra.mxu0 0.0
  %2564 = vmatprep.subr.mxu0 0.0
  %2565 = vmatpush1.xpose.msra.mxu0 0.0
  %2566 = vmatprep.subr.mxu0 0.0
  %2567 = vmatpush1.xpose.msra.mxu0 0.0
  %2568 = vmatprep.subr.mxu0 0.0
  %2569 = vmatpush1.xpose.msra.mxu0 0.0
  %2570 = vmatprep.subr.mxu0 0.0
  %2571 = vmatpush1.xpose.msra.mxu0 0.0
  %2572 = vmatprep.subr.mxu0 0.0
  %2573 = vmatpush1.xpose.msra.mxu0 0.0
  %2574 = vmatprep.subr.mxu0 0.0
  %2575 = vmatpush1.xpose.msra.mxu0 0.0
  %2576 = vmatprep.subr.mxu0 0.0
  %2577 = vmatpush1.xpose.msra.mxu0 0.0
  %2578 = vmatprep.subr.mxu0 0.0
  %2579 = vmatpush1.xpose.msra.mxu0 0.0
  %2580 = vmatprep.subr.mxu0 0.0
  %2581 = vmatpush1.xpose.msra.mxu0 0.0
  %2582 = vmatprep.subr.mxu0 0.0
  %2583 = vmatpush1.xpose.msra.mxu0 0.0
  %2584 = vmatprep.subr.mxu0 0.0
  %2585 = vmatpush1.xpose.msra.mxu0 0.0
  %2586 = vmatprep.subr.mxu0 0.0
  %2587 = vmatpush1.xpose.msra.mxu0 0.0
  %2588 = vmatprep.subr.mxu0 0.0
  %2589 = vmatpush1.xpose.msra.mxu0 0.0
  %2590 = vmatprep.subr.mxu0 0.0
  %2591 = vmatpush1.xpose.msra.mxu0 0.0
  %2592 = vmatprep.subr.mxu0 0.0
  %2593 = vmatpush1.xpose.msra.mxu0 0.0
  %2594 = vmatprep.subr.mxu0 0.0
  %2595 = vmatpush1.xpose.msra.mxu0 0.0
  %2596 = vmatprep.subr.mxu0 0.0
  %2597 = vmatpush1.xpose.msra.mxu0 0.0
  %2598 = vmatprep.subr.mxu0 0.0
  %2599 = vmatpush1.xpose.msra.mxu0 0.0
  %2600 = vmatprep.subr.mxu0 0.0
  %2601 = vmatpush1.xpose.msra.mxu0 0.0
  %2602 = vmatprep.subr.mxu0 0.0
  %2603 = vmatpush1.xpose.msra.mxu0 0.0
  %2604 = vmatprep.subr.mxu0 0.0
  %2605 = vmatpush1.xpose.msra.mxu0 0.0
  %2606 = vmatprep.subr.mxu0 0.0
  %2607 = vmatpush1.xpose.msra.mxu0 0.0
  %2608 = vmatprep.subr.mxu0 0.0
  %2609 = vmatpush1.xpose.msra.mxu0 0.0
  %2610 = vmatprep.subr.mxu0 0.0
  %2611 = vmatpush1.xpose.msra.mxu0 0.0
  %2612 = vmatprep.subr.mxu0 0.0
  %2613 = vmatpush1.xpose.msra.mxu0 0.0
  %2614 = vmatprep.mubr.f32.mxu0 0.0
  %2615 = vmatmul.mubr.f32.gmra.mrb[0].mxu0 %v394
  %v2616 = vpop.f32.mrb[0].mxu0
  %v2617 = vadd.f32 0.0, %v2616
  %v2618 = vpop.f32.mrb[0].mxu0
  %2619 = vmatprep.mubr.f32.mxu0 0.0
  %2620 = vmatmul.mubr.f32.gmra.mrb[0].mxu0 %v397
  %v2621 = vpop.f32.mrb[0].mxu0
  %v2622 = vadd.f32 0.0, %v2621
  %v2623 = vpop.f32.mrb[0].mxu0
  %2624 = vmatprep.mubr.f32.mxu0 0.0
  %2625 = vmatmul.mubr.f32.gmra.mrb[0].mxu0 %v400
  %v2626 = vpop.f32.mrb[0].mxu0
  %v2627 = vadd.f32 0.0, %v2626
  %v2628 = vpop.f32.mrb[0].mxu0
  %2629 = vmatprep.mubr.f32.mxu0 0.0
  %2630 = vmatmul.mubr.f32.gmra.mrb[0].mxu0 %v403
  %v2631 = vpop.f32.mrb[0].mxu0
  %v2632 = vadd.f32 0.0, %v2631
  %v2633 = vpop.f32.mrb[0].mxu0
  %2634 = vmatprep.mubr.f32.mxu0 0.0
  %2635 = vmatmul.mubr.f32.gmra.mrb[0].mxu0 %v406
  %v2636 = vpop.f32.mrb[0].mxu0
  %v2637 = vadd.f32 0.0, %v2636
  %v2638 = vpop.f32.mrb[0].mxu0
  %2639 = vmatprep.mubr.f32.mxu0 0.0
  %2640 = vmatmul.mubr.f32.gmra.mrb[0].mxu0 %v409
  %v2641 = vpop.f32.mrb[0].mxu0
  %v2642 = vadd.f32 0.0, %v2641
  %v2643 = vpop.f32.mrb[0].mxu0
  %2644 = vmatprep.mubr.f32.mxu0 0.0
  %2645 = vmatmul.mubr.f32.gmra.mrb[0].mxu0 %v412
  %v2646 = vpop.f32.mrb[0].mxu0
  %v2647 = vadd.f32 0.0, %v2646
  %v2648 = vpop.f32.mrb[0].mxu0
  %2649 = vmatprep.mubr.f32.mxu0 0.0
  %2650 = vmatmul.mubr.f32.gmra.mrb[0].mxu0 %v415
  %v2651 = vpop.f32.mrb[0].mxu0
  %v2652 = vadd.f32 0.0, %v2651
  %v2653 = vpop.f32.mrb[0].mxu0
  %2654 = vmatprep.mubr.f32.mxu0 0.0
  %2655 = vmatmul.mubr.f32.gmra.mrb[0].mxu0 %v418
  %v2656 = vpop.f32.mrb[0].mxu0
  %v2657 = vadd.f32 0.0, %v2656
  %v2658 = vpop.f32.mrb[0].mxu0
  %2659 = vmatprep.mubr.f32.mxu0 0.0
  %2660 = vmatmul.mubr.f32.gmra.mrb[0].mxu0 %v421
  %v2661 = vpop.f32.mrb[0].mxu0
  %v2662 = vadd.f32 0.0, %v2661
  %v2663 = vpop.f32.mrb[0].mxu0
  %2664 = vmatprep.mubr.f32.mxu0 0.0
  %2665 = vmatmul.mubr.f32.gmra.mrb[0].mxu0 %v424
  %v2666 = vpop.f32.mrb[0].mxu0
  %v2667 = vadd.f32 0.0, %v2666
  %v2668 = vpop.f32.mrb[0].mxu0
  %2669 = vmatprep.mubr.f32.mxu0 0.0
  %2670 = vmatmul.mubr.f32.gmra.mrb[0].mxu0 %v427
  %v2671 = vpop.f32.mrb[0].mxu0
  %v2672 = vadd.f32 0.0, %v2671
  %v2673 = vpop.f32.mrb[0].mxu0
  %2674 = vmatprep.mubr.f32.mxu0 0.0
  %2675 = vmatmul.mubr.f32.gmra.mrb[0].mxu0 %v430
  %v2676 = vpop.f32.mrb[0].mxu0
  %v2677 = vadd.f32 0.0, %v2676
  %v2678 = vpop.f32.mrb[0].mxu0
  %2679 = vmatprep.mubr.f32.mxu0 0.0
  %2680 = vmatmul.mubr.f32.gmra.mrb[0].mxu0 %v433
  %v2681 = vpop.f32.mrb[0].mxu0
  %v2682 = vadd.f32 0.0, %v2681
  %v2683 = vpop.f32.mrb[0].mxu0
  %2684 = vmatprep.mubr.f32.mxu0 0.0
  %2685 = vmatmul.mubr.f32.gmra.mrb[0].mxu0 %v436
  %v2686 = vpop.f32.mrb[0].mxu0
  %v2687 = vadd.f32 0.0, %v2686
  %v2688 = vpop.f32.mrb[0].mxu0
  %2689 = vmatprep.mubr.f32.mxu0 0.0
  %2690 = vmatmul.mubr.f32.gmra.mrb[0].mxu0 %v439
  %v2691 = vpop.f32.mrb[0].mxu0
  %v2692 = vadd.f32 0.0, %v2691
  %v2693 = vpop.f32.mrb[0].mxu0
  %2694 = vdwg.mxu0
  %2695 = vrot.lane.b32.xlu0 %v2532, 56
  %v2696 = vpop.permute.xlu0 %2695
  %2697 = vrot.lane.b32.xlu0 %v2537, 56
  %v2698 = vpop.permute.xlu0 %2697
  %v2699 = vsel %vm392, %v2696, 0
  %v2701 = vsel %vm392, %v2698, 0
  %2703 = vmatprep.subr.mxu0 0.0
  %2704 = vmatpush1.xpose.msra.mxu0 %v2699
  %2705 = vmatprep.subr.mxu0 0.0
  %2706 = vmatpush1.xpose.msra.mxu0 %v2701
  %2707 = vmatprep.subr.mxu0 0.0
  %2708 = vmatpush1.xpose.msra.mxu0 0.0
  %2709 = vmatprep.subr.mxu0 0.0
  %2710 = vmatpush1.xpose.msra.mxu0 0.0
  %2711 = vmatprep.subr.mxu0 0.0
  %2712 = vmatpush1.xpose.msra.mxu0 0.0
  %2713 = vmatprep.subr.mxu0 0.0
  %2714 = vmatpush1.xpose.msra.mxu0 0.0
  %2715 = vmatprep.subr.mxu0 0.0
  %2716 = vmatpush1.xpose.msra.mxu0 0.0
  %2717 = vmatprep.subr.mxu0 0.0
  %2718 = vmatpush1.xpose.msra.mxu0 0.0
  %2719 = vmatprep.subr.mxu0 0.0
  %2720 = vmatpush1.xpose.msra.mxu0 0.0
  %2721 = vmatprep.subr.mxu0 0.0
  %2722 = vmatpush1.xpose.msra.mxu0 0.0
  %2723 = vmatprep.subr.mxu0 0.0
  %2724 = vmatpush1.xpose.msra.mxu0 0.0
  %2725 = vmatprep.subr.mxu0 0.0
  %2726 = vmatpush1.xpose.msra.mxu0 0.0
  %2727 = vmatprep.subr.mxu0 0.0
  %2728 = vmatpush1.xpose.msra.mxu0 0.0
  %2729 = vmatprep.subr.mxu0 0.0
  %2730 = vmatpush1.xpose.msra.mxu0 0.0
  %2731 = vmatprep.subr.mxu0 0.0
  %2732 = vmatpush1.xpose.msra.mxu0 0.0
  %2733 = vmatprep.subr.mxu0 0.0
  %2734 = vmatpush1.xpose.msra.mxu0 0.0
  %2735 = vmatprep.subr.mxu0 0.0
  %2736 = vmatpush1.xpose.msra.mxu0 0.0
  %2737 = vmatprep.subr.mxu0 0.0
  %2738 = vmatpush1.xpose.msra.mxu0 0.0
  %2739 = vmatprep.subr.mxu0 0.0
  %2740 = vmatpush1.xpose.msra.mxu0 0.0
  %2741 = vmatprep.subr.mxu0 0.0
  %2742 = vmatpush1.xpose.msra.mxu0 0.0
  %2743 = vmatprep.subr.mxu0 0.0
  %2744 = vmatpush1.xpose.msra.mxu0 0.0
  %2745 = vmatprep.subr.mxu0 0.0
  %2746 = vmatpush1.xpose.msra.mxu0 0.0
  %2747 = vmatprep.subr.mxu0 0.0
  %2748 = vmatpush1.xpose.msra.mxu0 0.0
  %2749 = vmatprep.subr.mxu0 0.0
  %2750 = vmatpush1.xpose.msra.mxu0 0.0
  %2751 = vmatprep.subr.mxu0 0.0
  %2752 = vmatpush1.xpose.msra.mxu0 0.0
  %2753 = vmatprep.subr.mxu0 0.0
  %2754 = vmatpush1.xpose.msra.mxu0 0.0
  %2755 = vmatprep.subr.mxu0 0.0
  %2756 = vmatpush1.xpose.msra.mxu0 0.0
  %2757 = vmatprep.subr.mxu0 0.0
  %2758 = vmatpush1.xpose.msra.mxu0 0.0
  %2759 = vmatprep.subr.mxu0 0.0
  %2760 = vmatpush1.xpose.msra.mxu0 0.0
  %2761 = vmatprep.subr.mxu0 0.0
  %2762 = vmatpush1.xpose.msra.mxu0 0.0
  %2763 = vmatprep.subr.mxu0 0.0
  %2764 = vmatpush1.xpose.msra.mxu0 0.0
  %2765 = vmatprep.subr.mxu0 0.0
  %2766 = vmatpush1.xpose.msra.mxu0 0.0
  %2767 = vmatprep.mubr.f32.mxu0 0.0
  %2768 = vmatmul.mubr.f32.gmra.mrb[0].mxu0 %v394
  %v2769 = vpop.f32.mrb[0].mxu0
  %v2770 = vadd.f32 0.0, %v2769
  %v2771 = vpop.f32.mrb[0].mxu0
  %2772 = vmatprep.mubr.f32.mxu0 0.0
  %2773 = vmatmul.mubr.f32.gmra.mrb[0].mxu0 %v397
  %v2774 = vpop.f32.mrb[0].mxu0
  %v2775 = vadd.f32 0.0, %v2774
  %v2776 = vpop.f32.mrb[0].mxu0
  %2777 = vmatprep.mubr.f32.mxu0 0.0
  %2778 = vmatmul.mubr.f32.gmra.mrb[0].mxu0 %v400
  %v2779 = vpop.f32.mrb[0].mxu0
  %v2780 = vadd.f32 0.0, %v2779
  %v2781 = vpop.f32.mrb[0].mxu0
  %2782 = vmatprep.mubr.f32.mxu0 0.0
  %2783 = vmatmul.mubr.f32.gmra.mrb[0].mxu0 %v403
  %v2784 = vpop.f32.mrb[0].mxu0
  %v2785 = vadd.f32 0.0, %v2784
  %v2786 = vpop.f32.mrb[0].mxu0
  %2787 = vmatprep.mubr.f32.mxu0 0.0
  %2788 = vmatmul.mubr.f32.gmra.mrb[0].mxu0 %v406
  %v2789 = vpop.f32.mrb[0].mxu0
  %v2790 = vadd.f32 0.0, %v2789
  %v2791 = vpop.f32.mrb[0].mxu0
  %2792 = vmatprep.mubr.f32.mxu0 0.0
  %2793 = vmatmul.mubr.f32.gmra.mrb[0].mxu0 %v409
  %v2794 = vpop.f32.mrb[0].mxu0
  %v2795 = vadd.f32 0.0, %v2794
  %v2796 = vpop.f32.mrb[0].mxu0
  %2797 = vmatprep.mubr.f32.mxu0 0.0
  %2798 = vmatmul.mubr.f32.gmra.mrb[0].mxu0 %v412
  %v2799 = vpop.f32.mrb[0].mxu0
  %v2800 = vadd.f32 0.0, %v2799
  %v2801 = vpop.f32.mrb[0].mxu0
  %2802 = vmatprep.mubr.f32.mxu0 0.0
  %2803 = vmatmul.mubr.f32.gmra.mrb[0].mxu0 %v415
  %v2804 = vpop.f32.mrb[0].mxu0
  %v2805 = vadd.f32 0.0, %v2804
  %v2806 = vpop.f32.mrb[0].mxu0
  %2807 = vmatprep.mubr.f32.mxu0 0.0
  %2808 = vmatmul.mubr.f32.gmra.mrb[0].mxu0 %v418
  %v2809 = vpop.f32.mrb[0].mxu0
  %v2810 = vadd.f32 0.0, %v2809
  %v2811 = vpop.f32.mrb[0].mxu0
  %2812 = vmatprep.mubr.f32.mxu0 0.0
  %2813 = vmatmul.mubr.f32.gmra.mrb[0].mxu0 %v421
  %v2814 = vpop.f32.mrb[0].mxu0
  %v2815 = vadd.f32 0.0, %v2814
  %v2816 = vpop.f32.mrb[0].mxu0
  %2817 = vmatprep.mubr.f32.mxu0 0.0
  %2818 = vmatmul.mubr.f32.gmra.mrb[0].mxu0 %v424
  %v2819 = vpop.f32.mrb[0].mxu0
  %v2820 = vadd.f32 0.0, %v2819
  %v2821 = vpop.f32.mrb[0].mxu0
  %2822 = vmatprep.mubr.f32.mxu0 0.0
  %2823 = vmatmul.mubr.f32.gmra.mrb[0].mxu0 %v427
  %v2824 = vpop.f32.mrb[0].mxu0
  %v2825 = vadd.f32 0.0, %v2824
  %v2826 = vpop.f32.mrb[0].mxu0
  %2827 = vmatprep.mubr.f32.mxu0 0.0
  %2828 = vmatmul.mubr.f32.gmra.mrb[0].mxu0 %v430
  %v2829 = vpop.f32.mrb[0].mxu0
  %v2830 = vadd.f32 0.0, %v2829
  %v2831 = vpop.f32.mrb[0].mxu0
  %2832 = vmatprep.mubr.f32.mxu0 0.0
  %2833 = vmatmul.mubr.f32.gmra.mrb[0].mxu0 %v433
  %v2834 = vpop.f32.mrb[0].mxu0
  %v2835 = vadd.f32 0.0, %v2834
  %v2836 = vpop.f32.mrb[0].mxu0
  %2837 = vmatprep.mubr.f32.mxu0 0.0
  %2838 = vmatmul.mubr.f32.gmra.mrb[0].mxu0 %v436
  %v2839 = vpop.f32.mrb[0].mxu0
  %v2840 = vadd.f32 0.0, %v2839
  %v2841 = vpop.f32.mrb[0].mxu0
  %2842 = vmatprep.mubr.f32.mxu0 0.0
  %2843 = vmatmul.mubr.f32.gmra.mrb[0].mxu0 %v439
  %v2844 = vpop.f32.mrb[0].mxu0
  %v2845 = vadd.f32 0.0, %v2844
  %v2846 = vpop.f32.mrb[0].mxu0
  %2847 = vdwg.mxu0
  %v2848 = vmul.f32 %v2770, %v68
  %v2849 = vmul.f32 %v2775, %v69
  %v2850 = vmul.f32 %v2780, %v70
  %v2851 = vmul.f32 %v2785, %v71
  %v2852 = vmul.f32 %v2790, %v72
  %v2853 = vmul.f32 %v2795, %v73
  %v2854 = vmul.f32 %v2800, %v74
  %v2855 = vmul.f32 %v2805, %v75
  %v2856 = vmul.f32 %v2810, %v76
  %v2857 = vmul.f32 %v2815, %v77
  %v2858 = vmul.f32 %v2820, %v78
  %v2859 = vmul.f32 %v2825, %v79
  %v2860 = vmul.f32 %v2830, %v80
  %v2861 = vmul.f32 %v2835, %v81
  %v2862 = vmul.f32 %v2840, %v82
  %v2863 = vmul.f32 %v2845, %v83
  %v2864 = vsel %vm86, %v2848, 0.0
  %2865 = vadd.xlane.f32.xlu0 %v2864
  %v2866 = vpop.xlane.xlu0 %2865
  %v2867 = vsel %vm86, %v2849, 0.0
  %2868 = vadd.xlane.f32.xlu0 %v2867
  %v2869 = vpop.xlane.xlu0 %2868
  %v2870 = vsel %vm86, %v2850, 0.0
  %2871 = vadd.xlane.f32.xlu0 %v2870
  %v2872 = vpop.xlane.xlu0 %2871
  %v2873 = vsel %vm86, %v2851, 0.0
  %2874 = vadd.xlane.f32.xlu0 %v2873
  %v2875 = vpop.xlane.xlu0 %2874
  %v2876 = vsel %vm86, %v2852, 0.0
  %2877 = vadd.xlane.f32.xlu0 %v2876
  %v2878 = vpop.xlane.xlu0 %2877
  %v2879 = vsel %vm86, %v2853, 0.0
  %2880 = vadd.xlane.f32.xlu0 %v2879
  %v2881 = vpop.xlane.xlu0 %2880
  %v2882 = vsel %vm86, %v2854, 0.0
  %2883 = vadd.xlane.f32.xlu0 %v2882
  %v2884 = vpop.xlane.xlu0 %2883
  %v2885 = vsel %vm86, %v2855, 0.0
  %2886 = vadd.xlane.f32.xlu0 %v2885
  %v2887 = vpop.xlane.xlu0 %2886
  %v2888 = vsel %vm86, %v2856, 0.0
  %2889 = vadd.xlane.f32.xlu0 %v2888
  %v2890 = vpop.xlane.xlu0 %2889
  %v2891 = vsel %vm86, %v2857, 0.0
  %2892 = vadd.xlane.f32.xlu0 %v2891
  %v2893 = vpop.xlane.xlu0 %2892
  %v2894 = vsel %vm86, %v2858, 0.0
  %2895 = vadd.xlane.f32.xlu0 %v2894
  %v2896 = vpop.xlane.xlu0 %2895
  %v2897 = vsel %vm86, %v2859, 0.0
  %2898 = vadd.xlane.f32.xlu0 %v2897
  %v2899 = vpop.xlane.xlu0 %2898
  %v2900 = vsel %vm86, %v2860, 0.0
  %2901 = vadd.xlane.f32.xlu0 %v2900
  %v2902 = vpop.xlane.xlu0 %2901
  %v2903 = vsel %vm86, %v2861, 0.0
  %2904 = vadd.xlane.f32.xlu0 %v2903
  %v2905 = vpop.xlane.xlu0 %2904
  %v2906 = vsel %vm86, %v2862, 0.0
  %2907 = vadd.xlane.f32.xlu0 %v2906
  %v2908 = vpop.xlane.xlu0 %2907
  %v2909 = vsel %vm86, %v2863, 0.0
  %2910 = vadd.xlane.f32.xlu0 %v2909
  %v2911 = vpop.xlane.xlu0 %2910
  %v2912 = vadd.f32 %v2866, %v2617
  %v2913 = vadd.f32 %v2869, %v2622
  %v2914 = vadd.f32 %v2872, %v2627
  %v2915 = vadd.f32 %v2875, %v2632
  %v2916 = vadd.f32 %v2878, %v2637
  %v2917 = vadd.f32 %v2881, %v2642
  %v2918 = vadd.f32 %v2884, %v2647
  %v2919 = vadd.f32 %v2887, %v2652
  %v2920 = vadd.f32 %v2890, %v2657
  %v2921 = vadd.f32 %v2893, %v2662
  %v2922 = vadd.f32 %v2896, %v2667
  %v2923 = vadd.f32 %v2899, %v2672
  %v2924 = vadd.f32 %v2902, %v2677
  %v2925 = vadd.f32 %v2905, %v2682
  %v2926 = vadd.f32 %v2908, %v2687
  %v2927 = vadd.f32 %v2911, %v2692
  %vm2928 = vcmp.gt.f32.partialorder %v2912, 0.0
  %vm2929 = vcmp.gt.f32.partialorder %v2913, 0.0
  %vm2930 = vcmp.gt.f32.partialorder %v2914, 0.0
  %vm2931 = vcmp.gt.f32.partialorder %v2915, 0.0
  %vm2932 = vcmp.gt.f32.partialorder %v2916, 0.0
  %vm2933 = vcmp.gt.f32.partialorder %v2917, 0.0
  %vm2934 = vcmp.gt.f32.partialorder %v2918, 0.0
  %vm2935 = vcmp.gt.f32.partialorder %v2919, 0.0
  %vm2936 = vcmp.gt.f32.partialorder %v2920, 0.0
  %vm2937 = vcmp.gt.f32.partialorder %v2921, 0.0
  %vm2938 = vcmp.gt.f32.partialorder %v2922, 0.0
  %vm2939 = vcmp.gt.f32.partialorder %v2923, 0.0
  %vm2940 = vcmp.gt.f32.partialorder %v2924, 0.0
  %vm2941 = vcmp.gt.f32.partialorder %v2925, 0.0
  %vm2942 = vcmp.gt.f32.partialorder %v2926, 0.0
  %vm2943 = vcmp.gt.f32.partialorder %v2927, 0.0
  %v2944 = vmul.f32 %v2912, 0.2
  %v2945 = vmul.f32 %v2913, 0.2
  %v2946 = vmul.f32 %v2914, 0.2
  %v2947 = vmul.f32 %v2915, 0.2
  %v2948 = vmul.f32 %v2916, 0.2
  %v2949 = vmul.f32 %v2917, 0.2
  %v2950 = vmul.f32 %v2918, 0.2
  %v2951 = vmul.f32 %v2919, 0.2
  %v2952 = vmul.f32 %v2920, 0.2
  %v2953 = vmul.f32 %v2921, 0.2
  %v2954 = vmul.f32 %v2922, 0.2
  %v2955 = vmul.f32 %v2923, 0.2
  %v2956 = vmul.f32 %v2924, 0.2
  %v2957 = vmul.f32 %v2925, 0.2
  %v2958 = vmul.f32 %v2926, 0.2
  %v2959 = vmul.f32 %v2927, 0.2
  %v2960 = vsel %vm2928, %v2912, %v2944
  %v2961 = vsel %vm2929, %v2913, %v2945
  %v2962 = vsel %vm2930, %v2914, %v2946
  %v2963 = vsel %vm2931, %v2915, %v2947
  %v2964 = vsel %vm2932, %v2916, %v2948
  %v2965 = vsel %vm2933, %v2917, %v2949
  %v2966 = vsel %vm2934, %v2918, %v2950
  %v2967 = vsel %vm2935, %v2919, %v2951
  %v2968 = vsel %vm2936, %v2920, %v2952
  %v2969 = vsel %vm2937, %v2921, %v2953
  %v2970 = vsel %vm2938, %v2922, %v2954
  %v2971 = vsel %vm2939, %v2923, %v2955
  %v2972 = vsel %vm2940, %v2924, %v2956
  %v2973 = vsel %vm2941, %v2925, %v2957
  %v2974 = vsel %vm2942, %v2926, %v2958
  %v2975 = vsel %vm2943, %v2927, %v2959
  %v2976 = vsel %vm280, %v2960, -1e+30
  %v2977 = vsel %vm281, %v2961, -1e+30
  %v2978 = vsel %vm282, %v2962, -1e+30
  %v2979 = vsel %vm283, %v2963, -1e+30
  %v2980 = vsel %vm284, %v2964, -1e+30
  %v2981 = vsel %vm285, %v2965, -1e+30
  %v2982 = vsel %vm286, %v2966, -1e+30
  %v2983 = vsel %vm287, %v2967, -1e+30
  %v2984 = vsel %vm288, %v2968, -1e+30
  %v2985 = vsel %vm289, %v2969, -1e+30
  %v2986 = vsel %vm290, %v2970, -1e+30
  %v2987 = vsel %vm291, %v2971, -1e+30
  %v2988 = vsel %vm292, %v2972, -1e+30
  %v2989 = vsel %vm293, %v2973, -1e+30
  %v2990 = vsel %vm294, %v2974, -1e+30
  %v2991 = vsel %vm295, %v2975, -1e+30
  %v2992 = vsel %vm86, %v2976, -inf
  %2993 = vmax.xlane.f32.xlu0 %v2992
  %v2994 = vpop.xlane.xlu0 %2993
  %v2995 = vsel %vm86, %v2977, -inf
  %2996 = vmax.xlane.f32.xlu0 %v2995
  %v2997 = vpop.xlane.xlu0 %2996
  %v2998 = vsel %vm86, %v2978, -inf
  %2999 = vmax.xlane.f32.xlu0 %v2998
  %v3000 = vpop.xlane.xlu0 %2999
  %v3001 = vsel %vm86, %v2979, -inf
  %3002 = vmax.xlane.f32.xlu0 %v3001
  %v3003 = vpop.xlane.xlu0 %3002
  %v3004 = vsel %vm86, %v2980, -inf
  %3005 = vmax.xlane.f32.xlu0 %v3004
  %v3006 = vpop.xlane.xlu0 %3005
  %v3007 = vsel %vm86, %v2981, -inf
  %3008 = vmax.xlane.f32.xlu0 %v3007
  %v3009 = vpop.xlane.xlu0 %3008
  %v3010 = vsel %vm86, %v2982, -inf
  %3011 = vmax.xlane.f32.xlu0 %v3010
  %v3012 = vpop.xlane.xlu0 %3011
  %v3013 = vsel %vm86, %v2983, -inf
  %3014 = vmax.xlane.f32.xlu0 %v3013
  %v3015 = vpop.xlane.xlu0 %3014
  %v3016 = vsel %vm86, %v2984, -inf
  %3017 = vmax.xlane.f32.xlu0 %v3016
  %v3018 = vpop.xlane.xlu0 %3017
  %v3019 = vsel %vm86, %v2985, -inf
  %3020 = vmax.xlane.f32.xlu0 %v3019
  %v3021 = vpop.xlane.xlu0 %3020
  %v3022 = vsel %vm86, %v2986, -inf
  %3023 = vmax.xlane.f32.xlu0 %v3022
  %v3024 = vpop.xlane.xlu0 %3023
  %v3025 = vsel %vm86, %v2987, -inf
  %3026 = vmax.xlane.f32.xlu0 %v3025
  %v3027 = vpop.xlane.xlu0 %3026
  %v3028 = vsel %vm86, %v2988, -inf
  %3029 = vmax.xlane.f32.xlu0 %v3028
  %v3030 = vpop.xlane.xlu0 %3029
  %v3031 = vsel %vm86, %v2989, -inf
  %3032 = vmax.xlane.f32.xlu0 %v3031
  %v3033 = vpop.xlane.xlu0 %3032
  %v3034 = vsel %vm86, %v2990, -inf
  %3035 = vmax.xlane.f32.xlu0 %v3034
  %v3036 = vpop.xlane.xlu0 %3035
  %v3037 = vsel %vm86, %v2991, -inf
  %3038 = vmax.xlane.f32.xlu0 %v3037
  %v3039 = vpop.xlane.xlu0 %3038
  %v3040 = vsub.f32 %v2976, %v2994
  %v3041 = vsub.f32 %v2977, %v2997
  %v3042 = vsub.f32 %v2978, %v3000
  %v3043 = vsub.f32 %v2979, %v3003
  %v3044 = vsub.f32 %v2980, %v3006
  %v3045 = vsub.f32 %v2981, %v3009
  %v3046 = vsub.f32 %v2982, %v3012
  %v3047 = vsub.f32 %v2983, %v3015
  %v3048 = vsub.f32 %v2984, %v3018
  %v3049 = vsub.f32 %v2985, %v3021
  %v3050 = vsub.f32 %v2986, %v3024
  %v3051 = vsub.f32 %v2987, %v3027
  %v3052 = vsub.f32 %v2988, %v3030
  %v3053 = vsub.f32 %v2989, %v3033
  %v3054 = vsub.f32 %v2990, %v3036
  %v3055 = vsub.f32 %v2991, %v3039
  %v3056 = vmul.f32 %v3040, 1.442695
  %v3057 = vpow.pop %v3056
  %v3058 = vmul.f32 %v3041, 1.442695
  %v3059 = vpow.pop %v3058
  %v3060 = vmul.f32 %v3042, 1.442695
  %v3061 = vpow.pop %v3060
  %v3062 = vmul.f32 %v3043, 1.442695
  %v3063 = vpow.pop %v3062
  %v3064 = vmul.f32 %v3044, 1.442695
  %v3065 = vpow.pop %v3064
  %v3066 = vmul.f32 %v3045, 1.442695
  %v3067 = vpow.pop %v3066
  %v3068 = vmul.f32 %v3046, 1.442695
  %v3069 = vpow.pop %v3068
  %v3070 = vmul.f32 %v3047, 1.442695
  %v3071 = vpow.pop %v3070
  %v3072 = vmul.f32 %v3048, 1.442695
  %v3073 = vpow.pop %v3072
  %v3074 = vmul.f32 %v3049, 1.442695
  %v3075 = vpow.pop %v3074
  %v3076 = vmul.f32 %v3050, 1.442695
  %v3077 = vpow.pop %v3076
  %v3078 = vmul.f32 %v3051, 1.442695
  %v3079 = vpow.pop %v3078
  %v3080 = vmul.f32 %v3052, 1.442695
  %v3081 = vpow.pop %v3080
  %v3082 = vmul.f32 %v3053, 1.442695
  %v3083 = vpow.pop %v3082
  %v3084 = vmul.f32 %v3054, 1.442695
  %v3085 = vpow.pop %v3084
  %v3086 = vmul.f32 %v3055, 1.442695
  %v3087 = vpow.pop %v3086
  %v3088 = vsel %vm280, %v3057, 0.0
  %v3089 = vsel %vm281, %v3059, 0.0
  %v3090 = vsel %vm282, %v3061, 0.0
  %v3091 = vsel %vm283, %v3063, 0.0
  %v3092 = vsel %vm284, %v3065, 0.0
  %v3093 = vsel %vm285, %v3067, 0.0
  %v3094 = vsel %vm286, %v3069, 0.0
  %v3095 = vsel %vm287, %v3071, 0.0
  %v3096 = vsel %vm288, %v3073, 0.0
  %v3097 = vsel %vm289, %v3075, 0.0
  %v3098 = vsel %vm290, %v3077, 0.0
  %v3099 = vsel %vm291, %v3079, 0.0
  %v3100 = vsel %vm292, %v3081, 0.0
  %v3101 = vsel %vm293, %v3083, 0.0
  %v3102 = vsel %vm294, %v3085, 0.0
  %v3103 = vsel %vm295, %v3087, 0.0
  %v3104 = vsel %vm86, %v3088, 0.0
  %3105 = vadd.xlane.f32.xlu0 %v3104
  %v3106 = vpop.xlane.xlu0 %3105
  %v3107 = vsel %vm86, %v3089, 0.0
  %3108 = vadd.xlane.f32.xlu0 %v3107
  %v3109 = vpop.xlane.xlu0 %3108
  %v3110 = vsel %vm86, %v3090, 0.0
  %3111 = vadd.xlane.f32.xlu0 %v3110
  %v3112 = vpop.xlane.xlu0 %3111
  %v3113 = vsel %vm86, %v3091, 0.0
  %3114 = vadd.xlane.f32.xlu0 %v3113
  %v3115 = vpop.xlane.xlu0 %3114
  %v3116 = vsel %vm86, %v3092, 0.0
  %3117 = vadd.xlane.f32.xlu0 %v3116
  %v3118 = vpop.xlane.xlu0 %3117
  %v3119 = vsel %vm86, %v3093, 0.0
  %3120 = vadd.xlane.f32.xlu0 %v3119
  %v3121 = vpop.xlane.xlu0 %3120
  %v3122 = vsel %vm86, %v3094, 0.0
  %3123 = vadd.xlane.f32.xlu0 %v3122
  %v3124 = vpop.xlane.xlu0 %3123
  %v3125 = vsel %vm86, %v3095, 0.0
  %3126 = vadd.xlane.f32.xlu0 %v3125
  %v3127 = vpop.xlane.xlu0 %3126
  %v3128 = vsel %vm86, %v3096, 0.0
  %3129 = vadd.xlane.f32.xlu0 %v3128
  %v3130 = vpop.xlane.xlu0 %3129
  %v3131 = vsel %vm86, %v3097, 0.0
  %3132 = vadd.xlane.f32.xlu0 %v3131
  %v3133 = vpop.xlane.xlu0 %3132
  %v3134 = vsel %vm86, %v3098, 0.0
  %3135 = vadd.xlane.f32.xlu0 %v3134
  %v3136 = vpop.xlane.xlu0 %3135
  %v3137 = vsel %vm86, %v3099, 0.0
  %3138 = vadd.xlane.f32.xlu0 %v3137
  %v3139 = vpop.xlane.xlu0 %3138
  %v3140 = vsel %vm86, %v3100, 0.0
  %3141 = vadd.xlane.f32.xlu0 %v3140
  %v3142 = vpop.xlane.xlu0 %3141
  %v3143 = vsel %vm86, %v3101, 0.0
  %3144 = vadd.xlane.f32.xlu0 %v3143
  %v3145 = vpop.xlane.xlu0 %3144
  %v3146 = vsel %vm86, %v3102, 0.0
  %3147 = vadd.xlane.f32.xlu0 %v3146
  %v3148 = vpop.xlane.xlu0 %3147
  %v3149 = vsel %vm86, %v3103, 0.0
  %3150 = vadd.xlane.f32.xlu0 %v3149
  %v3151 = vpop.xlane.xlu0 %3150
  %v3152 = vrcp.pop %v3106
  %v3153 = vrcp.pop %v3109
  %v3154 = vrcp.pop %v3112
  %v3155 = vrcp.pop %v3115
  %v3156 = vrcp.pop %v3118
  %v3157 = vrcp.pop %v3121
  %v3158 = vrcp.pop %v3124
  %v3159 = vrcp.pop %v3127
  %v3160 = vrcp.pop %v3130
  %v3161 = vrcp.pop %v3133
  %v3162 = vrcp.pop %v3136
  %v3163 = vrcp.pop %v3139
  %v3164 = vrcp.pop %v3142
  %v3165 = vrcp.pop %v3145
  %v3166 = vrcp.pop %v3148
  %v3167 = vrcp.pop %v3151
  %v3168 = vmul.f32 %v3088, %v3152
  %v3169 = vmul.f32 %v3089, %v3153
  %v3170 = vmul.f32 %v3090, %v3154
  %v3171 = vmul.f32 %v3091, %v3155
  %v3172 = vmul.f32 %v3092, %v3156
  %v3173 = vmul.f32 %v3093, %v3157
  %v3174 = vmul.f32 %v3094, %v3158
  %v3175 = vmul.f32 %v3095, %v3159
  %v3176 = vmul.f32 %v3096, %v3160
  %v3177 = vmul.f32 %v3097, %v3161
  %v3178 = vmul.f32 %v3098, %v3162
  %v3179 = vmul.f32 %v3099, %v3163
  %v3180 = vmul.f32 %v3100, %v3164
  %v3181 = vmul.f32 %v3101, %v3165
  %v3182 = vmul.f32 %v3102, %v3166
  %v3183 = vmul.f32 %v3103, %v3167
  %v3185 = vsel %vm86, %v3168, 0
  %v3188 = vsel %vm86, %v3169, 0
  %v3191 = vsel %vm86, %v3170, 0
  %v3194 = vsel %vm86, %v3171, 0
  %v3197 = vsel %vm86, %v3172, 0
  %v3200 = vsel %vm86, %v3173, 0
  %v3203 = vsel %vm86, %v3174, 0
  %v3206 = vsel %vm86, %v3175, 0
  %v3209 = vsel %vm86, %v3176, 0
  %v3212 = vsel %vm86, %v3177, 0
  %v3215 = vsel %vm86, %v3178, 0
  %v3218 = vsel %vm86, %v3179, 0
  %v3221 = vsel %vm86, %v3180, 0
  %v3224 = vsel %vm86, %v3181, 0
  %v3227 = vsel %vm86, %v3182, 0
  %v3230 = vsel %vm86, %v3183, 0
  %3232 = vmatprep.subr.mxu0 0.0
  %3233 = vmatpush1.msra.mxu0 %v2532
  %3234 = vmatprep.subr.mxu0 0.0
  %3235 = vmatpush1.msra.mxu0 %v2537
  %3236 = vmatprep.subr.mxu0 0.0
  %3237 = vmatpush1.msra.mxu0 0.0
  %3238 = vmatprep.subr.mxu0 0.0
  %3239 = vmatpush1.msra.mxu0 0.0
  %3240 = vmatprep.subr.mxu0 0.0
  %3241 = vmatpush1.msra.mxu0 0.0
  %3242 = vmatprep.subr.mxu0 0.0
  %3243 = vmatpush1.msra.mxu0 0.0
  %3244 = vmatprep.subr.mxu0 0.0
  %3245 = vmatpush1.msra.mxu0 0.0
  %3246 = vmatprep.subr.mxu0 0.0
  %3247 = vmatpush1.msra.mxu0 0.0
  %3248 = vmatprep.subr.mxu0 0.0
  %3249 = vmatpush1.msra.mxu0 0.0
  %3250 = vmatprep.subr.mxu0 0.0
  %3251 = vmatpush1.msra.mxu0 0.0
  %3252 = vmatprep.subr.mxu0 0.0
  %3253 = vmatpush1.msra.mxu0 0.0
  %3254 = vmatprep.subr.mxu0 0.0
  %3255 = vmatpush1.msra.mxu0 0.0
  %3256 = vmatprep.subr.mxu0 0.0
  %3257 = vmatpush1.msra.mxu0 0.0
  %3258 = vmatprep.subr.mxu0 0.0
  %3259 = vmatpush1.msra.mxu0 0.0
  %3260 = vmatprep.subr.mxu0 0.0
  %3261 = vmatpush1.msra.mxu0 0.0
  %3262 = vmatprep.subr.mxu0 0.0
  %3263 = vmatpush1.msra.mxu0 0.0
  %3264 = vmatprep.subr.mxu0 0.0
  %3265 = vmatpush1.msra.mxu0 0.0
  %3266 = vmatprep.subr.mxu0 0.0
  %3267 = vmatpush1.msra.mxu0 0.0
  %3268 = vmatprep.subr.mxu0 0.0
  %3269 = vmatpush1.msra.mxu0 0.0
  %3270 = vmatprep.subr.mxu0 0.0
  %3271 = vmatpush1.msra.mxu0 0.0
  %3272 = vmatprep.subr.mxu0 0.0
  %3273 = vmatpush1.msra.mxu0 0.0
  %3274 = vmatprep.subr.mxu0 0.0
  %3275 = vmatpush1.msra.mxu0 0.0
  %3276 = vmatprep.subr.mxu0 0.0
  %3277 = vmatpush1.msra.mxu0 0.0
  %3278 = vmatprep.subr.mxu0 0.0
  %3279 = vmatpush1.msra.mxu0 0.0
  %3280 = vmatprep.subr.mxu0 0.0
  %3281 = vmatpush1.msra.mxu0 0.0
  %3282 = vmatprep.subr.mxu0 0.0
  %3283 = vmatpush1.msra.mxu0 0.0
  %3284 = vmatprep.subr.mxu0 0.0
  %3285 = vmatpush1.msra.mxu0 0.0
  %3286 = vmatprep.subr.mxu0 0.0
  %3287 = vmatpush1.msra.mxu0 0.0
  %3288 = vmatprep.subr.mxu0 0.0
  %3289 = vmatpush1.msra.mxu0 0.0
  %3290 = vmatprep.subr.mxu0 0.0
  %3291 = vmatpush1.msra.mxu0 0.0
  %3292 = vmatprep.subr.mxu0 0.0
  %3293 = vmatpush1.msra.mxu0 0.0
  %3294 = vmatprep.subr.mxu0 0.0
  %3295 = vmatpush1.msra.mxu0 0.0
  %3296 = vmatprep.mubr.f32.mxu0 0.0
  %3297 = vmatmul.mubr.f32.gmra.mrb[0].mxu0 %v3185
  %v3298 = vpop.f32.mrb[0].mxu0
  %v3299 = vadd.f32 0.0, %v3298
  %v3300 = vpop.f32.mrb[0].mxu0
  %3301 = vmatprep.mubr.f32.mxu0 0.0
  %3302 = vmatmul.mubr.f32.gmra.mrb[0].mxu0 %v3188
  %v3303 = vpop.f32.mrb[0].mxu0
  %v3304 = vadd.f32 0.0, %v3303
  %v3305 = vpop.f32.mrb[0].mxu0
  %3306 = vmatprep.mubr.f32.mxu0 0.0
  %3307 = vmatmul.mubr.f32.gmra.mrb[0].mxu0 %v3191
  %v3308 = vpop.f32.mrb[0].mxu0
  %v3309 = vadd.f32 0.0, %v3308
  %v3310 = vpop.f32.mrb[0].mxu0
  %3311 = vmatprep.mubr.f32.mxu0 0.0
  %3312 = vmatmul.mubr.f32.gmra.mrb[0].mxu0 %v3194
  %v3313 = vpop.f32.mrb[0].mxu0
  %v3314 = vadd.f32 0.0, %v3313
  %v3315 = vpop.f32.mrb[0].mxu0
  %3316 = vmatprep.mubr.f32.mxu0 0.0
  %3317 = vmatmul.mubr.f32.gmra.mrb[0].mxu0 %v3197
  %v3318 = vpop.f32.mrb[0].mxu0
  %v3319 = vadd.f32 0.0, %v3318
  %v3320 = vpop.f32.mrb[0].mxu0
  %3321 = vmatprep.mubr.f32.mxu0 0.0
  %3322 = vmatmul.mubr.f32.gmra.mrb[0].mxu0 %v3200
  %v3323 = vpop.f32.mrb[0].mxu0
  %v3324 = vadd.f32 0.0, %v3323
  %v3325 = vpop.f32.mrb[0].mxu0
  %3326 = vmatprep.mubr.f32.mxu0 0.0
  %3327 = vmatmul.mubr.f32.gmra.mrb[0].mxu0 %v3203
  %v3328 = vpop.f32.mrb[0].mxu0
  %v3329 = vadd.f32 0.0, %v3328
  %v3330 = vpop.f32.mrb[0].mxu0
  %3331 = vmatprep.mubr.f32.mxu0 0.0
  %3332 = vmatmul.mubr.f32.gmra.mrb[0].mxu0 %v3206
  %v3333 = vpop.f32.mrb[0].mxu0
  %v3334 = vadd.f32 0.0, %v3333
  %v3335 = vpop.f32.mrb[0].mxu0
  %3336 = vmatprep.mubr.f32.mxu0 0.0
  %3337 = vmatmul.mubr.f32.gmra.mrb[0].mxu0 %v3209
  %v3338 = vpop.f32.mrb[0].mxu0
  %v3339 = vadd.f32 0.0, %v3338
  %v3340 = vpop.f32.mrb[0].mxu0
  %3341 = vmatprep.mubr.f32.mxu0 0.0
  %3342 = vmatmul.mubr.f32.gmra.mrb[0].mxu0 %v3212
  %v3343 = vpop.f32.mrb[0].mxu0
  %v3344 = vadd.f32 0.0, %v3343
  %v3345 = vpop.f32.mrb[0].mxu0
  %3346 = vmatprep.mubr.f32.mxu0 0.0
  %3347 = vmatmul.mubr.f32.gmra.mrb[0].mxu0 %v3215
  %v3348 = vpop.f32.mrb[0].mxu0
  %v3349 = vadd.f32 0.0, %v3348
  %v3350 = vpop.f32.mrb[0].mxu0
  %3351 = vmatprep.mubr.f32.mxu0 0.0
  %3352 = vmatmul.mubr.f32.gmra.mrb[0].mxu0 %v3218
  %v3353 = vpop.f32.mrb[0].mxu0
  %v3354 = vadd.f32 0.0, %v3353
  %v3355 = vpop.f32.mrb[0].mxu0
  %3356 = vmatprep.mubr.f32.mxu0 0.0
  %3357 = vmatmul.mubr.f32.gmra.mrb[0].mxu0 %v3221
  %v3358 = vpop.f32.mrb[0].mxu0
  %v3359 = vadd.f32 0.0, %v3358
  %v3360 = vpop.f32.mrb[0].mxu0
  %3361 = vmatprep.mubr.f32.mxu0 0.0
  %3362 = vmatmul.mubr.f32.gmra.mrb[0].mxu0 %v3224
  %v3363 = vpop.f32.mrb[0].mxu0
  %v3364 = vadd.f32 0.0, %v3363
  %v3365 = vpop.f32.mrb[0].mxu0
  %3366 = vmatprep.mubr.f32.mxu0 0.0
  %3367 = vmatmul.mubr.f32.gmra.mrb[0].mxu0 %v3227
  %v3368 = vpop.f32.mrb[0].mxu0
  %v3369 = vadd.f32 0.0, %v3368
  %v3370 = vpop.f32.mrb[0].mxu0
  %3371 = vmatprep.mubr.f32.mxu0 0.0
  %3372 = vmatmul.mubr.f32.gmra.mrb[0].mxu0 %v3230
  %v3373 = vpop.f32.mrb[0].mxu0
  %v3374 = vadd.f32 0.0, %v3373
  %v3375 = vpop.f32.mrb[0].mxu0
  %3376 = vdwg.mxu0
  %v3377 = vmul.f32 %v3299, %v2326
  %v3378 = vmul.f32 %v3304, %v2327
  %v3379 = vmul.f32 %v3309, %v2328
  %v3380 = vmul.f32 %v3314, %v2329
  %v3381 = vmul.f32 %v3319, %v2330
  %v3382 = vmul.f32 %v3324, %v2331
  %v3383 = vmul.f32 %v3329, %v2332
  %v3384 = vmul.f32 %v3334, %v2333
  %v3385 = vmul.f32 %v3339, %v2334
  %v3386 = vmul.f32 %v3344, %v2335
  %v3387 = vmul.f32 %v3349, %v2336
  %v3388 = vmul.f32 %v3354, %v2337
  %v3389 = vmul.f32 %v3359, %v2338
  %v3390 = vmul.f32 %v3364, %v2339
  %v3391 = vmul.f32 %v3369, %v2340
  %v3392 = vmul.f32 %v3374, %v2341
  %v3393 = vld [vmem:[%s7] sm:$0x1]
  %v3395 = vlaneseq
  %v3396 = vshrl.u32 %v3395, 7
  %v3397 = vsub.s32 0, %v3396
  %v3398 = vrot.slane %v3393, %v3397
  %3400 = vmatprep.subr.mxu0 0.0
  %3401 = vmatpush1.msra.mxu0 %v3377
  %3402 = vmatprep.subr.mxu0 0.0
  %3403 = vmatpush1.msra.mxu0 %v3378
  %3404 = vmatprep.subr.mxu0 0.0
  %3405 = vmatpush1.msra.mxu0 %v3379
  %3406 = vmatprep.subr.mxu0 0.0
  %3407 = vmatpush1.msra.mxu0 %v3380
  %3408 = vmatprep.subr.mxu0 0.0
  %3409 = vmatpush1.msra.mxu0 %v3381
  %3410 = vmatprep.subr.mxu0 0.0
  %3411 = vmatpush1.msra.mxu0 %v3382
  %3412 = vmatprep.subr.mxu0 0.0
  %3413 = vmatpush1.msra.mxu0 %v3383
  %3414 = vmatprep.subr.mxu0 0.0
  %3415 = vmatpush1.msra.mxu0 %v3384
  %3416 = vmatprep.subr.mxu0 0.0
  %3417 = vmatpush1.msra.mxu0 %v3385
  %3418 = vmatprep.subr.mxu0 0.0
  %3419 = vmatpush1.msra.mxu0 %v3386
  %3420 = vmatprep.subr.mxu0 0.0
  %3421 = vmatpush1.msra.mxu0 %v3387
  %3422 = vmatprep.subr.mxu0 0.0
  %3423 = vmatpush1.msra.mxu0 %v3388
  %3424 = vmatprep.subr.mxu0 0.0
  %3425 = vmatpush1.msra.mxu0 %v3389
  %3426 = vmatprep.subr.mxu0 0.0
  %3427 = vmatpush1.msra.mxu0 %v3390
  %3428 = vmatprep.subr.mxu0 0.0
  %3429 = vmatpush1.msra.mxu0 %v3391
  %3430 = vmatprep.subr.mxu0 0.0
  %3431 = vmatpush1.msra.mxu0 %v3392
  %3432 = vmatprep.subr.mxu0 0.0
  %3433 = vmatpush1.msra.mxu0 0.0
  %3434 = vmatprep.subr.mxu0 0.0
  %3435 = vmatpush1.msra.mxu0 0.0
  %3436 = vmatprep.subr.mxu0 0.0
  %3437 = vmatpush1.msra.mxu0 0.0
  %3438 = vmatprep.subr.mxu0 0.0
  %3439 = vmatpush1.msra.mxu0 0.0
  %3440 = vmatprep.subr.mxu0 0.0
  %3441 = vmatpush1.msra.mxu0 0.0
  %3442 = vmatprep.subr.mxu0 0.0
  %3443 = vmatpush1.msra.mxu0 0.0
  %3444 = vmatprep.subr.mxu0 0.0
  %3445 = vmatpush1.msra.mxu0 0.0
  %3446 = vmatprep.subr.mxu0 0.0
  %3447 = vmatpush1.msra.mxu0 0.0
  %3448 = vmatprep.subr.mxu0 0.0
  %3449 = vmatpush1.msra.mxu0 0.0
  %3450 = vmatprep.subr.mxu0 0.0
  %3451 = vmatpush1.msra.mxu0 0.0
  %3452 = vmatprep.subr.mxu0 0.0
  %3453 = vmatpush1.msra.mxu0 0.0
  %3454 = vmatprep.subr.mxu0 0.0
  %3455 = vmatpush1.msra.mxu0 0.0
  %3456 = vmatprep.subr.mxu0 0.0
  %3457 = vmatpush1.msra.mxu0 0.0
  %3458 = vmatprep.subr.mxu0 0.0
  %3459 = vmatpush1.msra.mxu0 0.0
  %3460 = vmatprep.subr.mxu0 0.0
  %3461 = vmatpush1.msra.mxu0 0.0
  %3462 = vmatprep.subr.mxu0 0.0
  %3463 = vmatpush1.msra.mxu0 0.0
  %3464 = vmatprep.mubr.f32.mxu0 0.0
  %3465 = vmatmul.mubr.f32.gmra.mrb[0].mxu0 %v84
  %v3466 = vpop.f32.mrb[0].mxu0
  %v3467 = vadd.f32 %v3398, %v3466
  %v3468 = vpop.f32.mrb[0].mxu0
  %3469 = vmatprep.mubr.f32.mxu0 0.0
  %3470 = vmatmul.mubr.f32.gmra.mrb[0].mxu0 %v85
  %v3471 = vpop.f32.mrb[0].mxu0
  %v3472 = vadd.f32 %v3398, %v3471
  %v3473 = vpop.f32.mrb[0].mxu0
  %3474 = vdwg.mxu0
  %vm3475 = vcmp.gt.f32.partialorder %v3467, 0.0
  %vm3476 = vcmp.gt.f32.partialorder %v3472, 0.0
  %v3477 = vmul.f32 %v3467, 1.442695
  %v3478 = vpow.pop %v3477
  %v3479 = vmul.f32 %v3472, 1.442695
  %v3480 = vpow.pop %v3479
  %v3481 = vsub.f32 %v3478, 1.0
  %v3482 = vsub.f32 %v3480, 1.0
  %v3483 = vsel %vm3475, %v3467, %v3481
  %v3484 = vsel %vm3476, %v3472, %v3482
  %v3485 = vld [vmem:[%s8] sm:$0xff]
  %v3486 = vld [vmem:[%s8 + $0x8] sm:$0xff]
  %v3487 = vld [vmem:[%s8 + $0x10] sm:$0xff]
  %v3488 = vld [vmem:[%s8 + $0x18] sm:$0xff]
  %v3489 = vld [vmem:[%s8 + $0x20] sm:$0xff]
  %v3490 = vld [vmem:[%s8 + $0x28] sm:$0xff]
  %v3491 = vld [vmem:[%s8 + $0x30] sm:$0xff]
  %v3492 = vld [vmem:[%s8 + $0x38] sm:$0xff]
  %v3494 = vsel %vm2458, %v3483, 0
  %v3497 = vsel %vm2458, %v3484, 0
  %3499 = vmatprep.subr.mxu0 0.0
  %3500 = vmatpush1.msra.mxu0 %v3485
  %3501 = vmatprep.subr.mxu0 0.0
  %3502 = vmatpush1.msra.mxu0 %v3486
  %3503 = vmatprep.subr.mxu0 0.0
  %3504 = vmatpush1.msra.mxu0 %v3487
  %3505 = vmatprep.subr.mxu0 0.0
  %3506 = vmatpush1.msra.mxu0 %v3488
  %3507 = vmatprep.subr.mxu0 0.0
  %3508 = vmatpush1.msra.mxu0 %v3489
  %3509 = vmatprep.subr.mxu0 0.0
  %3510 = vmatpush1.msra.mxu0 %v3490
  %3511 = vmatprep.subr.mxu0 0.0
  %3512 = vmatpush1.msra.mxu0 %v3491
  %3513 = vmatprep.subr.mxu0 0.0
  %3514 = vmatpush1.msra.mxu0 %v3492
  %3515 = vmatprep.subr.mxu0 0.0
  %3516 = vmatpush1.msra.mxu0 0.0
  %3517 = vmatprep.subr.mxu0 0.0
  %3518 = vmatpush1.msra.mxu0 0.0
  %3519 = vmatprep.subr.mxu0 0.0
  %3520 = vmatpush1.msra.mxu0 0.0
  %3521 = vmatprep.subr.mxu0 0.0
  %3522 = vmatpush1.msra.mxu0 0.0
  %3523 = vmatprep.subr.mxu0 0.0
  %3524 = vmatpush1.msra.mxu0 0.0
  %3525 = vmatprep.subr.mxu0 0.0
  %3526 = vmatpush1.msra.mxu0 0.0
  %3527 = vmatprep.subr.mxu0 0.0
  %3528 = vmatpush1.msra.mxu0 0.0
  %3529 = vmatprep.subr.mxu0 0.0
  %3530 = vmatpush1.msra.mxu0 0.0
  %3531 = vmatprep.subr.mxu0 0.0
  %3532 = vmatpush1.msra.mxu0 0.0
  %3533 = vmatprep.subr.mxu0 0.0
  %3534 = vmatpush1.msra.mxu0 0.0
  %3535 = vmatprep.subr.mxu0 0.0
  %3536 = vmatpush1.msra.mxu0 0.0
  %3537 = vmatprep.subr.mxu0 0.0
  %3538 = vmatpush1.msra.mxu0 0.0
  %3539 = vmatprep.subr.mxu0 0.0
  %3540 = vmatpush1.msra.mxu0 0.0
  %3541 = vmatprep.subr.mxu0 0.0
  %3542 = vmatpush1.msra.mxu0 0.0
  %3543 = vmatprep.subr.mxu0 0.0
  %3544 = vmatpush1.msra.mxu0 0.0
  %3545 = vmatprep.subr.mxu0 0.0
  %3546 = vmatpush1.msra.mxu0 0.0
  %3547 = vmatprep.subr.mxu0 0.0
  %3548 = vmatpush1.msra.mxu0 0.0
  %3549 = vmatprep.subr.mxu0 0.0
  %3550 = vmatpush1.msra.mxu0 0.0
  %3551 = vmatprep.subr.mxu0 0.0
  %3552 = vmatpush1.msra.mxu0 0.0
  %3553 = vmatprep.subr.mxu0 0.0
  %3554 = vmatpush1.msra.mxu0 0.0
  %3555 = vmatprep.subr.mxu0 0.0
  %3556 = vmatpush1.msra.mxu0 0.0
  %3557 = vmatprep.subr.mxu0 0.0
  %3558 = vmatpush1.msra.mxu0 0.0
  %3559 = vmatprep.subr.mxu0 0.0
  %3560 = vmatpush1.msra.mxu0 0.0
  %3561 = vmatprep.subr.mxu0 0.0
  %3562 = vmatpush1.msra.mxu0 0.0
  %3563 = vmatprep.mubr.f32.mxu0 0.0
  %3564 = vmatmul.mubr.f32.gmra.mrb[0].mxu0 %v3494
  %v3565 = vpop.f32.mrb[0].mxu0
  %v3566 = vadd.f32 0.0, %v3565
  %v3567 = vpop.f32.mrb[0].mxu0
  %3568 = vmatprep.mubr.f32.mxu0 0.0
  %3569 = vmatmul.mubr.f32.gmra.mrb[0].mxu0 %v3497
  %v3570 = vpop.f32.mrb[0].mxu0
  %v3571 = vadd.f32 0.0, %v3570
  %v3572 = vpop.f32.mrb[0].mxu0
  %3573 = vdwg.mxu0
  %3576 = vrot.lane.b32.xlu0 %v3566, 120
  %v3577 = vpop.permute.xlu0 %3576
  %3578 = vrot.lane.b32.xlu0 %v3571, 120
  %v3579 = vpop.permute.xlu0 %3578
  %3582 = vxpose.xlu0.b32.start [1/16] %v3577, 128
  %3583 = vxpose.xlu0.b32.cont [2/16] %v3579, 128
  %3584 = vxpose.xlu0.b32.cont [3/16] 0.0, 128
  %3585 = vxpose.xlu0.b32.cont [4/16] 0.0, 128
  %3586 = vxpose.xlu0.b32.cont [5/16] 0.0, 128
  %3587 = vxpose.xlu0.b32.cont [6/16] 0.0, 128
  %3588 = vxpose.xlu0.b32.cont [7/16] 0.0, 128
  %3589 = vxpose.xlu0.b32.cont [8/16] 0.0, 128
  %3590 = vxpose.xlu0.b32.cont [9/16] 0.0, 128
  %3591 = vxpose.xlu0.b32.cont [10/16] 0.0, 128
  %3592 = vxpose.xlu0.b32.cont [11/16] 0.0, 128
  %3593 = vxpose.xlu0.b32.cont [12/16] 0.0, 128
  %3594 = vxpose.xlu0.b32.cont [13/16] 0.0, 128
  %3595 = vxpose.xlu0.b32.cont [14/16] 0.0, 128
  %3596 = vxpose.xlu0.b32.cont [15/16] 0.0, 128
  %3597 = vxpose.xlu0.b32.end [16/16] 0.0, 128
  %v3598 = vpop.trf.xlu0
  %v3599 = vpop.trf.xlu0
  %v3600 = vpop.trf.xlu0
  %v3601 = vpop.trf.xlu0
  %v3602 = vpop.trf.xlu0
  %v3603 = vpop.trf.xlu0
  %v3604 = vpop.trf.xlu0
  %v3605 = vpop.trf.xlu0
  %v3606 = vpop.trf.xlu0
  %v3607 = vpop.trf.xlu0
  %v3608 = vpop.trf.xlu0
  %v3609 = vpop.trf.xlu0
  %v3610 = vpop.trf.xlu0
  %v3611 = vpop.trf.xlu0
  %v3612 = vpop.trf.xlu0
  %v3613 = vpop.trf.xlu0
  %3614 = vset.pattern.permute.xlu0 9
  %3615 = vperm.xlu0 %3614, %v3566
  %v3616 = vpop.permute.xlu0 %3615
  %3618 = vset.pattern.permute.xlu0 9
  %3619 = vperm.xlu0 %3618, %v3571
  %v3620 = vpop.permute.xlu0 %3619
  %v3622 = vlaneseq
  %v3623 = vshrl.u32 %v3622, 7
  %v3624 = vsub.s32 0, %v3623
  %v3625 = vrot.slane %v3598, %v3624
  %v3626 = vadd.f32 %v3616, %v3625
  %v3627 = vadd.f32 %v3620, %v3625
  %vm3628 = vcmp.gt.f32.partialorder %v3626, 0.0
  %vm3629 = vcmp.gt.f32.partialorder %v3627, 0.0
  %v3630 = vmul.f32 %v3626, 0.2
  %v3631 = vmul.f32 %v3627, 0.2
  %v3632 = vsel %vm3628, %v3626, %v3630
  %v3633 = vsel %vm3629, %v3627, %v3631
  %v3634 = vsel %vm296, %v3632, -1e+30
  %v3635 = vsel %vm297, %v3633, -1e+30
  %v3636 = vsel %vm86, %v3634, -inf
  %3637 = vmax.xlane.f32.xlu0 %v3636
  %v3638 = vpop.xlane.xlu0 %3637
  %v3639 = vsel %vm86, %v3635, -inf
  %3640 = vmax.xlane.f32.xlu0 %v3639
  %v3641 = vpop.xlane.xlu0 %3640
  %v3642 = vsub.f32 %v3634, %v3638
  %v3643 = vsub.f32 %v3635, %v3641
  %v3644 = vmul.f32 %v3642, 1.442695
  %v3645 = vpow.pop %v3644
  %v3646 = vmul.f32 %v3643, 1.442695
  %v3647 = vpow.pop %v3646
  %v3648 = vsel %vm296, %v3645, 0.0
  %v3649 = vsel %vm297, %v3647, 0.0
  %v3650 = vsel %vm86, %v3648, 0.0
  %3651 = vadd.xlane.f32.xlu0 %v3650
  %v3652 = vpop.xlane.xlu0 %3651
  %v3653 = vsel %vm86, %v3649, 0.0
  %3654 = vadd.xlane.f32.xlu0 %v3653
  %v3655 = vpop.xlane.xlu0 %3654
  %v3656 = vrcp.pop %v3652
  %v3657 = vrcp.pop %v3655
  %v3658 = vmul.f32 %v3648, %v3656
  %v3659 = vmul.f32 %v3649, %v3657
  %v3660 = vld [vmem:[%s9] sm:$0x1]
  %v3662 = vlaneseq
  %v3663 = vshrl.u32 %v3662, 7
  %v3664 = vsub.s32 0, %v3663
  %v3665 = vrot.slane %v3660, %v3664
  %v3668 = vsel %vm86, %v3658, 0
  %v3671 = vsel %vm86, %v3659, 0
  %3673 = vmatprep.subr.mxu0 0.0
  %3674 = vmatpush1.msra.mxu0 %v3566
  %3675 = vmatprep.subr.mxu0 0.0
  %3676 = vmatpush1.msra.mxu0 %v3571
  %3677 = vmatprep.subr.mxu0 0.0
  %3678 = vmatpush1.msra.mxu0 0.0
  %3679 = vmatprep.subr.mxu0 0.0
  %3680 = vmatpush1.msra.mxu0 0.0
  %3681 = vmatprep.subr.mxu0 0.0
  %3682 = vmatpush1.msra.mxu0 0.0
  %3683 = vmatprep.subr.mxu0 0.0
  %3684 = vmatpush1.msra.mxu0 0.0
  %3685 = vmatprep.subr.mxu0 0.0
  %3686 = vmatpush1.msra.mxu0 0.0
  %3687 = vmatprep.subr.mxu0 0.0
  %3688 = vmatpush1.msra.mxu0 0.0
  %3689 = vmatprep.subr.mxu0 0.0
  %3690 = vmatpush1.msra.mxu0 0.0
  %3691 = vmatprep.subr.mxu0 0.0
  %3692 = vmatpush1.msra.mxu0 0.0
  %3693 = vmatprep.subr.mxu0 0.0
  %3694 = vmatpush1.msra.mxu0 0.0
  %3695 = vmatprep.subr.mxu0 0.0
  %3696 = vmatpush1.msra.mxu0 0.0
  %3697 = vmatprep.subr.mxu0 0.0
  %3698 = vmatpush1.msra.mxu0 0.0
  %3699 = vmatprep.subr.mxu0 0.0
  %3700 = vmatpush1.msra.mxu0 0.0
  %3701 = vmatprep.subr.mxu0 0.0
  %3702 = vmatpush1.msra.mxu0 0.0
  %3703 = vmatprep.subr.mxu0 0.0
  %3704 = vmatpush1.msra.mxu0 0.0
  %3705 = vmatprep.subr.mxu0 0.0
  %3706 = vmatpush1.msra.mxu0 0.0
  %3707 = vmatprep.subr.mxu0 0.0
  %3708 = vmatpush1.msra.mxu0 0.0
  %3709 = vmatprep.subr.mxu0 0.0
  %3710 = vmatpush1.msra.mxu0 0.0
  %3711 = vmatprep.subr.mxu0 0.0
  %3712 = vmatpush1.msra.mxu0 0.0
  %3713 = vmatprep.subr.mxu0 0.0
  %3714 = vmatpush1.msra.mxu0 0.0
  %3715 = vmatprep.subr.mxu0 0.0
  %3716 = vmatpush1.msra.mxu0 0.0
  %3717 = vmatprep.subr.mxu0 0.0
  %3718 = vmatpush1.msra.mxu0 0.0
  %3719 = vmatprep.subr.mxu0 0.0
  %3720 = vmatpush1.msra.mxu0 0.0
  %3721 = vmatprep.subr.mxu0 0.0
  %3722 = vmatpush1.msra.mxu0 0.0
  %3723 = vmatprep.subr.mxu0 0.0
  %3724 = vmatpush1.msra.mxu0 0.0
  %3725 = vmatprep.subr.mxu0 0.0
  %3726 = vmatpush1.msra.mxu0 0.0
  %3727 = vmatprep.subr.mxu0 0.0
  %3728 = vmatpush1.msra.mxu0 0.0
  %3729 = vmatprep.subr.mxu0 0.0
  %3730 = vmatpush1.msra.mxu0 0.0
  %3731 = vmatprep.subr.mxu0 0.0
  %3732 = vmatpush1.msra.mxu0 0.0
  %3733 = vmatprep.subr.mxu0 0.0
  %3734 = vmatpush1.msra.mxu0 0.0
  %3735 = vmatprep.subr.mxu0 0.0
  %3736 = vmatpush1.msra.mxu0 0.0
  %3737 = vmatprep.mubr.f32.mxu0 0.0
  %3738 = vmatmul.mubr.f32.gmra.mrb[0].mxu0 %v3668
  %v3739 = vpop.f32.mrb[0].mxu0
  %v3740 = vadd.f32 %v3665, %v3739
  %v3741 = vpop.f32.mrb[0].mxu0
  %3742 = vmatprep.mubr.f32.mxu0 0.0
  %3743 = vmatmul.mubr.f32.gmra.mrb[0].mxu0 %v3671
  %v3744 = vpop.f32.mrb[0].mxu0
  %v3745 = vadd.f32 %v3665, %v3744
  %v3746 = vpop.f32.mrb[0].mxu0
  %3747 = vdwg.mxu0
  %v3748 = vsel %vm392, %v3740, -inf
  %3749 = vmax.xlane.f32.xlu0 %v3748
  %v3750 = vpop.xlane.xlu0 %3749
  %v3751 = vsel %vm392, %v3745, -inf
  %3752 = vmax.xlane.f32.xlu0 %v3751
  %v3753 = vpop.xlane.xlu0 %3752
  %v3754 = vsub.f32 %v3740, %v3750
  %v3755 = vsub.f32 %v3745, %v3753
  %v3756 = vmul.f32 %v3754, 1.442695
  %v3757 = vpow.pop %v3756
  %v3758 = vmul.f32 %v3755, 1.442695
  %v3759 = vpow.pop %v3758
  %v3760 = vsel %vm392, %v3757, 0.0
  %3761 = vadd.xlane.f32.xlu0 %v3760
  %v3762 = vpop.xlane.xlu0 %3761
  %v3763 = vsel %vm392, %v3759, 0.0
  %3764 = vadd.xlane.f32.xlu0 %v3763
  %v3765 = vpop.xlane.xlu0 %3764
  %v3766 = vlog2.pop %v3762
  %v3767 = vmul.f32 %v3766, 0.6931472
  %v3768 = vlog2.pop %v3765
  %v3769 = vmul.f32 %v3768, 0.6931472
  %v3770 = vsub.f32 %v3754, %v3767
  %v3771 = vsub.f32 %v3755, %v3769
  %3772 = vst.msk [vmem:[%s15] sm:$0xff] %vm392, %v3770
  %3773 = vst.msk [vmem:[%s15 + $0x8] sm:$0xff] %vm392, %v3771
  // Predicated region
  $region62: #{net_amazon_gat_forward.1} parent=0 // pred_check
    _
  $region63: #{net_amazon_gat_forward.1} parent=0 // pred_check_branch
    %3775 = sbr.rel (0) target = $region65
  $region64: #{net_amazon_gat_forward.1} parent=0 // pred_region
    _
  $region65: #{net_amazon_gat_forward.1} parent=0 // pred_fallthru
    _
  // Predicated region
  $region66: #{net_amazon_gat_forward.1} parent=0 // pred_check
    _
  $region67: #{net_amazon_gat_forward.1} parent=0 // pred_check_branch
    %3777 = sbr.rel (0) target = $region69
  $region68: #{net_amazon_gat_forward.1} parent=0 // pred_region
    _
  $region69: #{net_amazon_gat_forward.1} parent=0 // pred_fallthru
    _

</llo_original>
